<compile_context>
chip_gen: v7x
topology: tpu7x:2x2x1
jax: 0.10.0
libtpu: 0.0.40
codegen_flags: <defaults>
</compile_context>

<pallas_src>
import jax
import jax.numpy as jnp
from jax.experimental import pallas as pl
from jax.experimental.pallas import tpu as pltpu

BN_EPS = 1e-5


def _transition_kernel(x_ref, scale_ref, shift_ref, wblk_ref, pool_ref, o_ref):
    """One grid step processes `block_n` images.

    x_ref:     (block_n*Cin, H*W)             NCHW activations, one row per (image, channel)
    scale_ref: (block_n*Cin, 1)               folded BN scale per row (f32)
    shift_ref: (block_n*Cin, 1)               folded BN shift per row (f32)
    wblk_ref:  (block_n*Cout, block_n*Cin)    block-diagonal 1x1-conv weight
    pool_ref:  (H*W, Ho*Wo)                   2x2 average-pool matrix (0 / 0.25)
    o_ref:     (block_n*Cout, Ho*Wo)
    """
    mm_dtype = pool_ref.dtype

    # BatchNorm (inference, pre-folded) + ReLU in f32.
    x = x_ref[...].astype(jnp.float32)
    z = jnp.maximum(x * scale_ref[...] + shift_ref[...], 0.0)

    # 1x1 conv for the whole block in ONE matmul via the block-diagonal weight:
    # (bn*Cout, bn*Cin) @ (bn*Cin, HW) -> (bn*Cout, HW), f32 accumulation.
    y = jnp.dot(wblk_ref[...], z.astype(mm_dtype),
                preferred_element_type=jnp.float32)

    # 2x2 average pool as one matmul on the (smaller) conv output:
    # (bn*Cout, HW) @ (HW, PP) -> (bn*Cout, PP).  Spatial axis stays on lanes.
    if mm_dtype != jnp.float32:
        y = y.astype(mm_dtype)
    out = jnp.dot(y, pool_ref[...], preferred_element_type=jnp.float32)
    o_ref[...] = out.astype(o_ref.dtype)

    # TODO(synk): dropout (droprate > 0) not implemented; module default is 0.0.


def _vmem_capacity_bytes():
    try:
        info = pltpu.get_tpu_info()
        cap = getattr(info, "vmem_capacity_bytes", None)
        if cap:
            return int(cap)
    except Exception:
        pass
    return 128 * 1024 * 1024


def _pick_block_n(n, cin, cout, hw, pp, in_itemsize, out_itemsize, mm_itemsize,
                  sub_in, sub_out, min_grid_steps, vmem_budget):
    """Images per grid step, with full VMEM accounting (double-buffered input
    and output blocks, resident pool matrix, block-diag weight, scale/shift,
    and f32 temporaries)."""

    def vmem_usage(bn):
        inp = 2 * bn * cin * hw * in_itemsize            # pipelined input block
        outp = 2 * bn * cout * pp * out_itemsize         # pipelined output block
        pool = 2 * hw * pp * mm_itemsize                 # pool matrix
        wblk = 2 * (bn * cout) * (bn * cin) * mm_itemsize
        bnsc = 2 * 2 * bn * cin * 4                      # scale + shift
        tmps = (bn * cin * hw + bn * cout * hw + bn * cout * pp) * 4
        return inp + outp + pool + wblk + bnsc + tmps

    def legal(bn):
        ok_in = (bn * cin) % sub_in == 0 or bn == n
        ok_out = (bn * cout) % sub_out == 0 or bn == n
        return ok_in and ok_out and vmem_usage(bn) <= vmem_budget

    candidates = [bn for bn in range(1, n + 1) if n % bn == 0 and legal(bn)]
    if not candidates:
        return 1, vmem_usage(1)
    preferred = [bn for bn in candidates if n // bn >= min_grid_steps]
    bn = max(preferred) if preferred else max(candidates)
    return bn, vmem_usage(bn)


def transition_block_nchw(x, gamma, beta, run_mean, run_var, w_oihw,
                          *, use_bf16_matmul=False):
    """Matches TransitionBlock.forward (eval mode):
    x (N, Cin, H, W) -> (N, Cout, H//2, W//2).  All wrapper-level reshapes are
    contiguous (free); there are no layout transposes."""
    N, Cin, H, W = x.shape
    Cout = w_oihw.shape[0]
    assert H % 2 == 0 and W % 2 == 0
    Ho, Wo = H // 2, W // 2
    HW, PP = H * W, Ho * Wo

    out_dtype = x.dtype
    mm_dtype = jnp.bfloat16 if use_bf16_matmul else jnp.float32
    stream_dtype = jnp.bfloat16 if use_bf16_matmul else x.dtype

    # Generation-aware block sizing: v7x (64 MiB VMEM, 2 TCs) wants >= 2 grid
    # steps; bigger-VMEM single-TC parts just take the largest fitting block.
    cap = _vmem_capacity_bytes()
    min_grid_steps = 2 if cap <= 64 * 1024 * 1024 else 1
    vmem_budget = min(cap // 2, 48 * 1024 * 1024)

    sub_in = 16 if jnp.dtype(stream_dtype).itemsize == 2 else 8
    sub_out = 16 if jnp.dtype(out_dtype).itemsize == 2 else 8
    block_n, usage = _pick_block_n(
        N, Cin, Cout, HW, PP,
        jnp.dtype(stream_dtype).itemsize, jnp.dtype(out_dtype).itemsize,
        jnp.dtype(mm_dtype).itemsize,
        sub_in, sub_out, min_grid_steps, vmem_budget)
    grid = (N // block_n,)
    vmem_limit = int(min(cap * 3 // 4, max(32 * 1024 * 1024,
                                           usage + 8 * 1024 * 1024)))

    # Fold BN into per-row scale/shift (row = (image, channel) within a block;
    # the channel pattern repeats every image, so one column serves all steps).
    scale = gamma * jax.lax.rsqrt(run_var + BN_EPS)
    shift = beta - run_mean * scale
    scale_col = jnp.tile(scale, block_n).reshape(block_n * Cin, 1)
    shift_col = jnp.tile(shift, block_n).reshape(block_n * Cin, 1)

    # Block-diagonal 1x1-conv weight: (block_n*Cout, block_n*Cin).
    w2 = w_oihw[:, :, 0, 0].astype(mm_dtype)
    wblk = jnp.kron(jnp.eye(block_n, dtype=mm_dtype), w2)

    # 2x2 average-pool matrix: P[h*W + w, (h//2)*Wo + (w//2)] = 0.25
    # (0 and 0.25 are exact in bf16).
    q = jnp.arange(HW)
    tgt = (q // W // 2) * Wo + (q % W) // 2
    pool_mat = ((tgt[:, None] == jnp.arange(PP)[None, :]) * 0.25).astype(mm_dtype)

    # Free contiguous view of the NCHW input (optionally bf16-streamed).
    x2 = x.reshape(N * Cin, HW).astype(stream_dtype)

    out = pl.pallas_call(
        _transition_kernel,
        out_shape=jax.ShapeDtypeStruct((N * Cout, PP), out_dtype),
        grid_spec=pltpu.PrefetchScalarGridSpec(
            num_scalar_prefetch=0,
            grid=grid,
            in_specs=[
                pl.BlockSpec((block_n * Cin, HW), lambda i: (i, 0)),
                pl.BlockSpec((block_n * Cin, 1), lambda i: (0, 0)),
                pl.BlockSpec((block_n * Cin, 1), lambda i: (0, 0)),
                pl.BlockSpec((block_n * Cout, block_n * Cin), lambda i: (0, 0)),
                pl.BlockSpec((HW, PP), lambda i: (0, 0)),
            ],
            out_specs=pl.BlockSpec((block_n * Cout, PP), lambda i: (i, 0)),
        ),
        compiler_params=pltpu.CompilerParams(
            dimension_semantics=("parallel",),
            vmem_limit_bytes=vmem_limit),
    )(x2, scale_col, shift_col, wblk, pool_mat)

    # Free contiguous reshape back to NCHW.
    return out.reshape(N, Cout, Ho, Wo)


def _reference_nchw(x, gamma, beta, run_mean, run_var, w_oihw):
    # Plain-JAX reference (mirrors the PyTorch module in eval mode).
    g = gamma[None, :, None, None]
    b = beta[None, :, None, None]
    m = run_mean[None, :, None, None]
    v = run_var[None, :, None, None]
    xn = (x - m) * jax.lax.rsqrt(v + BN_EPS) * g + b
    xr = jnp.maximum(xn, 0.0)
    y = jnp.einsum("nchw,oc->nohw", xr, w_oihw[:, :, 0, 0],
                   precision=jax.lax.Precision.HIGHEST)
    n_, co, hh, ww = y.shape
    return y.reshape(n_, co, hh // 2, 2, ww // 2, 2).mean(axis=(3, 5))


if __name__ == "__main__":
    # Small DenseNet-transition-like config: batch 8, Cin=32 -> Cout=16,
    # 32x32 spatial (CIFAR-sized feature map).
    N, Cin, Cout, H, W = 8, 32, 16, 32, 32

    key = jax.random.PRNGKey(0)
    kx, kw, kg, kb, km, kv = jax.random.split(key, 6)

    x = jax.random.normal(kx, (N, Cin, H, W), dtype=jnp.float32)
    # conv1: Conv2d(in_planes, out_planes, kernel_size=1, bias=False)
    w_oihw = 0.1 * jax.random.normal(kw, (Cout, Cin, 1, 1), dtype=jnp.float32)
    # BatchNorm2d(in_planes) parameters / running stats (synthetic).
    gamma = 1.0 + 0.1 * jax.random.normal(kg, (Cin,), dtype=jnp.float32)
    beta = 0.1 * jax.random.normal(kb, (Cin,), dtype=jnp.float32)
    run_mean = 0.1 * jax.random.normal(km, (Cin,), dtype=jnp.float32)
    run_var = 1.0 + 0.1 * jax.random.uniform(kv, (Cin,), dtype=jnp.float32)

    ref = _reference_nchw(x, gamma, beta, run_mean, run_var, w_oihw)

    # Exact-parity (f32 operand) path.
    out = transition_block_nchw(x, gamma, beta, run_mean, run_var, w_oihw)
    out = jax.block_until_ready(out)
    assert out.shape == (N, Cout, H // 2, W // 2), out.shape
    max_err = float(jnp.max(jnp.abs(out - ref)))
    assert max_err < 1e-3, max_err

    # bf16-operand / bf16-streaming path (f32 accumulation), relaxed tolerance.
    out_bf16 = transition_block_nchw(x, gamma, beta, run_mean, run_var, w_oihw,
                                     use_bf16_matmul=True)
    out_bf16 = jax.block_until_ready(out_bf16)
    assert out_bf16.shape == (N, Cout, H // 2, W // 2), out_bf16.shape
    max_err_bf16 = float(jnp.max(jnp.abs(out_bf16 - ref)))
    assert max_err_bf16 < 6e-2, max_err_bf16

    print("KERNEL_OK")
</pallas_src>

<mosaic_0001>
module attributes {stable_mosaic.version = 11 : i64} {
  func.func @_transition_kernel(%arg0: i32, %arg1: memref<256x1024xf32, #tpu.memory_space<vmem>>, %arg2: memref<256x1xf32, #tpu.memory_space<vmem>>, %arg3: memref<256x1xf32, #tpu.memory_space<vmem>>, %arg4: memref<128x256xf32, #tpu.memory_space<vmem>>, %arg5: memref<1024x256xf32, #tpu.memory_space<vmem>>, %arg6: memref<128x256xf32, #tpu.memory_space<vmem>>) attributes {dimension_semantics = [#tpu.dimension_semantics<parallel>], iteration_bounds = array<i64: 1>, scalar_prefetch = 0 : i64, scratch_operands = 0 : i64, tpu.core_type = #tpu.core_type<tc>, window_params = [{transform_indices = @transform_0, window_bounds = array<i64: 256, 1024>}, {pipeline_mode = #tpu.pipeline_mode<synchronous>, transform_indices = @transform_1, window_bounds = array<i64: 256, 1>}, {pipeline_mode = #tpu.pipeline_mode<synchronous>, transform_indices = @transform_2, window_bounds = array<i64: 256, 1>}, {pipeline_mode = #tpu.pipeline_mode<synchronous>, transform_indices = @transform_3, window_bounds = array<i64: 128, 256>}, {pipeline_mode = #tpu.pipeline_mode<synchronous>, transform_indices = @transform_4, window_bounds = array<i64: 1024, 256>}, {transform_indices = @transform_5, window_bounds = array<i64: 128, 256>}]} {
    %c0 = arith.constant 0 : index
    %c0_0 = arith.constant 0 : index
    %0 = vector.load %arg1[%c0, %c0_0] : memref<256x1024xf32, #tpu.memory_space<vmem>>, vector<256x1024xf32>
    %c0_1 = arith.constant 0 : index
    %c0_2 = arith.constant 0 : index
    %1 = vector.load %arg2[%c0_1, %c0_2] : memref<256x1xf32, #tpu.memory_space<vmem>>, vector<256x1xf32>
    %2 = vector.broadcast %1 : vector<256x1xf32> to vector<256x1024xf32>
    %3 = arith.mulf %0, %2 : vector<256x1024xf32>
    %c0_3 = arith.constant 0 : index
    %c0_4 = arith.constant 0 : index
    %4 = vector.load %arg3[%c0_3, %c0_4] : memref<256x1xf32, #tpu.memory_space<vmem>>, vector<256x1xf32>
    %5 = vector.broadcast %4 : vector<256x1xf32> to vector<256x1024xf32>
    %6 = arith.addf %3, %5 : vector<256x1024xf32>
    %cst = arith.constant 0.000000e+00 : f32
    %7 = vector.broadcast %cst : f32 to vector<256x1024xf32>
    %8 = arith.maximumf %6, %7 : vector<256x1024xf32>
    %c0_5 = arith.constant 0 : index
    %c0_6 = arith.constant 0 : index
    %9 = vector.load %arg4[%c0_5, %c0_6] : memref<128x256xf32, #tpu.memory_space<vmem>>, vector<128x256xf32>
    %cst_7 = arith.constant dense<0.000000e+00> : vector<128x1024xf32>
    %10 = tpu.matmul %9, %8, %cst_7 {dimension_numbers = #tpu.dot_dimension_numbers<[1], [0], [0], [1], [0, 0, 1, 1], [], []>} : vector<128x256xf32>, vector<256x1024xf32>, vector<128x1024xf32> -> vector<128x1024xf32>
    %c0_8 = arith.constant 0 : index
    %c0_9 = arith.constant 0 : index
    %11 = vector.load %arg5[%c0_8, %c0_9] : memref<1024x256xf32, #tpu.memory_space<vmem>>, vector<1024x256xf32>
    %cst_10 = arith.constant dense<0.000000e+00> : vector<128x256xf32>
    %12 = tpu.matmul %10, %11, %cst_10 {dimension_numbers = #tpu.dot_dimension_numbers<[1], [0], [0], [1], [0, 0, 1, 1], [], []>} : vector<128x1024xf32>, vector<1024x256xf32>, vector<128x256xf32> -> vector<128x256xf32>
    %c0_11 = arith.constant 0 : index
    %c0_12 = arith.constant 0 : index
    %13 = vector.load %arg6[%c0_11, %c0_12] : memref<128x256xf32, #tpu.memory_space<vmem>>, vector<128x256xf32>
    tpu.vector_store %arg6[%c0_11, %c0_12], %12 {strides = array<i32>} : memref<128x256xf32, #tpu.memory_space<vmem>>, vector<128x256xf32>,
    return
  }
  func.func @transform_0(%arg0: i32) -> (i32, i32) {
    %c0_i32 = arith.constant 0 : i32
    %c0_i32_0 = arith.constant 0 : i32
    return %arg0, %c0_i32 : i32, i32
  }
  func.func @transform_1(%arg0: i32) -> (i32, i32) {
    %c0_i32 = arith.constant 0 : i32
    %c0_i32_0 = arith.constant 0 : i32
    %c0_i32_1 = arith.constant 0 : i32
    return %c0_i32, %c0_i32_0 : i32, i32
  }
  func.func @transform_2(%arg0: i32) -> (i32, i32) {
    %c0_i32 = arith.constant 0 : i32
    %c0_i32_0 = arith.constant 0 : i32
    %c0_i32_1 = arith.constant 0 : i32
    return %c0_i32, %c0_i32_0 : i32, i32
  }
  func.func @transform_3(%arg0: i32) -> (i32, i32) {
    %c0_i32 = arith.constant 0 : i32
    %c0_i32_0 = arith.constant 0 : i32
    %c0_i32_1 = arith.constant 0 : i32
    return %c0_i32, %c0_i32_0 : i32, i32
  }
  func.func @transform_4(%arg0: i32) -> (i32, i32) {
    %c0_i32 = arith.constant 0 : i32
    %c0_i32_0 = arith.constant 0 : i32
    %c0_i32_1 = arith.constant 0 : i32
    return %c0_i32, %c0_i32_0 : i32, i32
  }
  func.func @transform_5(%arg0: i32) -> (i32, i32) {
    %c0_i32 = arith.constant 0 : i32
    %c0_i32_0 = arith.constant 0 : i32
    return %arg0, %c0_i32 : i32, i32
  }
}

</mosaic_0001>

<llo_original>
// kernel: tpu_custom_call.1
$region0: #{tpu_custom_call.1}
  #allocation0 [shape = 'u32[]', space=smem, size = 0x4, offset = 0x4, fixed_abs, tag = 'smem constant byte address 0x4 - core index']
  #allocation1 [shape = 'u32[144,128]{1,0:T(1,128)}', space=vmem, size = 0x12000, scoped, tag = 'internal scratch']
  %s0 = inlined_call_operand.hbm [shape: f32[256,1024], index: 0, kind: input, shape index: {}]
  %s1 = inlined_call_operand.vmem [shape: f32[256,1], index: 1, kind: input, shape index: {}]
  %s2 = inlined_call_operand.vmem [shape: f32[256,1], index: 2, kind: input, shape index: {}]
  %s3 = inlined_call_operand.vmem [shape: f32[128,256], index: 3, kind: input, shape index: {}]
  %s4 = inlined_call_operand.hbm [shape: f32[1024,256], index: 4, kind: input, shape index: {}]
  %s5 = inlined_call_operand.hbm [shape: f32[128,256], index: 5, kind: output, shape index: {}]
  %s6 = sld [smem:[#allocation0]]
  $region38: #{tpu_custom_call.1} parent=0
    _
  %s8 = ssub.s32 1, %s6
  %s9 = scalar_select 0, %s8, %s6
  $region1: #{tpu_custom_call.1} parent=0
    #allocation2 [shape = 'u8[1048576]{0}', space=vmem, size = 0x100000, scoped, tag = 'input window, operand 0, single buffered']
    #allocation3 [shape = 's32[1]{0}', space=sflag, size = 0x4, scoped, tag = 'scoped memory for tpu_custom_call.1']
    #allocation4 [shape = 's32[1]{0}', space=sflag, size = 0x4, scoped, tag = 'scoped memory for tpu_custom_call.1']
    #allocation5 [shape = 'u8[1048576]{0}', space=vmem, size = 0x100000, scoped, tag = 'input window, operand 4, single buffered']
    #allocation6 [shape = 's32[1]{0}', space=sflag, size = 0x4, scoped, tag = 'scoped memory for tpu_custom_call.1']
    #allocation7 [shape = 'u8[131072]{0}', space=vmem, size = 0x20000, scoped, tag = 'output window, operand 0, single buffered']
    %10 = vsyncpa [#allocation3], 0
    %11 = vsyncpa [#allocation6], 0
    %12 = vsyncpa [#allocation4], 0
    // Predicated region
    $region2: #{tpu_custom_call.1} parent=1 // pred_check
      _
    $region3: #{tpu_custom_call.1} parent=1 // pred_check_branch
      %14 = sbr.rel (0) target = $region5
    $region4: #{tpu_custom_call.1} parent=1 // pred_region
      %s16 = ssub.s32 32768, 32768
      %17 = vsyncadd [#allocation3], %s16
      %s18 = sshll.u32 [#allocation2], 4
      %s19 = int_to_ptr.vmem [resolvable:$true] %s18
      %24 = dma.hbm_to_vmem [thread:$0]  %s0, 32768, %s19, [#allocation3], 1024, 1024, 64
    $region5: #{tpu_custom_call.1} parent=1 // pred_fallthru
      _
    // Predicated region
    $region6: #{tpu_custom_call.1} parent=1 // pred_check
      _
    $region7: #{tpu_custom_call.1} parent=1 // pred_check_branch
      %26 = sbr.rel (0) target = $region9
    $region8: #{tpu_custom_call.1} parent=1 // pred_region
      _
    $region9: #{tpu_custom_call.1} parent=1 // pred_fallthru
      _
    // Predicated region
    $region10: #{tpu_custom_call.1} parent=1 // pred_check
      _
    $region11: #{tpu_custom_call.1} parent=1 // pred_check_branch
      %28 = sbr.rel (0) target = $region13
    $region12: #{tpu_custom_call.1} parent=1 // pred_region
      _
    $region13: #{tpu_custom_call.1} parent=1 // pred_fallthru
      _
    // Predicated region
    $region14: #{tpu_custom_call.1} parent=1 // pred_check
      _
    $region15: #{tpu_custom_call.1} parent=1 // pred_check_branch
      %30 = sbr.rel (0) target = $region17
    $region16: #{tpu_custom_call.1} parent=1 // pred_region
      _
    $region17: #{tpu_custom_call.1} parent=1 // pred_fallthru
      _
    // Predicated region
    $region18: #{tpu_custom_call.1} parent=1 // pred_check
      _
    $region19: #{tpu_custom_call.1} parent=1 // pred_check_branch
      %32 = sbr.rel (0) target = $region21
    $region20: #{tpu_custom_call.1} parent=1 // pred_region
      %s34 = ssub.s32 32768, 32768
      %35 = vsyncadd [#allocation6], %s34
      %s36 = sshll.u32 [#allocation5], 4
      %s37 = int_to_ptr.vmem [resolvable:$true] %s36
      %42 = dma.hbm_to_vmem [thread:$0]  %s4, 32768, %s37, [#allocation6], 256, 256, 16
    $region21: #{tpu_custom_call.1} parent=1 // pred_fallthru
      _
    // Predicated region
    $region22: #{tpu_custom_call.1} parent=1 // pred_check
      _
    $region23: #{tpu_custom_call.1} parent=1 // pred_check_branch
      %44 = sbr.rel (0) target = $region25
    $region24: #{tpu_custom_call.1} parent=1 // pred_region
      %45 = dma.done [#allocation3], 32768
    $region25: #{tpu_custom_call.1} parent=1 // pred_fallthru
      _
    // Predicated region
    $region26: #{tpu_custom_call.1} parent=1 // pred_check
      _
    $region27: #{tpu_custom_call.1} parent=1 // pred_check_branch
      %47 = sbr.rel (0) target = $region29
    $region28: #{tpu_custom_call.1} parent=1 // pred_region
      %48 = dma.done [#allocation6], 32768
    $region29: #{tpu_custom_call.1} parent=1 // pred_fallthru
      _
    %v49 = vld [vmem:[#allocation2] sm:$0xff]
    %v50 = vld [vmem:[#allocation2 + $0x8] sm:$0xff]
    %v51 = vld [vmem:[#allocation2 + $0x10] sm:$0xff]
    %v52 = vld [vmem:[#allocation2 + $0x18] sm:$0xff]
    %v53 = vld [vmem:[#allocation2 + $0x20] sm:$0xff]
    %v54 = vld [vmem:[#allocation2 + $0x28] sm:$0xff]
    %v55 = vld [vmem:[#allocation2 + $0x30] sm:$0xff]
    %v56 = vld [vmem:[#allocation2 + $0x38] sm:$0xff]
    %v57 = vld [vmem:[#allocation2 + $0x40] sm:$0xff]
    %v58 = vld [vmem:[#allocation2 + $0x48] sm:$0xff]
    %v59 = vld [vmem:[#allocation2 + $0x50] sm:$0xff]
    %v60 = vld [vmem:[#allocation2 + $0x58] sm:$0xff]
    %v61 = vld [vmem:[#allocation2 + $0x60] sm:$0xff]
    %v62 = vld [vmem:[#allocation2 + $0x68] sm:$0xff]
    %v63 = vld [vmem:[#allocation2 + $0x70] sm:$0xff]
    %v64 = vld [vmem:[#allocation2 + $0x78] sm:$0xff]
    %v65 = vld [vmem:[#allocation2 + $0x80] sm:$0xff]
    %v66 = vld [vmem:[#allocation2 + $0x88] sm:$0xff]
    %v67 = vld [vmem:[#allocation2 + $0x90] sm:$0xff]
    %v68 = vld [vmem:[#allocation2 + $0x98] sm:$0xff]
    %v69 = vld [vmem:[#allocation2 + $0xa0] sm:$0xff]
    %v70 = vld [vmem:[#allocation2 + $0xa8] sm:$0xff]
    %v71 = vld [vmem:[#allocation2 + $0xb0] sm:$0xff]
    %v72 = vld [vmem:[#allocation2 + $0xb8] sm:$0xff]
    %v73 = vld [vmem:[#allocation2 + $0xc0] sm:$0xff]
    %v74 = vld [vmem:[#allocation2 + $0xc8] sm:$0xff]
    %v75 = vld [vmem:[#allocation2 + $0xd0] sm:$0xff]
    %v76 = vld [vmem:[#allocation2 + $0xd8] sm:$0xff]
    %v77 = vld [vmem:[#allocation2 + $0xe0] sm:$0xff]
    %v78 = vld [vmem:[#allocation2 + $0xe8] sm:$0xff]
    %v79 = vld [vmem:[#allocation2 + $0xf0] sm:$0xff]
    %v80 = vld [vmem:[#allocation2 + $0xf8] sm:$0xff]
    %v81 = vld [vmem:[#allocation2 + $0x100] sm:$0xff]
    %v82 = vld [vmem:[#allocation2 + $0x108] sm:$0xff]
    %v83 = vld [vmem:[#allocation2 + $0x110] sm:$0xff]
    %v84 = vld [vmem:[#allocation2 + $0x118] sm:$0xff]
    %v85 = vld [vmem:[#allocation2 + $0x120] sm:$0xff]
    %v86 = vld [vmem:[#allocation2 + $0x128] sm:$0xff]
    %v87 = vld [vmem:[#allocation2 + $0x130] sm:$0xff]
    %v88 = vld [vmem:[#allocation2 + $0x138] sm:$0xff]
    %v89 = vld [vmem:[#allocation2 + $0x140] sm:$0xff]
    %v90 = vld [vmem:[#allocation2 + $0x148] sm:$0xff]
    %v91 = vld [vmem:[#allocation2 + $0x150] sm:$0xff]
    %v92 = vld [vmem:[#allocation2 + $0x158] sm:$0xff]
    %v93 = vld [vmem:[#allocation2 + $0x160] sm:$0xff]
    %v94 = vld [vmem:[#allocation2 + $0x168] sm:$0xff]
    %v95 = vld [vmem:[#allocation2 + $0x170] sm:$0xff]
    %v96 = vld [vmem:[#allocation2 + $0x178] sm:$0xff]
    %v97 = vld [vmem:[#allocation2 + $0x180] sm:$0xff]
    %v98 = vld [vmem:[#allocation2 + $0x188] sm:$0xff]
    %v99 = vld [vmem:[#allocation2 + $0x190] sm:$0xff]
    %v100 = vld [vmem:[#allocation2 + $0x198] sm:$0xff]
    %v101 = vld [vmem:[#allocation2 + $0x1a0] sm:$0xff]
    %v102 = vld [vmem:[#allocation2 + $0x1a8] sm:$0xff]
    %v103 = vld [vmem:[#allocation2 + $0x1b0] sm:$0xff]
    %v104 = vld [vmem:[#allocation2 + $0x1b8] sm:$0xff]
    %v105 = vld [vmem:[#allocation2 + $0x1c0] sm:$0xff]
    %v106 = vld [vmem:[#allocation2 + $0x1c8] sm:$0xff]
    %v107 = vld [vmem:[#allocation2 + $0x1d0] sm:$0xff]
    %v108 = vld [vmem:[#allocation2 + $0x1d8] sm:$0xff]
    %v109 = vld [vmem:[#allocation2 + $0x1e0] sm:$0xff]
    %v110 = vld [vmem:[#allocation2 + $0x1e8] sm:$0xff]
    %v111 = vld [vmem:[#allocation2 + $0x1f0] sm:$0xff]
    %v112 = vld [vmem:[#allocation2 + $0x1f8] sm:$0xff]
    %v113 = vld [vmem:[#allocation2 + $0x200] sm:$0xff]
    %v114 = vld [vmem:[#allocation2 + $0x208] sm:$0xff]
    %v115 = vld [vmem:[#allocation2 + $0x210] sm:$0xff]
    %v116 = vld [vmem:[#allocation2 + $0x218] sm:$0xff]
    %v117 = vld [vmem:[#allocation2 + $0x220] sm:$0xff]
    %v118 = vld [vmem:[#allocation2 + $0x228] sm:$0xff]
    %v119 = vld [vmem:[#allocation2 + $0x230] sm:$0xff]
    %v120 = vld [vmem:[#allocation2 + $0x238] sm:$0xff]
    %v121 = vld [vmem:[#allocation2 + $0x240] sm:$0xff]
    %v122 = vld [vmem:[#allocation2 + $0x248] sm:$0xff]
    %v123 = vld [vmem:[#allocation2 + $0x250] sm:$0xff]
    %v124 = vld [vmem:[#allocation2 + $0x258] sm:$0xff]
    %v125 = vld [vmem:[#allocation2 + $0x260] sm:$0xff]
    %v126 = vld [vmem:[#allocation2 + $0x268] sm:$0xff]
    %v127 = vld [vmem:[#allocation2 + $0x270] sm:$0xff]
    %v128 = vld [vmem:[#allocation2 + $0x278] sm:$0xff]
    %v129 = vld [vmem:[#allocation2 + $0x280] sm:$0xff]
    %v130 = vld [vmem:[#allocation2 + $0x288] sm:$0xff]
    %v131 = vld [vmem:[#allocation2 + $0x290] sm:$0xff]
    %v132 = vld [vmem:[#allocation2 + $0x298] sm:$0xff]
    %v133 = vld [vmem:[#allocation2 + $0x2a0] sm:$0xff]
    %v134 = vld [vmem:[#allocation2 + $0x2a8] sm:$0xff]
    %v135 = vld [vmem:[#allocation2 + $0x2b0] sm:$0xff]
    %v136 = vld [vmem:[#allocation2 + $0x2b8] sm:$0xff]
    %v137 = vld [vmem:[#allocation2 + $0x2c0] sm:$0xff]
    %v138 = vld [vmem:[#allocation2 + $0x2c8] sm:$0xff]
    %v139 = vld [vmem:[#allocation2 + $0x2d0] sm:$0xff]
    %v140 = vld [vmem:[#allocation2 + $0x2d8] sm:$0xff]
    %v141 = vld [vmem:[#allocation2 + $0x2e0] sm:$0xff]
    %v142 = vld [vmem:[#allocation2 + $0x2e8] sm:$0xff]
    %v143 = vld [vmem:[#allocation2 + $0x2f0] sm:$0xff]
    %v144 = vld [vmem:[#allocation2 + $0x2f8] sm:$0xff]
    %v145 = vld [vmem:[#allocation2 + $0x300] sm:$0xff]
    %v146 = vld [vmem:[#allocation2 + $0x308] sm:$0xff]
    %v147 = vld [vmem:[#allocation2 + $0x310] sm:$0xff]
    %v148 = vld [vmem:[#allocation2 + $0x318] sm:$0xff]
    %v149 = vld [vmem:[#allocation2 + $0x320] sm:$0xff]
    %v150 = vld [vmem:[#allocation2 + $0x328] sm:$0xff]
    %v151 = vld [vmem:[#allocation2 + $0x330] sm:$0xff]
    %v152 = vld [vmem:[#allocation2 + $0x338] sm:$0xff]
    %v153 = vld [vmem:[#allocation2 + $0x340] sm:$0xff]
    %v154 = vld [vmem:[#allocation2 + $0x348] sm:$0xff]
    %v155 = vld [vmem:[#allocation2 + $0x350] sm:$0xff]
    %v156 = vld [vmem:[#allocation2 + $0x358] sm:$0xff]
    %v157 = vld [vmem:[#allocation2 + $0x360] sm:$0xff]
    %v158 = vld [vmem:[#allocation2 + $0x368] sm:$0xff]
    %v159 = vld [vmem:[#allocation2 + $0x370] sm:$0xff]
    %v160 = vld [vmem:[#allocation2 + $0x378] sm:$0xff]
    %v161 = vld [vmem:[#allocation2 + $0x380] sm:$0xff]
    %v162 = vld [vmem:[#allocation2 + $0x388] sm:$0xff]
    %v163 = vld [vmem:[#allocation2 + $0x390] sm:$0xff]
    %v164 = vld [vmem:[#allocation2 + $0x398] sm:$0xff]
    %v165 = vld [vmem:[#allocation2 + $0x3a0] sm:$0xff]
    %v166 = vld [vmem:[#allocation2 + $0x3a8] sm:$0xff]
    %v167 = vld [vmem:[#allocation2 + $0x3b0] sm:$0xff]
    %v168 = vld [vmem:[#allocation2 + $0x3b8] sm:$0xff]
    %v169 = vld [vmem:[#allocation2 + $0x3c0] sm:$0xff]
    %v170 = vld [vmem:[#allocation2 + $0x3c8] sm:$0xff]
    %v171 = vld [vmem:[#allocation2 + $0x3d0] sm:$0xff]
    %v172 = vld [vmem:[#allocation2 + $0x3d8] sm:$0xff]
    %v173 = vld [vmem:[#allocation2 + $0x3e0] sm:$0xff]
    %v174 = vld [vmem:[#allocation2 + $0x3e8] sm:$0xff]
    %v175 = vld [vmem:[#allocation2 + $0x3f0] sm:$0xff]
    %v176 = vld [vmem:[#allocation2 + $0x3f8] sm:$0xff]
    %v177 = vld [vmem:[#allocation2 + $0x400] sm:$0xff]
    %v178 = vld [vmem:[#allocation2 + $0x408] sm:$0xff]
    %v179 = vld [vmem:[#allocation2 + $0x410] sm:$0xff]
    %v180 = vld [vmem:[#allocation2 + $0x418] sm:$0xff]
    %v181 = vld [vmem:[#allocation2 + $0x420] sm:$0xff]
    %v182 = vld [vmem:[#allocation2 + $0x428] sm:$0xff]
    %v183 = vld [vmem:[#allocation2 + $0x430] sm:$0xff]
    %v184 = vld [vmem:[#allocation2 + $0x438] sm:$0xff]
    %v185 = vld [vmem:[#allocation2 + $0x440] sm:$0xff]
    %v186 = vld [vmem:[#allocation2 + $0x448] sm:$0xff]
    %v187 = vld [vmem:[#allocation2 + $0x450] sm:$0xff]
    %v188 = vld [vmem:[#allocation2 + $0x458] sm:$0xff]
    %v189 = vld [vmem:[#allocation2 + $0x460] sm:$0xff]
    %v190 = vld [vmem:[#allocation2 + $0x468] sm:$0xff]
    %v191 = vld [vmem:[#allocation2 + $0x470] sm:$0xff]
    %v192 = vld [vmem:[#allocation2 + $0x478] sm:$0xff]
    %v193 = vld [vmem:[#allocation2 + $0x480] sm:$0xff]
    %v194 = vld [vmem:[#allocation2 + $0x488] sm:$0xff]
    %v195 = vld [vmem:[#allocation2 + $0x490] sm:$0xff]
    %v196 = vld [vmem:[#allocation2 + $0x498] sm:$0xff]
    %v197 = vld [vmem:[#allocation2 + $0x4a0] sm:$0xff]
    %v198 = vld [vmem:[#allocation2 + $0x4a8] sm:$0xff]
    %v199 = vld [vmem:[#allocation2 + $0x4b0] sm:$0xff]
    %v200 = vld [vmem:[#allocation2 + $0x4b8] sm:$0xff]
    %v201 = vld [vmem:[#allocation2 + $0x4c0] sm:$0xff]
    %v202 = vld [vmem:[#allocation2 + $0x4c8] sm:$0xff]
    %v203 = vld [vmem:[#allocation2 + $0x4d0] sm:$0xff]
    %v204 = vld [vmem:[#allocation2 + $0x4d8] sm:$0xff]
    %v205 = vld [vmem:[#allocation2 + $0x4e0] sm:$0xff]
    %v206 = vld [vmem:[#allocation2 + $0x4e8] sm:$0xff]
    %v207 = vld [vmem:[#allocation2 + $0x4f0] sm:$0xff]
    %v208 = vld [vmem:[#allocation2 + $0x4f8] sm:$0xff]
    %v209 = vld [vmem:[#allocation2 + $0x500] sm:$0xff]
    %v210 = vld [vmem:[#allocation2 + $0x508] sm:$0xff]
    %v211 = vld [vmem:[#allocation2 + $0x510] sm:$0xff]
    %v212 = vld [vmem:[#allocation2 + $0x518] sm:$0xff]
    %v213 = vld [vmem:[#allocation2 + $0x520] sm:$0xff]
    %v214 = vld [vmem:[#allocation2 + $0x528] sm:$0xff]
    %v215 = vld [vmem:[#allocation2 + $0x530] sm:$0xff]
    %v216 = vld [vmem:[#allocation2 + $0x538] sm:$0xff]
    %v217 = vld [vmem:[#allocation2 + $0x540] sm:$0xff]
    %v218 = vld [vmem:[#allocation2 + $0x548] sm:$0xff]
    %v219 = vld [vmem:[#allocation2 + $0x550] sm:$0xff]
    %v220 = vld [vmem:[#allocation2 + $0x558] sm:$0xff]
    %v221 = vld [vmem:[#allocation2 + $0x560] sm:$0xff]
    %v222 = vld [vmem:[#allocation2 + $0x568] sm:$0xff]
    %v223 = vld [vmem:[#allocation2 + $0x570] sm:$0xff]
    %v224 = vld [vmem:[#allocation2 + $0x578] sm:$0xff]
    %v225 = vld [vmem:[#allocation2 + $0x580] sm:$0xff]
    %v226 = vld [vmem:[#allocation2 + $0x588] sm:$0xff]
    %v227 = vld [vmem:[#allocation2 + $0x590] sm:$0xff]
    %v228 = vld [vmem:[#allocation2 + $0x598] sm:$0xff]
    %v229 = vld [vmem:[#allocation2 + $0x5a0] sm:$0xff]
    %v230 = vld [vmem:[#allocation2 + $0x5a8] sm:$0xff]
    %v231 = vld [vmem:[#allocation2 + $0x5b0] sm:$0xff]
    %v232 = vld [vmem:[#allocation2 + $0x5b8] sm:$0xff]
    %v233 = vld [vmem:[#allocation2 + $0x5c0] sm:$0xff]
    %v234 = vld [vmem:[#allocation2 + $0x5c8] sm:$0xff]
    %v235 = vld [vmem:[#allocation2 + $0x5d0] sm:$0xff]
    %v236 = vld [vmem:[#allocation2 + $0x5d8] sm:$0xff]
    %v237 = vld [vmem:[#allocation2 + $0x5e0] sm:$0xff]
    %v238 = vld [vmem:[#allocation2 + $0x5e8] sm:$0xff]
    %v239 = vld [vmem:[#allocation2 + $0x5f0] sm:$0xff]
    %v240 = vld [vmem:[#allocation2 + $0x5f8] sm:$0xff]
    %v241 = vld [vmem:[#allocation2 + $0x600] sm:$0xff]
    %v242 = vld [vmem:[#allocation2 + $0x608] sm:$0xff]
    %v243 = vld [vmem:[#allocation2 + $0x610] sm:$0xff]
    %v244 = vld [vmem:[#allocation2 + $0x618] sm:$0xff]
    %v245 = vld [vmem:[#allocation2 + $0x620] sm:$0xff]
    %v246 = vld [vmem:[#allocation2 + $0x628] sm:$0xff]
    %v247 = vld [vmem:[#allocation2 + $0x630] sm:$0xff]
    %v248 = vld [vmem:[#allocation2 + $0x638] sm:$0xff]
    %v249 = vld [vmem:[#allocation2 + $0x640] sm:$0xff]
    %v250 = vld [vmem:[#allocation2 + $0x648] sm:$0xff]
    %v251 = vld [vmem:[#allocation2 + $0x650] sm:$0xff]
    %v252 = vld [vmem:[#allocation2 + $0x658] sm:$0xff]
    %v253 = vld [vmem:[#allocation2 + $0x660] sm:$0xff]
    %v254 = vld [vmem:[#allocation2 + $0x668] sm:$0xff]
    %v255 = vld [vmem:[#allocation2 + $0x670] sm:$0xff]
    %v256 = vld [vmem:[#allocation2 + $0x678] sm:$0xff]
    %v257 = vld [vmem:[#allocation2 + $0x680] sm:$0xff]
    %v258 = vld [vmem:[#allocation2 + $0x688] sm:$0xff]
    %v259 = vld [vmem:[#allocation2 + $0x690] sm:$0xff]
    %v260 = vld [vmem:[#allocation2 + $0x698] sm:$0xff]
    %v261 = vld [vmem:[#allocation2 + $0x6a0] sm:$0xff]
    %v262 = vld [vmem:[#allocation2 + $0x6a8] sm:$0xff]
    %v263 = vld [vmem:[#allocation2 + $0x6b0] sm:$0xff]
    %v264 = vld [vmem:[#allocation2 + $0x6b8] sm:$0xff]
    %v265 = vld [vmem:[#allocation2 + $0x6c0] sm:$0xff]
    %v266 = vld [vmem:[#allocation2 + $0x6c8] sm:$0xff]
    %v267 = vld [vmem:[#allocation2 + $0x6d0] sm:$0xff]
    %v268 = vld [vmem:[#allocation2 + $0x6d8] sm:$0xff]
    %v269 = vld [vmem:[#allocation2 + $0x6e0] sm:$0xff]
    %v270 = vld [vmem:[#allocation2 + $0x6e8] sm:$0xff]
    %v271 = vld [vmem:[#allocation2 + $0x6f0] sm:$0xff]
    %v272 = vld [vmem:[#allocation2 + $0x6f8] sm:$0xff]
    %v273 = vld [vmem:[#allocation2 + $0x700] sm:$0xff]
    %v274 = vld [vmem:[#allocation2 + $0x708] sm:$0xff]
    %v275 = vld [vmem:[#allocation2 + $0x710] sm:$0xff]
    %v276 = vld [vmem:[#allocation2 + $0x718] sm:$0xff]
    %v277 = vld [vmem:[#allocation2 + $0x720] sm:$0xff]
    %v278 = vld [vmem:[#allocation2 + $0x728] sm:$0xff]
    %v279 = vld [vmem:[#allocation2 + $0x730] sm:$0xff]
    %v280 = vld [vmem:[#allocation2 + $0x738] sm:$0xff]
    %v281 = vld [vmem:[#allocation2 + $0x740] sm:$0xff]
    %v282 = vld [vmem:[#allocation2 + $0x748] sm:$0xff]
    %v283 = vld [vmem:[#allocation2 + $0x750] sm:$0xff]
    %v284 = vld [vmem:[#allocation2 + $0x758] sm:$0xff]
    %v285 = vld [vmem:[#allocation2 + $0x760] sm:$0xff]
    %v286 = vld [vmem:[#allocation2 + $0x768] sm:$0xff]
    %v287 = vld [vmem:[#allocation2 + $0x770] sm:$0xff]
    %v288 = vld [vmem:[#allocation2 + $0x778] sm:$0xff]
    %v289 = vld [vmem:[#allocation2 + $0x780] sm:$0xff]
    %v290 = vld [vmem:[#allocation2 + $0x788] sm:$0xff]
    %v291 = vld [vmem:[#allocation2 + $0x790] sm:$0xff]
    %v292 = vld [vmem:[#allocation2 + $0x798] sm:$0xff]
    %v293 = vld [vmem:[#allocation2 + $0x7a0] sm:$0xff]
    %v294 = vld [vmem:[#allocation2 + $0x7a8] sm:$0xff]
    %v295 = vld [vmem:[#allocation2 + $0x7b0] sm:$0xff]
    %v296 = vld [vmem:[#allocation2 + $0x7b8] sm:$0xff]
    %v297 = vld [vmem:[#allocation2 + $0x7c0] sm:$0xff]
    %v298 = vld [vmem:[#allocation2 + $0x7c8] sm:$0xff]
    %v299 = vld [vmem:[#allocation2 + $0x7d0] sm:$0xff]
    %v300 = vld [vmem:[#allocation2 + $0x7d8] sm:$0xff]
    %v301 = vld [vmem:[#allocation2 + $0x7e0] sm:$0xff]
    %v302 = vld [vmem:[#allocation2 + $0x7e8] sm:$0xff]
    %v303 = vld [vmem:[#allocation2 + $0x7f0] sm:$0xff]
    %v304 = vld [vmem:[#allocation2 + $0x7f8] sm:$0xff]
    %v305 = vld [vmem:[%s1] sm:$0xff]
    %v306 = vld [vmem:[%s1 + $0x8] sm:$0xff]
    %v307 = vld [vmem:[%s1 + $0x10] sm:$0xff]
    %v308 = vld [vmem:[%s1 + $0x18] sm:$0xff]
    %v309 = vld [vmem:[%s1 + $0x20] sm:$0xff]
    %v310 = vld [vmem:[%s1 + $0x28] sm:$0xff]
    %v311 = vld [vmem:[%s1 + $0x30] sm:$0xff]
    %v312 = vld [vmem:[%s1 + $0x38] sm:$0xff]
    %v313 = vld [vmem:[%s1 + $0x40] sm:$0xff]
    %v314 = vld [vmem:[%s1 + $0x48] sm:$0xff]
    %v315 = vld [vmem:[%s1 + $0x50] sm:$0xff]
    %v316 = vld [vmem:[%s1 + $0x58] sm:$0xff]
    %v317 = vld [vmem:[%s1 + $0x60] sm:$0xff]
    %v318 = vld [vmem:[%s1 + $0x68] sm:$0xff]
    %v319 = vld [vmem:[%s1 + $0x70] sm:$0xff]
    %v320 = vld [vmem:[%s1 + $0x78] sm:$0xff]
    %v321 = vld [vmem:[%s1 + $0x80] sm:$0xff]
    %v322 = vld [vmem:[%s1 + $0x88] sm:$0xff]
    %v323 = vld [vmem:[%s1 + $0x90] sm:$0xff]
    %v324 = vld [vmem:[%s1 + $0x98] sm:$0xff]
    %v325 = vld [vmem:[%s1 + $0xa0] sm:$0xff]
    %v326 = vld [vmem:[%s1 + $0xa8] sm:$0xff]
    %v327 = vld [vmem:[%s1 + $0xb0] sm:$0xff]
    %v328 = vld [vmem:[%s1 + $0xb8] sm:$0xff]
    %v329 = vld [vmem:[%s1 + $0xc0] sm:$0xff]
    %v330 = vld [vmem:[%s1 + $0xc8] sm:$0xff]
    %v331 = vld [vmem:[%s1 + $0xd0] sm:$0xff]
    %v332 = vld [vmem:[%s1 + $0xd8] sm:$0xff]
    %v333 = vld [vmem:[%s1 + $0xe0] sm:$0xff]
    %v334 = vld [vmem:[%s1 + $0xe8] sm:$0xff]
    %v335 = vld [vmem:[%s1 + $0xf0] sm:$0xff]
    %v336 = vld [vmem:[%s1 + $0xf8] sm:$0xff]
    %338 = vset.pattern.permute.xlu0 0
    %339 = vperm.xlu0 %338, %v305
    %v340 = vpop.permute.xlu0 %339
    %343 = vset.pattern.permute.xlu0 0
    %344 = vperm.xlu0 %343, %v306
    %v345 = vpop.permute.xlu0 %344
    %348 = vset.pattern.permute.xlu0 0
    %349 = vperm.xlu0 %348, %v307
    %v350 = vpop.permute.xlu0 %349
    %353 = vset.pattern.permute.xlu0 0
    %354 = vperm.xlu0 %353, %v308
    %v355 = vpop.permute.xlu0 %354
    %358 = vset.pattern.permute.xlu0 0
    %359 = vperm.xlu0 %358, %v309
    %v360 = vpop.permute.xlu0 %359
    %363 = vset.pattern.permute.xlu0 0
    %364 = vperm.xlu0 %363, %v310
    %v365 = vpop.permute.xlu0 %364
    %368 = vset.pattern.permute.xlu0 0
    %369 = vperm.xlu0 %368, %v311
    %v370 = vpop.permute.xlu0 %369
    %373 = vset.pattern.permute.xlu0 0
    %374 = vperm.xlu0 %373, %v312
    %v375 = vpop.permute.xlu0 %374
    %378 = vset.pattern.permute.xlu0 0
    %379 = vperm.xlu0 %378, %v313
    %v380 = vpop.permute.xlu0 %379
    %383 = vset.pattern.permute.xlu0 0
    %384 = vperm.xlu0 %383, %v314
    %v385 = vpop.permute.xlu0 %384
    %388 = vset.pattern.permute.xlu0 0
    %389 = vperm.xlu0 %388, %v315
    %v390 = vpop.permute.xlu0 %389
    %393 = vset.pattern.permute.xlu0 0
    %394 = vperm.xlu0 %393, %v316
    %v395 = vpop.permute.xlu0 %394
    %398 = vset.pattern.permute.xlu0 0
    %399 = vperm.xlu0 %398, %v317
    %v400 = vpop.permute.xlu0 %399
    %403 = vset.pattern.permute.xlu0 0
    %404 = vperm.xlu0 %403, %v318
    %v405 = vpop.permute.xlu0 %404
    %408 = vset.pattern.permute.xlu0 0
    %409 = vperm.xlu0 %408, %v319
    %v410 = vpop.permute.xlu0 %409
    %413 = vset.pattern.permute.xlu0 0
    %414 = vperm.xlu0 %413, %v320
    %v415 = vpop.permute.xlu0 %414
    %418 = vset.pattern.permute.xlu0 0
    %419 = vperm.xlu0 %418, %v321
    %v420 = vpop.permute.xlu0 %419
    %423 = vset.pattern.permute.xlu0 0
    %424 = vperm.xlu0 %423, %v322
    %v425 = vpop.permute.xlu0 %424
    %428 = vset.pattern.permute.xlu0 0
    %429 = vperm.xlu0 %428, %v323
    %v430 = vpop.permute.xlu0 %429
    %433 = vset.pattern.permute.xlu0 0
    %434 = vperm.xlu0 %433, %v324
    %v435 = vpop.permute.xlu0 %434
    %438 = vset.pattern.permute.xlu0 0
    %439 = vperm.xlu0 %438, %v325
    %v440 = vpop.permute.xlu0 %439
    %443 = vset.pattern.permute.xlu0 0
    %444 = vperm.xlu0 %443, %v326
    %v445 = vpop.permute.xlu0 %444
    %448 = vset.pattern.permute.xlu0 0
    %449 = vperm.xlu0 %448, %v327
    %v450 = vpop.permute.xlu0 %449
    %453 = vset.pattern.permute.xlu0 0
    %454 = vperm.xlu0 %453, %v328
    %v455 = vpop.permute.xlu0 %454
    %458 = vset.pattern.permute.xlu0 0
    %459 = vperm.xlu0 %458, %v329
    %v460 = vpop.permute.xlu0 %459
    %463 = vset.pattern.permute.xlu0 0
    %464 = vperm.xlu0 %463, %v330
    %v465 = vpop.permute.xlu0 %464
    %468 = vset.pattern.permute.xlu0 0
    %469 = vperm.xlu0 %468, %v331
    %v470 = vpop.permute.xlu0 %469
    %473 = vset.pattern.permute.xlu0 0
    %474 = vperm.xlu0 %473, %v332
    %v475 = vpop.permute.xlu0 %474
    %478 = vset.pattern.permute.xlu0 0
    %479 = vperm.xlu0 %478, %v333
    %v480 = vpop.permute.xlu0 %479
    %483 = vset.pattern.permute.xlu0 0
    %484 = vperm.xlu0 %483, %v334
    %v485 = vpop.permute.xlu0 %484
    %488 = vset.pattern.permute.xlu0 0
    %489 = vperm.xlu0 %488, %v335
    %v490 = vpop.permute.xlu0 %489
    %493 = vset.pattern.permute.xlu0 0
    %494 = vperm.xlu0 %493, %v336
    %v495 = vpop.permute.xlu0 %494
    %v497 = vmul.f32 %v49, %v340
    %v498 = vmul.f32 %v50, %v340
    %v499 = vmul.f32 %v51, %v340
    %v500 = vmul.f32 %v52, %v340
    %v501 = vmul.f32 %v53, %v340
    %v502 = vmul.f32 %v54, %v340
    %v503 = vmul.f32 %v55, %v340
    %v504 = vmul.f32 %v56, %v340
    %v505 = vmul.f32 %v57, %v345
    %v506 = vmul.f32 %v58, %v345
    %v507 = vmul.f32 %v59, %v345
    %v508 = vmul.f32 %v60, %v345
    %v509 = vmul.f32 %v61, %v345
    %v510 = vmul.f32 %v62, %v345
    %v511 = vmul.f32 %v63, %v345
    %v512 = vmul.f32 %v64, %v345
    %v513 = vmul.f32 %v65, %v350
    %v514 = vmul.f32 %v66, %v350
    %v515 = vmul.f32 %v67, %v350
    %v516 = vmul.f32 %v68, %v350
    %v517 = vmul.f32 %v69, %v350
    %v518 = vmul.f32 %v70, %v350
    %v519 = vmul.f32 %v71, %v350
    %v520 = vmul.f32 %v72, %v350
    %v521 = vmul.f32 %v73, %v355
    %v522 = vmul.f32 %v74, %v355
    %v523 = vmul.f32 %v75, %v355
    %v524 = vmul.f32 %v76, %v355
    %v525 = vmul.f32 %v77, %v355
    %v526 = vmul.f32 %v78, %v355
    %v527 = vmul.f32 %v79, %v355
    %v528 = vmul.f32 %v80, %v355
    %v529 = vmul.f32 %v81, %v360
    %v530 = vmul.f32 %v82, %v360
    %v531 = vmul.f32 %v83, %v360
    %v532 = vmul.f32 %v84, %v360
    %v533 = vmul.f32 %v85, %v360
    %v534 = vmul.f32 %v86, %v360
    %v535 = vmul.f32 %v87, %v360
    %v536 = vmul.f32 %v88, %v360
    %v537 = vmul.f32 %v89, %v365
    %v538 = vmul.f32 %v90, %v365
    %v539 = vmul.f32 %v91, %v365
    %v540 = vmul.f32 %v92, %v365
    %v541 = vmul.f32 %v93, %v365
    %v542 = vmul.f32 %v94, %v365
    %v543 = vmul.f32 %v95, %v365
    %v544 = vmul.f32 %v96, %v365
    %v545 = vmul.f32 %v97, %v370
    %v546 = vmul.f32 %v98, %v370
    %v547 = vmul.f32 %v99, %v370
    %v548 = vmul.f32 %v100, %v370
    %v549 = vmul.f32 %v101, %v370
    %v550 = vmul.f32 %v102, %v370
    %v551 = vmul.f32 %v103, %v370
    %v552 = vmul.f32 %v104, %v370
    %v553 = vmul.f32 %v105, %v375
    %v554 = vmul.f32 %v106, %v375
    %v555 = vmul.f32 %v107, %v375
    %v556 = vmul.f32 %v108, %v375
    %v557 = vmul.f32 %v109, %v375
    %v558 = vmul.f32 %v110, %v375
    %v559 = vmul.f32 %v111, %v375
    %v560 = vmul.f32 %v112, %v375
    %v561 = vmul.f32 %v113, %v380
    %v562 = vmul.f32 %v114, %v380
    %v563 = vmul.f32 %v115, %v380
    %v564 = vmul.f32 %v116, %v380
    %v565 = vmul.f32 %v117, %v380
    %v566 = vmul.f32 %v118, %v380
    %v567 = vmul.f32 %v119, %v380
    %v568 = vmul.f32 %v120, %v380
    %v569 = vmul.f32 %v121, %v385
    %v570 = vmul.f32 %v122, %v385
    %v571 = vmul.f32 %v123, %v385
    %v572 = vmul.f32 %v124, %v385
    %v573 = vmul.f32 %v125, %v385
    %v574 = vmul.f32 %v126, %v385
    %v575 = vmul.f32 %v127, %v385
    %v576 = vmul.f32 %v128, %v385
    %v577 = vmul.f32 %v129, %v390
    %v578 = vmul.f32 %v130, %v390
    %v579 = vmul.f32 %v131, %v390
    %v580 = vmul.f32 %v132, %v390
    %v581 = vmul.f32 %v133, %v390
    %v582 = vmul.f32 %v134, %v390
    %v583 = vmul.f32 %v135, %v390
    %v584 = vmul.f32 %v136, %v390
    %v585 = vmul.f32 %v137, %v395
    %v586 = vmul.f32 %v138, %v395
    %v587 = vmul.f32 %v139, %v395
    %v588 = vmul.f32 %v140, %v395
    %v589 = vmul.f32 %v141, %v395
    %v590 = vmul.f32 %v142, %v395
    %v591 = vmul.f32 %v143, %v395
    %v592 = vmul.f32 %v144, %v395
    %v593 = vmul.f32 %v145, %v400
    %v594 = vmul.f32 %v146, %v400
    %v595 = vmul.f32 %v147, %v400
    %v596 = vmul.f32 %v148, %v400
    %v597 = vmul.f32 %v149, %v400
    %v598 = vmul.f32 %v150, %v400
    %v599 = vmul.f32 %v151, %v400
    %v600 = vmul.f32 %v152, %v400
    %v601 = vmul.f32 %v153, %v405
    %v602 = vmul.f32 %v154, %v405
    %v603 = vmul.f32 %v155, %v405
    %v604 = vmul.f32 %v156, %v405
    %v605 = vmul.f32 %v157, %v405
    %v606 = vmul.f32 %v158, %v405
    %v607 = vmul.f32 %v159, %v405
    %v608 = vmul.f32 %v160, %v405
    %v609 = vmul.f32 %v161, %v410
    %v610 = vmul.f32 %v162, %v410
    %v611 = vmul.f32 %v163, %v410
    %v612 = vmul.f32 %v164, %v410
    %v613 = vmul.f32 %v165, %v410
    %v614 = vmul.f32 %v166, %v410
    %v615 = vmul.f32 %v167, %v410
    %v616 = vmul.f32 %v168, %v410
    %v617 = vmul.f32 %v169, %v415
    %v618 = vmul.f32 %v170, %v415
    %v619 = vmul.f32 %v171, %v415
    %v620 = vmul.f32 %v172, %v415
    %v621 = vmul.f32 %v173, %v415
    %v622 = vmul.f32 %v174, %v415
    %v623 = vmul.f32 %v175, %v415
    %v624 = vmul.f32 %v176, %v415
    %v625 = vmul.f32 %v177, %v420
    %v626 = vmul.f32 %v178, %v420
    %v627 = vmul.f32 %v179, %v420
    %v628 = vmul.f32 %v180, %v420
    %v629 = vmul.f32 %v181, %v420
    %v630 = vmul.f32 %v182, %v420
    %v631 = vmul.f32 %v183, %v420
    %v632 = vmul.f32 %v184, %v420
    %v633 = vmul.f32 %v185, %v425
    %v634 = vmul.f32 %v186, %v425
    %v635 = vmul.f32 %v187, %v425
    %v636 = vmul.f32 %v188, %v425
    %v637 = vmul.f32 %v189, %v425
    %v638 = vmul.f32 %v190, %v425
    %v639 = vmul.f32 %v191, %v425
    %v640 = vmul.f32 %v192, %v425
    %v641 = vmul.f32 %v193, %v430
    %v642 = vmul.f32 %v194, %v430
    %v643 = vmul.f32 %v195, %v430
    %v644 = vmul.f32 %v196, %v430
    %v645 = vmul.f32 %v197, %v430
    %v646 = vmul.f32 %v198, %v430
    %v647 = vmul.f32 %v199, %v430
    %v648 = vmul.f32 %v200, %v430
    %v649 = vmul.f32 %v201, %v435
    %v650 = vmul.f32 %v202, %v435
    %v651 = vmul.f32 %v203, %v435
    %v652 = vmul.f32 %v204, %v435
    %v653 = vmul.f32 %v205, %v435
    %v654 = vmul.f32 %v206, %v435
    %v655 = vmul.f32 %v207, %v435
    %v656 = vmul.f32 %v208, %v435
    %v657 = vmul.f32 %v209, %v440
    %v658 = vmul.f32 %v210, %v440
    %v659 = vmul.f32 %v211, %v440
    %v660 = vmul.f32 %v212, %v440
    %v661 = vmul.f32 %v213, %v440
    %v662 = vmul.f32 %v214, %v440
    %v663 = vmul.f32 %v215, %v440
    %v664 = vmul.f32 %v216, %v440
    %v665 = vmul.f32 %v217, %v445
    %v666 = vmul.f32 %v218, %v445
    %v667 = vmul.f32 %v219, %v445
    %v668 = vmul.f32 %v220, %v445
    %v669 = vmul.f32 %v221, %v445
    %v670 = vmul.f32 %v222, %v445
    %v671 = vmul.f32 %v223, %v445
    %v672 = vmul.f32 %v224, %v445
    %v673 = vmul.f32 %v225, %v450
    %v674 = vmul.f32 %v226, %v450
    %v675 = vmul.f32 %v227, %v450
    %v676 = vmul.f32 %v228, %v450
    %v677 = vmul.f32 %v229, %v450
    %v678 = vmul.f32 %v230, %v450
    %v679 = vmul.f32 %v231, %v450
    %v680 = vmul.f32 %v232, %v450
    %v681 = vmul.f32 %v233, %v455
    %v682 = vmul.f32 %v234, %v455
    %v683 = vmul.f32 %v235, %v455
    %v684 = vmul.f32 %v236, %v455
    %v685 = vmul.f32 %v237, %v455
    %v686 = vmul.f32 %v238, %v455
    %v687 = vmul.f32 %v239, %v455
    %v688 = vmul.f32 %v240, %v455
    %v689 = vmul.f32 %v241, %v460
    %v690 = vmul.f32 %v242, %v460
    %v691 = vmul.f32 %v243, %v460
    %v692 = vmul.f32 %v244, %v460
    %v693 = vmul.f32 %v245, %v460
    %v694 = vmul.f32 %v246, %v460
    %v695 = vmul.f32 %v247, %v460
    %v696 = vmul.f32 %v248, %v460
    %v697 = vmul.f32 %v249, %v465
    %v698 = vmul.f32 %v250, %v465
    %v699 = vmul.f32 %v251, %v465
    %v700 = vmul.f32 %v252, %v465
    %v701 = vmul.f32 %v253, %v465
    %v702 = vmul.f32 %v254, %v465
    %v703 = vmul.f32 %v255, %v465
    %v704 = vmul.f32 %v256, %v465
    %v705 = vmul.f32 %v257, %v470
    %v706 = vmul.f32 %v258, %v470
    %v707 = vmul.f32 %v259, %v470
    %v708 = vmul.f32 %v260, %v470
    %v709 = vmul.f32 %v261, %v470
    %v710 = vmul.f32 %v262, %v470
    %v711 = vmul.f32 %v263, %v470
    %v712 = vmul.f32 %v264, %v470
    %v713 = vmul.f32 %v265, %v475
    %v714 = vmul.f32 %v266, %v475
    %v715 = vmul.f32 %v267, %v475
    %v716 = vmul.f32 %v268, %v475
    %v717 = vmul.f32 %v269, %v475
    %v718 = vmul.f32 %v270, %v475
    %v719 = vmul.f32 %v271, %v475
    %v720 = vmul.f32 %v272, %v475
    %v721 = vmul.f32 %v273, %v480
    %v722 = vmul.f32 %v274, %v480
    %v723 = vmul.f32 %v275, %v480
    %v724 = vmul.f32 %v276, %v480
    %v725 = vmul.f32 %v277, %v480
    %v726 = vmul.f32 %v278, %v480
    %v727 = vmul.f32 %v279, %v480
    %v728 = vmul.f32 %v280, %v480
    %v729 = vmul.f32 %v281, %v485
    %v730 = vmul.f32 %v282, %v485
    %v731 = vmul.f32 %v283, %v485
    %v732 = vmul.f32 %v284, %v485
    %v733 = vmul.f32 %v285, %v485
    %v734 = vmul.f32 %v286, %v485
    %v735 = vmul.f32 %v287, %v485
    %v736 = vmul.f32 %v288, %v485
    %v737 = vmul.f32 %v289, %v490
    %v738 = vmul.f32 %v290, %v490
    %v739 = vmul.f32 %v291, %v490
    %v740 = vmul.f32 %v292, %v490
    %v741 = vmul.f32 %v293, %v490
    %v742 = vmul.f32 %v294, %v490
    %v743 = vmul.f32 %v295, %v490
    %v744 = vmul.f32 %v296, %v490
    %v745 = vmul.f32 %v297, %v495
    %v746 = vmul.f32 %v298, %v495
    %v747 = vmul.f32 %v299, %v495
    %v748 = vmul.f32 %v300, %v495
    %v749 = vmul.f32 %v301, %v495
    %v750 = vmul.f32 %v302, %v495
    %v751 = vmul.f32 %v303, %v495
    %v752 = vmul.f32 %v304, %v495
    %v753 = vld [vmem:[%s2] sm:$0xff]
    %v754 = vld [vmem:[%s2 + $0x8] sm:$0xff]
    %v755 = vld [vmem:[%s2 + $0x10] sm:$0xff]
    %v756 = vld [vmem:[%s2 + $0x18] sm:$0xff]
    %v757 = vld [vmem:[%s2 + $0x20] sm:$0xff]
    %v758 = vld [vmem:[%s2 + $0x28] sm:$0xff]
    %v759 = vld [vmem:[%s2 + $0x30] sm:$0xff]
    %v760 = vld [vmem:[%s2 + $0x38] sm:$0xff]
    %v761 = vld [vmem:[%s2 + $0x40] sm:$0xff]
    %v762 = vld [vmem:[%s2 + $0x48] sm:$0xff]
    %v763 = vld [vmem:[%s2 + $0x50] sm:$0xff]
    %v764 = vld [vmem:[%s2 + $0x58] sm:$0xff]
    %v765 = vld [vmem:[%s2 + $0x60] sm:$0xff]
    %v766 = vld [vmem:[%s2 + $0x68] sm:$0xff]
    %v767 = vld [vmem:[%s2 + $0x70] sm:$0xff]
    %v768 = vld [vmem:[%s2 + $0x78] sm:$0xff]
    %v769 = vld [vmem:[%s2 + $0x80] sm:$0xff]
    %v770 = vld [vmem:[%s2 + $0x88] sm:$0xff]
    %v771 = vld [vmem:[%s2 + $0x90] sm:$0xff]
    %v772 = vld [vmem:[%s2 + $0x98] sm:$0xff]
    %v773 = vld [vmem:[%s2 + $0xa0] sm:$0xff]
    %v774 = vld [vmem:[%s2 + $0xa8] sm:$0xff]
    %v775 = vld [vmem:[%s2 + $0xb0] sm:$0xff]
    %v776 = vld [vmem:[%s2 + $0xb8] sm:$0xff]
    %v777 = vld [vmem:[%s2 + $0xc0] sm:$0xff]
    %v778 = vld [vmem:[%s2 + $0xc8] sm:$0xff]
    %v779 = vld [vmem:[%s2 + $0xd0] sm:$0xff]
    %v780 = vld [vmem:[%s2 + $0xd8] sm:$0xff]
    %v781 = vld [vmem:[%s2 + $0xe0] sm:$0xff]
    %v782 = vld [vmem:[%s2 + $0xe8] sm:$0xff]
    %v783 = vld [vmem:[%s2 + $0xf0] sm:$0xff]
    %v784 = vld [vmem:[%s2 + $0xf8] sm:$0xff]
    %786 = vset.pattern.permute.xlu0 0
    %787 = vperm.xlu0 %786, %v753
    %v788 = vpop.permute.xlu0 %787
    %791 = vset.pattern.permute.xlu0 0
    %792 = vperm.xlu0 %791, %v754
    %v793 = vpop.permute.xlu0 %792
    %796 = vset.pattern.permute.xlu0 0
    %797 = vperm.xlu0 %796, %v755
    %v798 = vpop.permute.xlu0 %797
    %801 = vset.pattern.permute.xlu0 0
    %802 = vperm.xlu0 %801, %v756
    %v803 = vpop.permute.xlu0 %802
    %806 = vset.pattern.permute.xlu0 0
    %807 = vperm.xlu0 %806, %v757
    %v808 = vpop.permute.xlu0 %807
    %811 = vset.pattern.permute.xlu0 0
    %812 = vperm.xlu0 %811, %v758
    %v813 = vpop.permute.xlu0 %812
    %816 = vset.pattern.permute.xlu0 0
    %817 = vperm.xlu0 %816, %v759
    %v818 = vpop.permute.xlu0 %817
    %821 = vset.pattern.permute.xlu0 0
    %822 = vperm.xlu0 %821, %v760
    %v823 = vpop.permute.xlu0 %822
    %826 = vset.pattern.permute.xlu0 0
    %827 = vperm.xlu0 %826, %v761
    %v828 = vpop.permute.xlu0 %827
    %831 = vset.pattern.permute.xlu0 0
    %832 = vperm.xlu0 %831, %v762
    %v833 = vpop.permute.xlu0 %832
    %836 = vset.pattern.permute.xlu0 0
    %837 = vperm.xlu0 %836, %v763
    %v838 = vpop.permute.xlu0 %837
    %841 = vset.pattern.permute.xlu0 0
    %842 = vperm.xlu0 %841, %v764
    %v843 = vpop.permute.xlu0 %842
    %846 = vset.pattern.permute.xlu0 0
    %847 = vperm.xlu0 %846, %v765
    %v848 = vpop.permute.xlu0 %847
    %851 = vset.pattern.permute.xlu0 0
    %852 = vperm.xlu0 %851, %v766
    %v853 = vpop.permute.xlu0 %852
    %856 = vset.pattern.permute.xlu0 0
    %857 = vperm.xlu0 %856, %v767
    %v858 = vpop.permute.xlu0 %857
    %861 = vset.pattern.permute.xlu0 0
    %862 = vperm.xlu0 %861, %v768
    %v863 = vpop.permute.xlu0 %862
    %866 = vset.pattern.permute.xlu0 0
    %867 = vperm.xlu0 %866, %v769
    %v868 = vpop.permute.xlu0 %867
    %871 = vset.pattern.permute.xlu0 0
    %872 = vperm.xlu0 %871, %v770
    %v873 = vpop.permute.xlu0 %872
    %876 = vset.pattern.permute.xlu0 0
    %877 = vperm.xlu0 %876, %v771
    %v878 = vpop.permute.xlu0 %877
    %881 = vset.pattern.permute.xlu0 0
    %882 = vperm.xlu0 %881, %v772
    %v883 = vpop.permute.xlu0 %882
    %886 = vset.pattern.permute.xlu0 0
    %887 = vperm.xlu0 %886, %v773
    %v888 = vpop.permute.xlu0 %887
    %891 = vset.pattern.permute.xlu0 0
    %892 = vperm.xlu0 %891, %v774
    %v893 = vpop.permute.xlu0 %892
    %896 = vset.pattern.permute.xlu0 0
    %897 = vperm.xlu0 %896, %v775
    %v898 = vpop.permute.xlu0 %897
    %901 = vset.pattern.permute.xlu0 0
    %902 = vperm.xlu0 %901, %v776
    %v903 = vpop.permute.xlu0 %902
    %906 = vset.pattern.permute.xlu0 0
    %907 = vperm.xlu0 %906, %v777
    %v908 = vpop.permute.xlu0 %907
    %911 = vset.pattern.permute.xlu0 0
    %912 = vperm.xlu0 %911, %v778
    %v913 = vpop.permute.xlu0 %912
    %916 = vset.pattern.permute.xlu0 0
    %917 = vperm.xlu0 %916, %v779
    %v918 = vpop.permute.xlu0 %917
    %921 = vset.pattern.permute.xlu0 0
    %922 = vperm.xlu0 %921, %v780
    %v923 = vpop.permute.xlu0 %922
    %926 = vset.pattern.permute.xlu0 0
    %927 = vperm.xlu0 %926, %v781
    %v928 = vpop.permute.xlu0 %927
    %931 = vset.pattern.permute.xlu0 0
    %932 = vperm.xlu0 %931, %v782
    %v933 = vpop.permute.xlu0 %932
    %936 = vset.pattern.permute.xlu0 0
    %937 = vperm.xlu0 %936, %v783
    %v938 = vpop.permute.xlu0 %937
    %941 = vset.pattern.permute.xlu0 0
    %942 = vperm.xlu0 %941, %v784
    %v943 = vpop.permute.xlu0 %942
    %v945 = vadd.f32 %v497, %v788
    %v946 = vadd.f32 %v498, %v788
    %v947 = vadd.f32 %v499, %v788
    %v948 = vadd.f32 %v500, %v788
    %v949 = vadd.f32 %v501, %v788
    %v950 = vadd.f32 %v502, %v788
    %v951 = vadd.f32 %v503, %v788
    %v952 = vadd.f32 %v504, %v788
    %v953 = vadd.f32 %v505, %v793
    %v954 = vadd.f32 %v506, %v793
    %v955 = vadd.f32 %v507, %v793
    %v956 = vadd.f32 %v508, %v793
    %v957 = vadd.f32 %v509, %v793
    %v958 = vadd.f32 %v510, %v793
    %v959 = vadd.f32 %v511, %v793
    %v960 = vadd.f32 %v512, %v793
    %v961 = vadd.f32 %v513, %v798
    %v962 = vadd.f32 %v514, %v798
    %v963 = vadd.f32 %v515, %v798
    %v964 = vadd.f32 %v516, %v798
    %v965 = vadd.f32 %v517, %v798
    %v966 = vadd.f32 %v518, %v798
    %v967 = vadd.f32 %v519, %v798
    %v968 = vadd.f32 %v520, %v798
    %v969 = vadd.f32 %v521, %v803
    %v970 = vadd.f32 %v522, %v803
    %v971 = vadd.f32 %v523, %v803
    %v972 = vadd.f32 %v524, %v803
    %v973 = vadd.f32 %v525, %v803
    %v974 = vadd.f32 %v526, %v803
    %v975 = vadd.f32 %v527, %v803
    %v976 = vadd.f32 %v528, %v803
    %v977 = vadd.f32 %v529, %v808
    %v978 = vadd.f32 %v530, %v808
    %v979 = vadd.f32 %v531, %v808
    %v980 = vadd.f32 %v532, %v808
    %v981 = vadd.f32 %v533, %v808
    %v982 = vadd.f32 %v534, %v808
    %v983 = vadd.f32 %v535, %v808
    %v984 = vadd.f32 %v536, %v808
    %v985 = vadd.f32 %v537, %v813
    %v986 = vadd.f32 %v538, %v813
    %v987 = vadd.f32 %v539, %v813
    %v988 = vadd.f32 %v540, %v813
    %v989 = vadd.f32 %v541, %v813
    %v990 = vadd.f32 %v542, %v813
    %v991 = vadd.f32 %v543, %v813
    %v992 = vadd.f32 %v544, %v813
    %v993 = vadd.f32 %v545, %v818
    %v994 = vadd.f32 %v546, %v818
    %v995 = vadd.f32 %v547, %v818
    %v996 = vadd.f32 %v548, %v818
    %v997 = vadd.f32 %v549, %v818
    %v998 = vadd.f32 %v550, %v818
    %v999 = vadd.f32 %v551, %v818
    %v1000 = vadd.f32 %v552, %v818
    %v1001 = vadd.f32 %v553, %v823
    %v1002 = vadd.f32 %v554, %v823
    %v1003 = vadd.f32 %v555, %v823
    %v1004 = vadd.f32 %v556, %v823
    %v1005 = vadd.f32 %v557, %v823
    %v1006 = vadd.f32 %v558, %v823
    %v1007 = vadd.f32 %v559, %v823
    %v1008 = vadd.f32 %v560, %v823
    %v1009 = vadd.f32 %v561, %v828
    %v1010 = vadd.f32 %v562, %v828
    %v1011 = vadd.f32 %v563, %v828
    %v1012 = vadd.f32 %v564, %v828
    %v1013 = vadd.f32 %v565, %v828
    %v1014 = vadd.f32 %v566, %v828
    %v1015 = vadd.f32 %v567, %v828
    %v1016 = vadd.f32 %v568, %v828
    %v1017 = vadd.f32 %v569, %v833
    %v1018 = vadd.f32 %v570, %v833
    %v1019 = vadd.f32 %v571, %v833
    %v1020 = vadd.f32 %v572, %v833
    %v1021 = vadd.f32 %v573, %v833
    %v1022 = vadd.f32 %v574, %v833
    %v1023 = vadd.f32 %v575, %v833
    %v1024 = vadd.f32 %v576, %v833
    %v1025 = vadd.f32 %v577, %v838
    %v1026 = vadd.f32 %v578, %v838
    %v1027 = vadd.f32 %v579, %v838
    %v1028 = vadd.f32 %v580, %v838
    %v1029 = vadd.f32 %v581, %v838
    %v1030 = vadd.f32 %v582, %v838
    %v1031 = vadd.f32 %v583, %v838
    %v1032 = vadd.f32 %v584, %v838
    %v1033 = vadd.f32 %v585, %v843
    %v1034 = vadd.f32 %v586, %v843
    %v1035 = vadd.f32 %v587, %v843
    %v1036 = vadd.f32 %v588, %v843
    %v1037 = vadd.f32 %v589, %v843
    %v1038 = vadd.f32 %v590, %v843
    %v1039 = vadd.f32 %v591, %v843
    %v1040 = vadd.f32 %v592, %v843
    %v1041 = vadd.f32 %v593, %v848
    %v1042 = vadd.f32 %v594, %v848
    %v1043 = vadd.f32 %v595, %v848
    %v1044 = vadd.f32 %v596, %v848
    %v1045 = vadd.f32 %v597, %v848
    %v1046 = vadd.f32 %v598, %v848
    %v1047 = vadd.f32 %v599, %v848
    %v1048 = vadd.f32 %v600, %v848
    %v1049 = vadd.f32 %v601, %v853
    %v1050 = vadd.f32 %v602, %v853
    %v1051 = vadd.f32 %v603, %v853
    %v1052 = vadd.f32 %v604, %v853
    %v1053 = vadd.f32 %v605, %v853
    %v1054 = vadd.f32 %v606, %v853
    %v1055 = vadd.f32 %v607, %v853
    %v1056 = vadd.f32 %v608, %v853
    %v1057 = vadd.f32 %v609, %v858
    %v1058 = vadd.f32 %v610, %v858
    %v1059 = vadd.f32 %v611, %v858
    %v1060 = vadd.f32 %v612, %v858
    %v1061 = vadd.f32 %v613, %v858
    %v1062 = vadd.f32 %v614, %v858
    %v1063 = vadd.f32 %v615, %v858
    %v1064 = vadd.f32 %v616, %v858
    %v1065 = vadd.f32 %v617, %v863
    %v1066 = vadd.f32 %v618, %v863
    %v1067 = vadd.f32 %v619, %v863
    %v1068 = vadd.f32 %v620, %v863
    %v1069 = vadd.f32 %v621, %v863
    %v1070 = vadd.f32 %v622, %v863
    %v1071 = vadd.f32 %v623, %v863
    %v1072 = vadd.f32 %v624, %v863
    %v1073 = vadd.f32 %v625, %v868
    %v1074 = vadd.f32 %v626, %v868
    %v1075 = vadd.f32 %v627, %v868
    %v1076 = vadd.f32 %v628, %v868
    %v1077 = vadd.f32 %v629, %v868
    %v1078 = vadd.f32 %v630, %v868
    %v1079 = vadd.f32 %v631, %v868
    %v1080 = vadd.f32 %v632, %v868
    %v1081 = vadd.f32 %v633, %v873
    %v1082 = vadd.f32 %v634, %v873
    %v1083 = vadd.f32 %v635, %v873
    %v1084 = vadd.f32 %v636, %v873
    %v1085 = vadd.f32 %v637, %v873
    %v1086 = vadd.f32 %v638, %v873
    %v1087 = vadd.f32 %v639, %v873
    %v1088 = vadd.f32 %v640, %v873
    %v1089 = vadd.f32 %v641, %v878
    %v1090 = vadd.f32 %v642, %v878
    %v1091 = vadd.f32 %v643, %v878
    %v1092 = vadd.f32 %v644, %v878
    %v1093 = vadd.f32 %v645, %v878
    %v1094 = vadd.f32 %v646, %v878
    %v1095 = vadd.f32 %v647, %v878
    %v1096 = vadd.f32 %v648, %v878
    %v1097 = vadd.f32 %v649, %v883
    %v1098 = vadd.f32 %v650, %v883
    %v1099 = vadd.f32 %v651, %v883
    %v1100 = vadd.f32 %v652, %v883
    %v1101 = vadd.f32 %v653, %v883
    %v1102 = vadd.f32 %v654, %v883
    %v1103 = vadd.f32 %v655, %v883
    %v1104 = vadd.f32 %v656, %v883
    %v1105 = vadd.f32 %v657, %v888
    %v1106 = vadd.f32 %v658, %v888
    %v1107 = vadd.f32 %v659, %v888
    %v1108 = vadd.f32 %v660, %v888
    %v1109 = vadd.f32 %v661, %v888
    %v1110 = vadd.f32 %v662, %v888
    %v1111 = vadd.f32 %v663, %v888
    %v1112 = vadd.f32 %v664, %v888
    %v1113 = vadd.f32 %v665, %v893
    %v1114 = vadd.f32 %v666, %v893
    %v1115 = vadd.f32 %v667, %v893
    %v1116 = vadd.f32 %v668, %v893
    %v1117 = vadd.f32 %v669, %v893
    %v1118 = vadd.f32 %v670, %v893
    %v1119 = vadd.f32 %v671, %v893
    %v1120 = vadd.f32 %v672, %v893
    %v1121 = vadd.f32 %v673, %v898
    %v1122 = vadd.f32 %v674, %v898
    %v1123 = vadd.f32 %v675, %v898
    %v1124 = vadd.f32 %v676, %v898
    %v1125 = vadd.f32 %v677, %v898
    %v1126 = vadd.f32 %v678, %v898
    %v1127 = vadd.f32 %v679, %v898
    %v1128 = vadd.f32 %v680, %v898
    %v1129 = vadd.f32 %v681, %v903
    %v1130 = vadd.f32 %v682, %v903
    %v1131 = vadd.f32 %v683, %v903
    %v1132 = vadd.f32 %v684, %v903
    %v1133 = vadd.f32 %v685, %v903
    %v1134 = vadd.f32 %v686, %v903
    %v1135 = vadd.f32 %v687, %v903
    %v1136 = vadd.f32 %v688, %v903
    %v1137 = vadd.f32 %v689, %v908
    %v1138 = vadd.f32 %v690, %v908
    %v1139 = vadd.f32 %v691, %v908
    %v1140 = vadd.f32 %v692, %v908
    %v1141 = vadd.f32 %v693, %v908
    %v1142 = vadd.f32 %v694, %v908
    %v1143 = vadd.f32 %v695, %v908
    %v1144 = vadd.f32 %v696, %v908
    %v1145 = vadd.f32 %v697, %v913
    %v1146 = vadd.f32 %v698, %v913
    %v1147 = vadd.f32 %v699, %v913
    %v1148 = vadd.f32 %v700, %v913
    %v1149 = vadd.f32 %v701, %v913
    %v1150 = vadd.f32 %v702, %v913
    %v1151 = vadd.f32 %v703, %v913
    %v1152 = vadd.f32 %v704, %v913
    %v1153 = vadd.f32 %v705, %v918
    %v1154 = vadd.f32 %v706, %v918
    %v1155 = vadd.f32 %v707, %v918
    %v1156 = vadd.f32 %v708, %v918
    %v1157 = vadd.f32 %v709, %v918
    %v1158 = vadd.f32 %v710, %v918
    %v1159 = vadd.f32 %v711, %v918
    %v1160 = vadd.f32 %v712, %v918
    %v1161 = vadd.f32 %v713, %v923
    %v1162 = vadd.f32 %v714, %v923
    %v1163 = vadd.f32 %v715, %v923
    %v1164 = vadd.f32 %v716, %v923
    %v1165 = vadd.f32 %v717, %v923
    %v1166 = vadd.f32 %v718, %v923
    %v1167 = vadd.f32 %v719, %v923
    %v1168 = vadd.f32 %v720, %v923
    %v1169 = vadd.f32 %v721, %v928
    %v1170 = vadd.f32 %v722, %v928
    %v1171 = vadd.f32 %v723, %v928
    %v1172 = vadd.f32 %v724, %v928
    %v1173 = vadd.f32 %v725, %v928
    %v1174 = vadd.f32 %v726, %v928
    %v1175 = vadd.f32 %v727, %v928
    %v1176 = vadd.f32 %v728, %v928
    %v1177 = vadd.f32 %v729, %v933
    %v1178 = vadd.f32 %v730, %v933
    %v1179 = vadd.f32 %v731, %v933
    %v1180 = vadd.f32 %v732, %v933
    %v1181 = vadd.f32 %v733, %v933
    %v1182 = vadd.f32 %v734, %v933
    %v1183 = vadd.f32 %v735, %v933
    %v1184 = vadd.f32 %v736, %v933
    %v1185 = vadd.f32 %v737, %v938
    %v1186 = vadd.f32 %v738, %v938
    %v1187 = vadd.f32 %v739, %v938
    %v1188 = vadd.f32 %v740, %v938
    %v1189 = vadd.f32 %v741, %v938
    %v1190 = vadd.f32 %v742, %v938
    %v1191 = vadd.f32 %v743, %v938
    %v1192 = vadd.f32 %v744, %v938
    %v1193 = vadd.f32 %v745, %v943
    %v1194 = vadd.f32 %v746, %v943
    %v1195 = vadd.f32 %v747, %v943
    %v1196 = vadd.f32 %v748, %v943
    %v1197 = vadd.f32 %v749, %v943
    %v1198 = vadd.f32 %v750, %v943
    %v1199 = vadd.f32 %v751, %v943
    %v1200 = vadd.f32 %v752, %v943
    %v1201 = vmax.f32 %v945, 0.0
    %v1202 = vmax.f32 %v946, 0.0
    %v1203 = vmax.f32 %v947, 0.0
    %v1204 = vmax.f32 %v948, 0.0
    %v1205 = vmax.f32 %v949, 0.0
    %v1206 = vmax.f32 %v950, 0.0
    %v1207 = vmax.f32 %v951, 0.0
    %v1208 = vmax.f32 %v952, 0.0
    %v1209 = vmax.f32 %v953, 0.0
    %v1210 = vmax.f32 %v954, 0.0
    %v1211 = vmax.f32 %v955, 0.0
    %v1212 = vmax.f32 %v956, 0.0
    %v1213 = vmax.f32 %v957, 0.0
    %v1214 = vmax.f32 %v958, 0.0
    %v1215 = vmax.f32 %v959, 0.0
    %v1216 = vmax.f32 %v960, 0.0
    %v1217 = vmax.f32 %v961, 0.0
    %v1218 = vmax.f32 %v962, 0.0
    %v1219 = vmax.f32 %v963, 0.0
    %v1220 = vmax.f32 %v964, 0.0
    %v1221 = vmax.f32 %v965, 0.0
    %v1222 = vmax.f32 %v966, 0.0
    %v1223 = vmax.f32 %v967, 0.0
    %v1224 = vmax.f32 %v968, 0.0
    %v1225 = vmax.f32 %v969, 0.0
    %v1226 = vmax.f32 %v970, 0.0
    %v1227 = vmax.f32 %v971, 0.0
    %v1228 = vmax.f32 %v972, 0.0
    %v1229 = vmax.f32 %v973, 0.0
    %v1230 = vmax.f32 %v974, 0.0
    %v1231 = vmax.f32 %v975, 0.0
    %v1232 = vmax.f32 %v976, 0.0
    %v1233 = vmax.f32 %v977, 0.0
    %v1234 = vmax.f32 %v978, 0.0
    %v1235 = vmax.f32 %v979, 0.0
    %v1236 = vmax.f32 %v980, 0.0
    %v1237 = vmax.f32 %v981, 0.0
    %v1238 = vmax.f32 %v982, 0.0
    %v1239 = vmax.f32 %v983, 0.0
    %v1240 = vmax.f32 %v984, 0.0
    %v1241 = vmax.f32 %v985, 0.0
    %v1242 = vmax.f32 %v986, 0.0
    %v1243 = vmax.f32 %v987, 0.0
    %v1244 = vmax.f32 %v988, 0.0
    %v1245 = vmax.f32 %v989, 0.0
    %v1246 = vmax.f32 %v990, 0.0
    %v1247 = vmax.f32 %v991, 0.0
    %v1248 = vmax.f32 %v992, 0.0
    %v1249 = vmax.f32 %v993, 0.0
    %v1250 = vmax.f32 %v994, 0.0
    %v1251 = vmax.f32 %v995, 0.0
    %v1252 = vmax.f32 %v996, 0.0
    %v1253 = vmax.f32 %v997, 0.0
    %v1254 = vmax.f32 %v998, 0.0
    %v1255 = vmax.f32 %v999, 0.0
    %v1256 = vmax.f32 %v1000, 0.0
    %v1257 = vmax.f32 %v1001, 0.0
    %v1258 = vmax.f32 %v1002, 0.0
    %v1259 = vmax.f32 %v1003, 0.0
    %v1260 = vmax.f32 %v1004, 0.0
    %v1261 = vmax.f32 %v1005, 0.0
    %v1262 = vmax.f32 %v1006, 0.0
    %v1263 = vmax.f32 %v1007, 0.0
    %v1264 = vmax.f32 %v1008, 0.0
    %v1265 = vmax.f32 %v1009, 0.0
    %v1266 = vmax.f32 %v1010, 0.0
    %v1267 = vmax.f32 %v1011, 0.0
    %v1268 = vmax.f32 %v1012, 0.0
    %v1269 = vmax.f32 %v1013, 0.0
    %v1270 = vmax.f32 %v1014, 0.0
    %v1271 = vmax.f32 %v1015, 0.0
    %v1272 = vmax.f32 %v1016, 0.0
    %v1273 = vmax.f32 %v1017, 0.0
    %v1274 = vmax.f32 %v1018, 0.0
    %v1275 = vmax.f32 %v1019, 0.0
    %v1276 = vmax.f32 %v1020, 0.0
    %v1277 = vmax.f32 %v1021, 0.0
    %v1278 = vmax.f32 %v1022, 0.0
    %v1279 = vmax.f32 %v1023, 0.0
    %v1280 = vmax.f32 %v1024, 0.0
    %v1281 = vmax.f32 %v1025, 0.0
    %v1282 = vmax.f32 %v1026, 0.0
    %v1283 = vmax.f32 %v1027, 0.0
    %v1284 = vmax.f32 %v1028, 0.0
    %v1285 = vmax.f32 %v1029, 0.0
    %v1286 = vmax.f32 %v1030, 0.0
    %v1287 = vmax.f32 %v1031, 0.0
    %v1288 = vmax.f32 %v1032, 0.0
    %v1289 = vmax.f32 %v1033, 0.0
    %v1290 = vmax.f32 %v1034, 0.0
    %v1291 = vmax.f32 %v1035, 0.0
    %v1292 = vmax.f32 %v1036, 0.0
    %v1293 = vmax.f32 %v1037, 0.0
    %v1294 = vmax.f32 %v1038, 0.0
    %v1295 = vmax.f32 %v1039, 0.0
    %v1296 = vmax.f32 %v1040, 0.0
    %v1297 = vmax.f32 %v1041, 0.0
    %v1298 = vmax.f32 %v1042, 0.0
    %v1299 = vmax.f32 %v1043, 0.0
    %v1300 = vmax.f32 %v1044, 0.0
    %v1301 = vmax.f32 %v1045, 0.0
    %v1302 = vmax.f32 %v1046, 0.0
    %v1303 = vmax.f32 %v1047, 0.0
    %v1304 = vmax.f32 %v1048, 0.0
    %v1305 = vmax.f32 %v1049, 0.0
    %v1306 = vmax.f32 %v1050, 0.0
    %v1307 = vmax.f32 %v1051, 0.0
    %v1308 = vmax.f32 %v1052, 0.0
    %v1309 = vmax.f32 %v1053, 0.0
    %v1310 = vmax.f32 %v1054, 0.0
    %v1311 = vmax.f32 %v1055, 0.0
    %v1312 = vmax.f32 %v1056, 0.0
    %v1313 = vmax.f32 %v1057, 0.0
    %v1314 = vmax.f32 %v1058, 0.0
    %v1315 = vmax.f32 %v1059, 0.0
    %v1316 = vmax.f32 %v1060, 0.0
    %v1317 = vmax.f32 %v1061, 0.0
    %v1318 = vmax.f32 %v1062, 0.0
    %v1319 = vmax.f32 %v1063, 0.0
    %v1320 = vmax.f32 %v1064, 0.0
    %v1321 = vmax.f32 %v1065, 0.0
    %v1322 = vmax.f32 %v1066, 0.0
    %v1323 = vmax.f32 %v1067, 0.0
    %v1324 = vmax.f32 %v1068, 0.0
    %v1325 = vmax.f32 %v1069, 0.0
    %v1326 = vmax.f32 %v1070, 0.0
    %v1327 = vmax.f32 %v1071, 0.0
    %v1328 = vmax.f32 %v1072, 0.0
    %v1329 = vmax.f32 %v1073, 0.0
    %v1330 = vmax.f32 %v1074, 0.0
    %v1331 = vmax.f32 %v1075, 0.0
    %v1332 = vmax.f32 %v1076, 0.0
    %v1333 = vmax.f32 %v1077, 0.0
    %v1334 = vmax.f32 %v1078, 0.0
    %v1335 = vmax.f32 %v1079, 0.0
    %v1336 = vmax.f32 %v1080, 0.0
    %v1337 = vmax.f32 %v1081, 0.0
    %v1338 = vmax.f32 %v1082, 0.0
    %v1339 = vmax.f32 %v1083, 0.0
    %v1340 = vmax.f32 %v1084, 0.0
    %v1341 = vmax.f32 %v1085, 0.0
    %v1342 = vmax.f32 %v1086, 0.0
    %v1343 = vmax.f32 %v1087, 0.0
    %v1344 = vmax.f32 %v1088, 0.0
    %v1345 = vmax.f32 %v1089, 0.0
    %v1346 = vmax.f32 %v1090, 0.0
    %v1347 = vmax.f32 %v1091, 0.0
    %v1348 = vmax.f32 %v1092, 0.0
    %v1349 = vmax.f32 %v1093, 0.0
    %v1350 = vmax.f32 %v1094, 0.0
    %v1351 = vmax.f32 %v1095, 0.0
    %v1352 = vmax.f32 %v1096, 0.0
    %v1353 = vmax.f32 %v1097, 0.0
    %v1354 = vmax.f32 %v1098, 0.0
    %v1355 = vmax.f32 %v1099, 0.0
    %v1356 = vmax.f32 %v1100, 0.0
    %v1357 = vmax.f32 %v1101, 0.0
    %v1358 = vmax.f32 %v1102, 0.0
    %v1359 = vmax.f32 %v1103, 0.0
    %v1360 = vmax.f32 %v1104, 0.0
    %v1361 = vmax.f32 %v1105, 0.0
    %v1362 = vmax.f32 %v1106, 0.0
    %v1363 = vmax.f32 %v1107, 0.0
    %v1364 = vmax.f32 %v1108, 0.0
    %v1365 = vmax.f32 %v1109, 0.0
    %v1366 = vmax.f32 %v1110, 0.0
    %v1367 = vmax.f32 %v1111, 0.0
    %v1368 = vmax.f32 %v1112, 0.0
    %v1369 = vmax.f32 %v1113, 0.0
    %v1370 = vmax.f32 %v1114, 0.0
    %v1371 = vmax.f32 %v1115, 0.0
    %v1372 = vmax.f32 %v1116, 0.0
    %v1373 = vmax.f32 %v1117, 0.0
    %v1374 = vmax.f32 %v1118, 0.0
    %v1375 = vmax.f32 %v1119, 0.0
    %v1376 = vmax.f32 %v1120, 0.0
    %v1377 = vmax.f32 %v1121, 0.0
    %v1378 = vmax.f32 %v1122, 0.0
    %v1379 = vmax.f32 %v1123, 0.0
    %v1380 = vmax.f32 %v1124, 0.0
    %v1381 = vmax.f32 %v1125, 0.0
    %v1382 = vmax.f32 %v1126, 0.0
    %v1383 = vmax.f32 %v1127, 0.0
    %v1384 = vmax.f32 %v1128, 0.0
    %v1385 = vmax.f32 %v1129, 0.0
    %v1386 = vmax.f32 %v1130, 0.0
    %v1387 = vmax.f32 %v1131, 0.0
    %v1388 = vmax.f32 %v1132, 0.0
    %v1389 = vmax.f32 %v1133, 0.0
    %v1390 = vmax.f32 %v1134, 0.0
    %v1391 = vmax.f32 %v1135, 0.0
    %v1392 = vmax.f32 %v1136, 0.0
    %v1393 = vmax.f32 %v1137, 0.0
    %v1394 = vmax.f32 %v1138, 0.0
    %v1395 = vmax.f32 %v1139, 0.0
    %v1396 = vmax.f32 %v1140, 0.0
    %v1397 = vmax.f32 %v1141, 0.0
    %v1398 = vmax.f32 %v1142, 0.0
    %v1399 = vmax.f32 %v1143, 0.0
    %v1400 = vmax.f32 %v1144, 0.0
    %v1401 = vmax.f32 %v1145, 0.0
    %v1402 = vmax.f32 %v1146, 0.0
    %v1403 = vmax.f32 %v1147, 0.0
    %v1404 = vmax.f32 %v1148, 0.0
    %v1405 = vmax.f32 %v1149, 0.0
    %v1406 = vmax.f32 %v1150, 0.0
    %v1407 = vmax.f32 %v1151, 0.0
    %v1408 = vmax.f32 %v1152, 0.0
    %v1409 = vmax.f32 %v1153, 0.0
    %v1410 = vmax.f32 %v1154, 0.0
    %v1411 = vmax.f32 %v1155, 0.0
    %v1412 = vmax.f32 %v1156, 0.0
    %v1413 = vmax.f32 %v1157, 0.0
    %v1414 = vmax.f32 %v1158, 0.0
    %v1415 = vmax.f32 %v1159, 0.0
    %v1416 = vmax.f32 %v1160, 0.0
    %v1417 = vmax.f32 %v1161, 0.0
    %v1418 = vmax.f32 %v1162, 0.0
    %v1419 = vmax.f32 %v1163, 0.0
    %v1420 = vmax.f32 %v1164, 0.0
    %v1421 = vmax.f32 %v1165, 0.0
    %v1422 = vmax.f32 %v1166, 0.0
    %v1423 = vmax.f32 %v1167, 0.0
    %v1424 = vmax.f32 %v1168, 0.0
    %v1425 = vmax.f32 %v1169, 0.0
    %v1426 = vmax.f32 %v1170, 0.0
    %v1427 = vmax.f32 %v1171, 0.0
    %v1428 = vmax.f32 %v1172, 0.0
    %v1429 = vmax.f32 %v1173, 0.0
    %v1430 = vmax.f32 %v1174, 0.0
    %v1431 = vmax.f32 %v1175, 0.0
    %v1432 = vmax.f32 %v1176, 0.0
    %v1433 = vmax.f32 %v1177, 0.0
    %v1434 = vmax.f32 %v1178, 0.0
    %v1435 = vmax.f32 %v1179, 0.0
    %v1436 = vmax.f32 %v1180, 0.0
    %v1437 = vmax.f32 %v1181, 0.0
    %v1438 = vmax.f32 %v1182, 0.0
    %v1439 = vmax.f32 %v1183, 0.0
    %v1440 = vmax.f32 %v1184, 0.0
    %v1441 = vmax.f32 %v1185, 0.0
    %v1442 = vmax.f32 %v1186, 0.0
    %v1443 = vmax.f32 %v1187, 0.0
    %v1444 = vmax.f32 %v1188, 0.0
    %v1445 = vmax.f32 %v1189, 0.0
    %v1446 = vmax.f32 %v1190, 0.0
    %v1447 = vmax.f32 %v1191, 0.0
    %v1448 = vmax.f32 %v1192, 0.0
    %v1449 = vmax.f32 %v1193, 0.0
    %v1450 = vmax.f32 %v1194, 0.0
    %v1451 = vmax.f32 %v1195, 0.0
    %v1452 = vmax.f32 %v1196, 0.0
    %v1453 = vmax.f32 %v1197, 0.0
    %v1454 = vmax.f32 %v1198, 0.0
    %v1455 = vmax.f32 %v1199, 0.0
    %v1456 = vmax.f32 %v1200, 0.0
    %v1457 = vld [vmem:[%s3] sm:$0xff]
    %v1458 = vld [vmem:[%s3 + $0x8] sm:$0xff]
    %v1459 = vld [vmem:[%s3 + $0x10] sm:$0xff]
    %v1460 = vld [vmem:[%s3 + $0x18] sm:$0xff]
    %v1461 = vld [vmem:[%s3 + $0x20] sm:$0xff]
    %v1462 = vld [vmem:[%s3 + $0x28] sm:$0xff]
    %v1463 = vld [vmem:[%s3 + $0x30] sm:$0xff]
    %v1464 = vld [vmem:[%s3 + $0x38] sm:$0xff]
    %v1465 = vld [vmem:[%s3 + $0x40] sm:$0xff]
    %v1466 = vld [vmem:[%s3 + $0x48] sm:$0xff]
    %v1467 = vld [vmem:[%s3 + $0x50] sm:$0xff]
    %v1468 = vld [vmem:[%s3 + $0x58] sm:$0xff]
    %v1469 = vld [vmem:[%s3 + $0x60] sm:$0xff]
    %v1470 = vld [vmem:[%s3 + $0x68] sm:$0xff]
    %v1471 = vld [vmem:[%s3 + $0x70] sm:$0xff]
    %v1472 = vld [vmem:[%s3 + $0x78] sm:$0xff]
    %v1473 = vld [vmem:[%s3 + $0x80] sm:$0xff]
    %v1474 = vld [vmem:[%s3 + $0x88] sm:$0xff]
    %v1475 = vld [vmem:[%s3 + $0x90] sm:$0xff]
    %v1476 = vld [vmem:[%s3 + $0x98] sm:$0xff]
    %v1477 = vld [vmem:[%s3 + $0xa0] sm:$0xff]
    %v1478 = vld [vmem:[%s3 + $0xa8] sm:$0xff]
    %v1479 = vld [vmem:[%s3 + $0xb0] sm:$0xff]
    %v1480 = vld [vmem:[%s3 + $0xb8] sm:$0xff]
    %v1481 = vld [vmem:[%s3 + $0xc0] sm:$0xff]
    %v1482 = vld [vmem:[%s3 + $0xc8] sm:$0xff]
    %v1483 = vld [vmem:[%s3 + $0xd0] sm:$0xff]
    %v1484 = vld [vmem:[%s3 + $0xd8] sm:$0xff]
    %v1485 = vld [vmem:[%s3 + $0xe0] sm:$0xff]
    %v1486 = vld [vmem:[%s3 + $0xe8] sm:$0xff]
    %v1487 = vld [vmem:[%s3 + $0xf0] sm:$0xff]
    %v1488 = vld [vmem:[%s3 + $0xf8] sm:$0xff]
    %1489 = vmatprep.subr.mxu0 %v1202
    %1490 = vmatpush1.msra.mxu0 %v1201
    %1491 = vmatprep.subr.mxu0 %v1210
    %1492 = vmatpush1.msra.mxu0 %v1209
    %1493 = vmatprep.subr.mxu0 %v1218
    %1494 = vmatpush1.msra.mxu0 %v1217
    %1495 = vmatprep.subr.mxu0 %v1226
    %1496 = vmatpush1.msra.mxu0 %v1225
    %1497 = vmatprep.subr.mxu0 %v1234
    %1498 = vmatpush1.msra.mxu0 %v1233
    %1499 = vmatprep.subr.mxu0 %v1242
    %1500 = vmatpush1.msra.mxu0 %v1241
    %1501 = vmatprep.subr.mxu0 %v1250
    %1502 = vmatpush1.msra.mxu0 %v1249
    %1503 = vmatprep.subr.mxu0 %v1258
    %1504 = vmatpush1.msra.mxu0 %v1257
    %1505 = vmatprep.subr.mxu0 %v1266
    %1506 = vmatpush1.msra.mxu0 %v1265
    %1507 = vmatprep.subr.mxu0 %v1274
    %1508 = vmatpush1.msra.mxu0 %v1273
    %1509 = vmatprep.subr.mxu0 %v1282
    %1510 = vmatpush1.msra.mxu0 %v1281
    %1511 = vmatprep.subr.mxu0 %v1290
    %1512 = vmatpush1.msra.mxu0 %v1289
    %1513 = vmatprep.subr.mxu0 %v1298
    %1514 = vmatpush1.msra.mxu0 %v1297
    %1515 = vmatprep.subr.mxu0 %v1306
    %1516 = vmatpush1.msra.mxu0 %v1305
    %1517 = vmatprep.subr.mxu0 %v1314
    %1518 = vmatpush1.msra.mxu0 %v1313
    %1519 = vmatprep.subr.mxu0 %v1322
    %1520 = vmatpush1.msra.mxu0 %v1321
    %1521 = vmatprep.subr.mxu0 %v1330
    %1522 = vmatpush1.msra.mxu0 %v1329
    %1523 = vmatprep.subr.mxu0 %v1338
    %1524 = vmatpush1.msra.mxu0 %v1337
    %1525 = vmatprep.subr.mxu0 %v1346
    %1526 = vmatpush1.msra.mxu0 %v1345
    %1527 = vmatprep.subr.mxu0 %v1354
    %1528 = vmatpush1.msra.mxu0 %v1353
    %1529 = vmatprep.subr.mxu0 %v1362
    %1530 = vmatpush1.msra.mxu0 %v1361
    %1531 = vmatprep.subr.mxu0 %v1370
    %1532 = vmatpush1.msra.mxu0 %v1369
    %1533 = vmatprep.subr.mxu0 %v1378
    %1534 = vmatpush1.msra.mxu0 %v1377
    %1535 = vmatprep.subr.mxu0 %v1386
    %1536 = vmatpush1.msra.mxu0 %v1385
    %1537 = vmatprep.subr.mxu0 %v1394
    %1538 = vmatpush1.msra.mxu0 %v1393
    %1539 = vmatprep.subr.mxu0 %v1402
    %1540 = vmatpush1.msra.mxu0 %v1401
    %1541 = vmatprep.subr.mxu0 %v1410
    %1542 = vmatpush1.msra.mxu0 %v1409
    %1543 = vmatprep.subr.mxu0 %v1418
    %1544 = vmatpush1.msra.mxu0 %v1417
    %1545 = vmatprep.subr.mxu0 %v1426
    %1546 = vmatpush1.msra.mxu0 %v1425
    %1547 = vmatprep.subr.mxu0 %v1434
    %1548 = vmatpush1.msra.mxu0 %v1433
    %1549 = vmatprep.subr.mxu0 %v1442
    %1550 = vmatpush1.msra.mxu0 %v1441
    %1551 = vmatprep.subr.mxu0 %v1450
    %1552 = vmatpush1.msra.mxu0 %v1449
    %1553 = vmatprep.mubr.f32.mxu0 %v1458
    %1554 = vmatmul.mubr.f32.gmra.mrb[0].mxu0 %v1457
    %v1555 = vpop.f32.mrb[0].mxu0
    %v1556 = vadd.f32 0.0, %v1555
    %v1557 = vpop.f32.mrb[0].mxu0
    %v1558 = vadd.f32 0.0, %v1557
    %1559 = vmatprep.mubr.f32.mxu0 %v1460
    %1560 = vmatmul.mubr.f32.gmra.mrb[0].mxu0 %v1459
    %v1561 = vpop.f32.mrb[0].mxu0
    %v1562 = vadd.f32 0.0, %v1561
    %v1563 = vpop.f32.mrb[0].mxu0
    %v1564 = vadd.f32 0.0, %v1563
    %1565 = vmatprep.mubr.f32.mxu0 %v1462
    %1566 = vmatmul.mubr.f32.gmra.mrb[0].mxu0 %v1461
    %v1567 = vpop.f32.mrb[0].mxu0
    %v1568 = vadd.f32 0.0, %v1567
    %v1569 = vpop.f32.mrb[0].mxu0
    %v1570 = vadd.f32 0.0, %v1569
    %1571 = vmatprep.mubr.f32.mxu0 %v1464
    %1572 = vmatmul.mubr.f32.gmra.mrb[0].mxu0 %v1463
    %v1573 = vpop.f32.mrb[0].mxu0
    %v1574 = vadd.f32 0.0, %v1573
    %v1575 = vpop.f32.mrb[0].mxu0
    %v1576 = vadd.f32 0.0, %v1575
    %1577 = vmatprep.mubr.f32.mxu0 %v1466
    %1578 = vmatmul.mubr.f32.gmra.mrb[0].mxu0 %v1465
    %v1579 = vpop.f32.mrb[0].mxu0
    %v1580 = vadd.f32 0.0, %v1579
    %v1581 = vpop.f32.mrb[0].mxu0
    %v1582 = vadd.f32 0.0, %v1581
    %1583 = vmatprep.mubr.f32.mxu0 %v1468
    %1584 = vmatmul.mubr.f32.gmra.mrb[0].mxu0 %v1467
    %v1585 = vpop.f32.mrb[0].mxu0
    %v1586 = vadd.f32 0.0, %v1585
    %v1587 = vpop.f32.mrb[0].mxu0
    %v1588 = vadd.f32 0.0, %v1587
    %1589 = vmatprep.mubr.f32.mxu0 %v1470
    %1590 = vmatmul.mubr.f32.gmra.mrb[0].mxu0 %v1469
    %v1591 = vpop.f32.mrb[0].mxu0
    %v1592 = vadd.f32 0.0, %v1591
    %v1593 = vpop.f32.mrb[0].mxu0
    %v1594 = vadd.f32 0.0, %v1593
    %1595 = vmatprep.mubr.f32.mxu0 %v1472
    %1596 = vmatmul.mubr.f32.gmra.mrb[0].mxu0 %v1471
    %v1597 = vpop.f32.mrb[0].mxu0
    %v1598 = vadd.f32 0.0, %v1597
    %v1599 = vpop.f32.mrb[0].mxu0
    %v1600 = vadd.f32 0.0, %v1599
    %1601 = vmatprep.mubr.f32.mxu0 %v1474
    %1602 = vmatmul.mubr.f32.gmra.mrb[0].mxu0 %v1473
    %v1603 = vpop.f32.mrb[0].mxu0
    %v1604 = vadd.f32 0.0, %v1603
    %v1605 = vpop.f32.mrb[0].mxu0
    %v1606 = vadd.f32 0.0, %v1605
    %1607 = vmatprep.mubr.f32.mxu0 %v1476
    %1608 = vmatmul.mubr.f32.gmra.mrb[0].mxu0 %v1475
    %v1609 = vpop.f32.mrb[0].mxu0
    %v1610 = vadd.f32 0.0, %v1609
    %v1611 = vpop.f32.mrb[0].mxu0
    %v1612 = vadd.f32 0.0, %v1611
    %1613 = vmatprep.mubr.f32.mxu0 %v1478
    %1614 = vmatmul.mubr.f32.gmra.mrb[0].mxu0 %v1477
    %v1615 = vpop.f32.mrb[0].mxu0
    %v1616 = vadd.f32 0.0, %v1615
    %v1617 = vpop.f32.mrb[0].mxu0
    %v1618 = vadd.f32 0.0, %v1617
    %1619 = vmatprep.mubr.f32.mxu0 %v1480
    %1620 = vmatmul.mubr.f32.gmra.mrb[0].mxu0 %v1479
    %v1621 = vpop.f32.mrb[0].mxu0
    %v1622 = vadd.f32 0.0, %v1621
    %v1623 = vpop.f32.mrb[0].mxu0
    %v1624 = vadd.f32 0.0, %v1623
    %1625 = vmatprep.mubr.f32.mxu0 %v1482
    %1626 = vmatmul.mubr.f32.gmra.mrb[0].mxu0 %v1481
    %v1627 = vpop.f32.mrb[0].mxu0
    %v1628 = vadd.f32 0.0, %v1627
    %v1629 = vpop.f32.mrb[0].mxu0
    %v1630 = vadd.f32 0.0, %v1629
    %1631 = vmatprep.mubr.f32.mxu0 %v1484
    %1632 = vmatmul.mubr.f32.gmra.mrb[0].mxu0 %v1483
    %v1633 = vpop.f32.mrb[0].mxu0
    %v1634 = vadd.f32 0.0, %v1633
    %v1635 = vpop.f32.mrb[0].mxu0
    %v1636 = vadd.f32 0.0, %v1635
    %1637 = vmatprep.mubr.f32.mxu0 %v1486
    %1638 = vmatmul.mubr.f32.gmra.mrb[0].mxu0 %v1485
    %v1639 = vpop.f32.mrb[0].mxu0
    %v1640 = vadd.f32 0.0, %v1639
    %v1641 = vpop.f32.mrb[0].mxu0
    %v1642 = vadd.f32 0.0, %v1641
    %1643 = vmatprep.mubr.f32.mxu0 %v1488
    %1644 = vmatmul.mubr.f32.gmra.mrb[0].mxu0 %v1487
    %v1645 = vpop.f32.mrb[0].mxu0
    %v1646 = vadd.f32 0.0, %v1645
    %v1647 = vpop.f32.mrb[0].mxu0
    %v1648 = vadd.f32 0.0, %v1647
    %1649 = vdwg.mxu0
    %1650 = vmatprep.subr.mxu0 %v1204
    %1651 = vmatpush1.msra.mxu0 %v1203
    %1652 = vmatprep.subr.mxu0 %v1212
    %1653 = vmatpush1.msra.mxu0 %v1211
    %1654 = vmatprep.subr.mxu0 %v1220
    %1655 = vmatpush1.msra.mxu0 %v1219
    %1656 = vmatprep.subr.mxu0 %v1228
    %1657 = vmatpush1.msra.mxu0 %v1227
    %1658 = vmatprep.subr.mxu0 %v1236
    %1659 = vmatpush1.msra.mxu0 %v1235
    %1660 = vmatprep.subr.mxu0 %v1244
    %1661 = vmatpush1.msra.mxu0 %v1243
    %1662 = vmatprep.subr.mxu0 %v1252
    %1663 = vmatpush1.msra.mxu0 %v1251
    %1664 = vmatprep.subr.mxu0 %v1260
    %1665 = vmatpush1.msra.mxu0 %v1259
    %1666 = vmatprep.subr.mxu0 %v1268
    %1667 = vmatpush1.msra.mxu0 %v1267
    %1668 = vmatprep.subr.mxu0 %v1276
    %1669 = vmatpush1.msra.mxu0 %v1275
    %1670 = vmatprep.subr.mxu0 %v1284
    %1671 = vmatpush1.msra.mxu0 %v1283
    %1672 = vmatprep.subr.mxu0 %v1292
    %1673 = vmatpush1.msra.mxu0 %v1291
    %1674 = vmatprep.subr.mxu0 %v1300
    %1675 = vmatpush1.msra.mxu0 %v1299
    %1676 = vmatprep.subr.mxu0 %v1308
    %1677 = vmatpush1.msra.mxu0 %v1307
    %1678 = vmatprep.subr.mxu0 %v1316
    %1679 = vmatpush1.msra.mxu0 %v1315
    %1680 = vmatprep.subr.mxu0 %v1324
    %1681 = vmatpush1.msra.mxu0 %v1323
    %1682 = vmatprep.subr.mxu0 %v1332
    %1683 = vmatpush1.msra.mxu0 %v1331
    %1684 = vmatprep.subr.mxu0 %v1340
    %1685 = vmatpush1.msra.mxu0 %v1339
    %1686 = vmatprep.subr.mxu0 %v1348
    %1687 = vmatpush1.msra.mxu0 %v1347
    %1688 = vmatprep.subr.mxu0 %v1356
    %1689 = vmatpush1.msra.mxu0 %v1355
    %1690 = vmatprep.subr.mxu0 %v1364
    %1691 = vmatpush1.msra.mxu0 %v1363
    %1692 = vmatprep.subr.mxu0 %v1372
    %1693 = vmatpush1.msra.mxu0 %v1371
    %1694 = vmatprep.subr.mxu0 %v1380
    %1695 = vmatpush1.msra.mxu0 %v1379
    %1696 = vmatprep.subr.mxu0 %v1388
    %1697 = vmatpush1.msra.mxu0 %v1387
    %1698 = vmatprep.subr.mxu0 %v1396
    %1699 = vmatpush1.msra.mxu0 %v1395
    %1700 = vmatprep.subr.mxu0 %v1404
    %1701 = vmatpush1.msra.mxu0 %v1403
    %1702 = vmatprep.subr.mxu0 %v1412
    %1703 = vmatpush1.msra.mxu0 %v1411
    %1704 = vmatprep.subr.mxu0 %v1420
    %1705 = vmatpush1.msra.mxu0 %v1419
    %1706 = vmatprep.subr.mxu0 %v1428
    %1707 = vmatpush1.msra.mxu0 %v1427
    %1708 = vmatprep.subr.mxu0 %v1436
    %1709 = vmatpush1.msra.mxu0 %v1435
    %1710 = vmatprep.subr.mxu0 %v1444
    %1711 = vmatpush1.msra.mxu0 %v1443
    %1712 = vmatprep.subr.mxu0 %v1452
    %1713 = vmatpush1.msra.mxu0 %v1451
    %1714 = vmatprep.mubr.f32.mxu0 %v1458
    %1715 = vmatmul.mubr.f32.gmra.mrb[0].mxu0 %v1457
    %v1716 = vpop.f32.mrb[0].mxu0
    %v1717 = vadd.f32 0.0, %v1716
    %v1718 = vpop.f32.mrb[0].mxu0
    %v1719 = vadd.f32 0.0, %v1718
    %1720 = vmatprep.mubr.f32.mxu0 %v1460
    %1721 = vmatmul.mubr.f32.gmra.mrb[0].mxu0 %v1459
    %v1722 = vpop.f32.mrb[0].mxu0
    %v1723 = vadd.f32 0.0, %v1722
    %v1724 = vpop.f32.mrb[0].mxu0
    %v1725 = vadd.f32 0.0, %v1724
    %1726 = vmatprep.mubr.f32.mxu0 %v1462
    %1727 = vmatmul.mubr.f32.gmra.mrb[0].mxu0 %v1461
    %v1728 = vpop.f32.mrb[0].mxu0
    %v1729 = vadd.f32 0.0, %v1728
    %v1730 = vpop.f32.mrb[0].mxu0
    %v1731 = vadd.f32 0.0, %v1730
    %1732 = vmatprep.mubr.f32.mxu0 %v1464
    %1733 = vmatmul.mubr.f32.gmra.mrb[0].mxu0 %v1463
    %v1734 = vpop.f32.mrb[0].mxu0
    %v1735 = vadd.f32 0.0, %v1734
    %v1736 = vpop.f32.mrb[0].mxu0
    %v1737 = vadd.f32 0.0, %v1736
    %1738 = vmatprep.mubr.f32.mxu0 %v1466
    %1739 = vmatmul.mubr.f32.gmra.mrb[0].mxu0 %v1465
    %v1740 = vpop.f32.mrb[0].mxu0
    %v1741 = vadd.f32 0.0, %v1740
    %v1742 = vpop.f32.mrb[0].mxu0
    %v1743 = vadd.f32 0.0, %v1742
    %1744 = vmatprep.mubr.f32.mxu0 %v1468
    %1745 = vmatmul.mubr.f32.gmra.mrb[0].mxu0 %v1467
    %v1746 = vpop.f32.mrb[0].mxu0
    %v1747 = vadd.f32 0.0, %v1746
    %v1748 = vpop.f32.mrb[0].mxu0
    %v1749 = vadd.f32 0.0, %v1748
    %1750 = vmatprep.mubr.f32.mxu0 %v1470
    %1751 = vmatmul.mubr.f32.gmra.mrb[0].mxu0 %v1469
    %v1752 = vpop.f32.mrb[0].mxu0
    %v1753 = vadd.f32 0.0, %v1752
    %v1754 = vpop.f32.mrb[0].mxu0
    %v1755 = vadd.f32 0.0, %v1754
    %1756 = vmatprep.mubr.f32.mxu0 %v1472
    %1757 = vmatmul.mubr.f32.gmra.mrb[0].mxu0 %v1471
    %v1758 = vpop.f32.mrb[0].mxu0
    %v1759 = vadd.f32 0.0, %v1758
    %v1760 = vpop.f32.mrb[0].mxu0
    %v1761 = vadd.f32 0.0, %v1760
    %1762 = vmatprep.mubr.f32.mxu0 %v1474
    %1763 = vmatmul.mubr.f32.gmra.mrb[0].mxu0 %v1473
    %v1764 = vpop.f32.mrb[0].mxu0
    %v1765 = vadd.f32 0.0, %v1764
    %v1766 = vpop.f32.mrb[0].mxu0
    %v1767 = vadd.f32 0.0, %v1766
    %1768 = vmatprep.mubr.f32.mxu0 %v1476
    %1769 = vmatmul.mubr.f32.gmra.mrb[0].mxu0 %v1475
    %v1770 = vpop.f32.mrb[0].mxu0
    %v1771 = vadd.f32 0.0, %v1770
    %v1772 = vpop.f32.mrb[0].mxu0
    %v1773 = vadd.f32 0.0, %v1772
    %1774 = vmatprep.mubr.f32.mxu0 %v1478
    %1775 = vmatmul.mubr.f32.gmra.mrb[0].mxu0 %v1477
    %v1776 = vpop.f32.mrb[0].mxu0
    %v1777 = vadd.f32 0.0, %v1776
    %v1778 = vpop.f32.mrb[0].mxu0
    %v1779 = vadd.f32 0.0, %v1778
    %1780 = vmatprep.mubr.f32.mxu0 %v1480
    %1781 = vmatmul.mubr.f32.gmra.mrb[0].mxu0 %v1479
    %v1782 = vpop.f32.mrb[0].mxu0
    %v1783 = vadd.f32 0.0, %v1782
    %v1784 = vpop.f32.mrb[0].mxu0
    %v1785 = vadd.f32 0.0, %v1784
    %1786 = vmatprep.mubr.f32.mxu0 %v1482
    %1787 = vmatmul.mubr.f32.gmra.mrb[0].mxu0 %v1481
    %v1788 = vpop.f32.mrb[0].mxu0
    %v1789 = vadd.f32 0.0, %v1788
    %v1790 = vpop.f32.mrb[0].mxu0
    %v1791 = vadd.f32 0.0, %v1790
    %1792 = vmatprep.mubr.f32.mxu0 %v1484
    %1793 = vmatmul.mubr.f32.gmra.mrb[0].mxu0 %v1483
    %v1794 = vpop.f32.mrb[0].mxu0
    %v1795 = vadd.f32 0.0, %v1794
    %v1796 = vpop.f32.mrb[0].mxu0
    %v1797 = vadd.f32 0.0, %v1796
    %1798 = vmatprep.mubr.f32.mxu0 %v1486
    %1799 = vmatmul.mubr.f32.gmra.mrb[0].mxu0 %v1485
    %v1800 = vpop.f32.mrb[0].mxu0
    %v1801 = vadd.f32 0.0, %v1800
    %v1802 = vpop.f32.mrb[0].mxu0
    %v1803 = vadd.f32 0.0, %v1802
    %1804 = vmatprep.mubr.f32.mxu0 %v1488
    %1805 = vmatmul.mubr.f32.gmra.mrb[0].mxu0 %v1487
    %v1806 = vpop.f32.mrb[0].mxu0
    %v1807 = vadd.f32 0.0, %v1806
    %v1808 = vpop.f32.mrb[0].mxu0
    %v1809 = vadd.f32 0.0, %v1808
    %1810 = vdwg.mxu0
    %1811 = vmatprep.subr.mxu0 %v1206
    %1812 = vmatpush1.msra.mxu0 %v1205
    %1813 = vmatprep.subr.mxu0 %v1214
    %1814 = vmatpush1.msra.mxu0 %v1213
    %1815 = vmatprep.subr.mxu0 %v1222
    %1816 = vmatpush1.msra.mxu0 %v1221
    %1817 = vmatprep.subr.mxu0 %v1230
    %1818 = vmatpush1.msra.mxu0 %v1229
    %1819 = vmatprep.subr.mxu0 %v1238
    %1820 = vmatpush1.msra.mxu0 %v1237
    %1821 = vmatprep.subr.mxu0 %v1246
    %1822 = vmatpush1.msra.mxu0 %v1245
    %1823 = vmatprep.subr.mxu0 %v1254
    %1824 = vmatpush1.msra.mxu0 %v1253
    %1825 = vmatprep.subr.mxu0 %v1262
    %1826 = vmatpush1.msra.mxu0 %v1261
    %1827 = vmatprep.subr.mxu0 %v1270
    %1828 = vmatpush1.msra.mxu0 %v1269
    %1829 = vmatprep.subr.mxu0 %v1278
    %1830 = vmatpush1.msra.mxu0 %v1277
    %1831 = vmatprep.subr.mxu0 %v1286
    %1832 = vmatpush1.msra.mxu0 %v1285
    %1833 = vmatprep.subr.mxu0 %v1294
    %1834 = vmatpush1.msra.mxu0 %v1293
    %1835 = vmatprep.subr.mxu0 %v1302
    %1836 = vmatpush1.msra.mxu0 %v1301
    %1837 = vmatprep.subr.mxu0 %v1310
    %1838 = vmatpush1.msra.mxu0 %v1309
    %1839 = vmatprep.subr.mxu0 %v1318
    %1840 = vmatpush1.msra.mxu0 %v1317
    %1841 = vmatprep.subr.mxu0 %v1326
    %1842 = vmatpush1.msra.mxu0 %v1325
    %1843 = vmatprep.subr.mxu0 %v1334
    %1844 = vmatpush1.msra.mxu0 %v1333
    %1845 = vmatprep.subr.mxu0 %v1342
    %1846 = vmatpush1.msra.mxu0 %v1341
    %1847 = vmatprep.subr.mxu0 %v1350
    %1848 = vmatpush1.msra.mxu0 %v1349
    %1849 = vmatprep.subr.mxu0 %v1358
    %1850 = vmatpush1.msra.mxu0 %v1357
    %1851 = vmatprep.subr.mxu0 %v1366
    %1852 = vmatpush1.msra.mxu0 %v1365
    %1853 = vmatprep.subr.mxu0 %v1374
    %1854 = vmatpush1.msra.mxu0 %v1373
    %1855 = vmatprep.subr.mxu0 %v1382
    %1856 = vmatpush1.msra.mxu0 %v1381
    %1857 = vmatprep.subr.mxu0 %v1390
    %1858 = vmatpush1.msra.mxu0 %v1389
    %1859 = vmatprep.subr.mxu0 %v1398
    %1860 = vmatpush1.msra.mxu0 %v1397
    %1861 = vmatprep.subr.mxu0 %v1406
    %1862 = vmatpush1.msra.mxu0 %v1405
    %1863 = vmatprep.subr.mxu0 %v1414
    %1864 = vmatpush1.msra.mxu0 %v1413
    %1865 = vmatprep.subr.mxu0 %v1422
    %1866 = vmatpush1.msra.mxu0 %v1421
    %1867 = vmatprep.subr.mxu0 %v1430
    %1868 = vmatpush1.msra.mxu0 %v1429
    %1869 = vmatprep.subr.mxu0 %v1438
    %1870 = vmatpush1.msra.mxu0 %v1437
    %1871 = vmatprep.subr.mxu0 %v1446
    %1872 = vmatpush1.msra.mxu0 %v1445
    %1873 = vmatprep.subr.mxu0 %v1454
    %1874 = vmatpush1.msra.mxu0 %v1453
    %1875 = vmatprep.mubr.f32.mxu0 %v1458
    %1876 = vmatmul.mubr.f32.gmra.mrb[0].mxu0 %v1457
    %v1877 = vpop.f32.mrb[0].mxu0
    %v1878 = vadd.f32 0.0, %v1877
    %v1879 = vpop.f32.mrb[0].mxu0
    %v1880 = vadd.f32 0.0, %v1879
    %1881 = vmatprep.mubr.f32.mxu0 %v1460
    %1882 = vmatmul.mubr.f32.gmra.mrb[0].mxu0 %v1459
    %v1883 = vpop.f32.mrb[0].mxu0
    %v1884 = vadd.f32 0.0, %v1883
    %v1885 = vpop.f32.mrb[0].mxu0
    %v1886 = vadd.f32 0.0, %v1885
    %1887 = vmatprep.mubr.f32.mxu0 %v1462
    %1888 = vmatmul.mubr.f32.gmra.mrb[0].mxu0 %v1461
    %v1889 = vpop.f32.mrb[0].mxu0
    %v1890 = vadd.f32 0.0, %v1889
    %v1891 = vpop.f32.mrb[0].mxu0
    %v1892 = vadd.f32 0.0, %v1891
    %1893 = vmatprep.mubr.f32.mxu0 %v1464
    %1894 = vmatmul.mubr.f32.gmra.mrb[0].mxu0 %v1463
    %v1895 = vpop.f32.mrb[0].mxu0
    %v1896 = vadd.f32 0.0, %v1895
    %v1897 = vpop.f32.mrb[0].mxu0
    %v1898 = vadd.f32 0.0, %v1897
    %1899 = vmatprep.mubr.f32.mxu0 %v1466
    %1900 = vmatmul.mubr.f32.gmra.mrb[0].mxu0 %v1465
    %v1901 = vpop.f32.mrb[0].mxu0
    %v1902 = vadd.f32 0.0, %v1901
    %v1903 = vpop.f32.mrb[0].mxu0
    %v1904 = vadd.f32 0.0, %v1903
    %1905 = vmatprep.mubr.f32.mxu0 %v1468
    %1906 = vmatmul.mubr.f32.gmra.mrb[0].mxu0 %v1467
    %v1907 = vpop.f32.mrb[0].mxu0
    %v1908 = vadd.f32 0.0, %v1907
    %v1909 = vpop.f32.mrb[0].mxu0
    %v1910 = vadd.f32 0.0, %v1909
    %1911 = vmatprep.mubr.f32.mxu0 %v1470
    %1912 = vmatmul.mubr.f32.gmra.mrb[0].mxu0 %v1469
    %v1913 = vpop.f32.mrb[0].mxu0
    %v1914 = vadd.f32 0.0, %v1913
    %v1915 = vpop.f32.mrb[0].mxu0
    %v1916 = vadd.f32 0.0, %v1915
    %1917 = vmatprep.mubr.f32.mxu0 %v1472
    %1918 = vmatmul.mubr.f32.gmra.mrb[0].mxu0 %v1471
    %v1919 = vpop.f32.mrb[0].mxu0
    %v1920 = vadd.f32 0.0, %v1919
    %v1921 = vpop.f32.mrb[0].mxu0
    %v1922 = vadd.f32 0.0, %v1921
    %1923 = vmatprep.mubr.f32.mxu0 %v1474
    %1924 = vmatmul.mubr.f32.gmra.mrb[0].mxu0 %v1473
    %v1925 = vpop.f32.mrb[0].mxu0
    %v1926 = vadd.f32 0.0, %v1925
    %v1927 = vpop.f32.mrb[0].mxu0
    %v1928 = vadd.f32 0.0, %v1927
    %1929 = vmatprep.mubr.f32.mxu0 %v1476
    %1930 = vmatmul.mubr.f32.gmra.mrb[0].mxu0 %v1475
    %v1931 = vpop.f32.mrb[0].mxu0
    %v1932 = vadd.f32 0.0, %v1931
    %v1933 = vpop.f32.mrb[0].mxu0
    %v1934 = vadd.f32 0.0, %v1933
    %1935 = vmatprep.mubr.f32.mxu0 %v1478
    %1936 = vmatmul.mubr.f32.gmra.mrb[0].mxu0 %v1477
    %v1937 = vpop.f32.mrb[0].mxu0
    %v1938 = vadd.f32 0.0, %v1937
    %v1939 = vpop.f32.mrb[0].mxu0
    %v1940 = vadd.f32 0.0, %v1939
    %1941 = vmatprep.mubr.f32.mxu0 %v1480
    %1942 = vmatmul.mubr.f32.gmra.mrb[0].mxu0 %v1479
    %v1943 = vpop.f32.mrb[0].mxu0
    %v1944 = vadd.f32 0.0, %v1943
    %v1945 = vpop.f32.mrb[0].mxu0
    %v1946 = vadd.f32 0.0, %v1945
    %1947 = vmatprep.mubr.f32.mxu0 %v1482
    %1948 = vmatmul.mubr.f32.gmra.mrb[0].mxu0 %v1481
    %v1949 = vpop.f32.mrb[0].mxu0
    %v1950 = vadd.f32 0.0, %v1949
    %v1951 = vpop.f32.mrb[0].mxu0
    %v1952 = vadd.f32 0.0, %v1951
    %1953 = vmatprep.mubr.f32.mxu0 %v1484
    %1954 = vmatmul.mubr.f32.gmra.mrb[0].mxu0 %v1483
    %v1955 = vpop.f32.mrb[0].mxu0
    %v1956 = vadd.f32 0.0, %v1955
    %v1957 = vpop.f32.mrb[0].mxu0
    %v1958 = vadd.f32 0.0, %v1957
    %1959 = vmatprep.mubr.f32.mxu0 %v1486
    %1960 = vmatmul.mubr.f32.gmra.mrb[0].mxu0 %v1485
    %v1961 = vpop.f32.mrb[0].mxu0
    %v1962 = vadd.f32 0.0, %v1961
    %v1963 = vpop.f32.mrb[0].mxu0
    %v1964 = vadd.f32 0.0, %v1963
    %1965 = vmatprep.mubr.f32.mxu0 %v1488
    %1966 = vmatmul.mubr.f32.gmra.mrb[0].mxu0 %v1487
    %v1967 = vpop.f32.mrb[0].mxu0
    %v1968 = vadd.f32 0.0, %v1967
    %v1969 = vpop.f32.mrb[0].mxu0
    %v1970 = vadd.f32 0.0, %v1969
    %1971 = vdwg.mxu0
    %1972 = vmatprep.subr.mxu0 %v1208
    %1973 = vmatpush1.msra.mxu0 %v1207
    %1974 = vmatprep.subr.mxu0 %v1216
    %1975 = vmatpush1.msra.mxu0 %v1215
    %1976 = vmatprep.subr.mxu0 %v1224
    %1977 = vmatpush1.msra.mxu0 %v1223
    %1978 = vmatprep.subr.mxu0 %v1232
    %1979 = vmatpush1.msra.mxu0 %v1231
    %1980 = vmatprep.subr.mxu0 %v1240
    %1981 = vmatpush1.msra.mxu0 %v1239
    %1982 = vmatprep.subr.mxu0 %v1248
    %1983 = vmatpush1.msra.mxu0 %v1247
    %1984 = vmatprep.subr.mxu0 %v1256
    %1985 = vmatpush1.msra.mxu0 %v1255
    %1986 = vmatprep.subr.mxu0 %v1264
    %1987 = vmatpush1.msra.mxu0 %v1263
    %1988 = vmatprep.subr.mxu0 %v1272
    %1989 = vmatpush1.msra.mxu0 %v1271
    %1990 = vmatprep.subr.mxu0 %v1280
    %1991 = vmatpush1.msra.mxu0 %v1279
    %1992 = vmatprep.subr.mxu0 %v1288
    %1993 = vmatpush1.msra.mxu0 %v1287
    %1994 = vmatprep.subr.mxu0 %v1296
    %1995 = vmatpush1.msra.mxu0 %v1295
    %1996 = vmatprep.subr.mxu0 %v1304
    %1997 = vmatpush1.msra.mxu0 %v1303
    %1998 = vmatprep.subr.mxu0 %v1312
    %1999 = vmatpush1.msra.mxu0 %v1311
    %2000 = vmatprep.subr.mxu0 %v1320
    %2001 = vmatpush1.msra.mxu0 %v1319
    %2002 = vmatprep.subr.mxu0 %v1328
    %2003 = vmatpush1.msra.mxu0 %v1327
    %2004 = vmatprep.subr.mxu0 %v1336
    %2005 = vmatpush1.msra.mxu0 %v1335
    %2006 = vmatprep.subr.mxu0 %v1344
    %2007 = vmatpush1.msra.mxu0 %v1343
    %2008 = vmatprep.subr.mxu0 %v1352
    %2009 = vmatpush1.msra.mxu0 %v1351
    %2010 = vmatprep.subr.mxu0 %v1360
    %2011 = vmatpush1.msra.mxu0 %v1359
    %2012 = vmatprep.subr.mxu0 %v1368
    %2013 = vmatpush1.msra.mxu0 %v1367
    %2014 = vmatprep.subr.mxu0 %v1376
    %2015 = vmatpush1.msra.mxu0 %v1375
    %2016 = vmatprep.subr.mxu0 %v1384
    %2017 = vmatpush1.msra.mxu0 %v1383
    %2018 = vmatprep.subr.mxu0 %v1392
    %2019 = vmatpush1.msra.mxu0 %v1391
    %2020 = vmatprep.subr.mxu0 %v1400
    %2021 = vmatpush1.msra.mxu0 %v1399
    %2022 = vmatprep.subr.mxu0 %v1408
    %2023 = vmatpush1.msra.mxu0 %v1407
    %2024 = vmatprep.subr.mxu0 %v1416
    %2025 = vmatpush1.msra.mxu0 %v1415
    %2026 = vmatprep.subr.mxu0 %v1424
    %2027 = vmatpush1.msra.mxu0 %v1423
    %2028 = vmatprep.subr.mxu0 %v1432
    %2029 = vmatpush1.msra.mxu0 %v1431
    %2030 = vmatprep.subr.mxu0 %v1440
    %2031 = vmatpush1.msra.mxu0 %v1439
    %2032 = vmatprep.subr.mxu0 %v1448
    %2033 = vmatpush1.msra.mxu0 %v1447
    %2034 = vmatprep.subr.mxu0 %v1456
    %2035 = vmatpush1.msra.mxu0 %v1455
    %2036 = vmatprep.mubr.f32.mxu0 %v1458
    %2037 = vmatmul.mubr.f32.gmra.mrb[0].mxu0 %v1457
    %v2038 = vpop.f32.mrb[0].mxu0
    %v2039 = vadd.f32 0.0, %v2038
    %v2040 = vpop.f32.mrb[0].mxu0
    %v2041 = vadd.f32 0.0, %v2040
    %2042 = vmatprep.mubr.f32.mxu0 %v1460
    %2043 = vmatmul.mubr.f32.gmra.mrb[0].mxu0 %v1459
    %v2044 = vpop.f32.mrb[0].mxu0
    %v2045 = vadd.f32 0.0, %v2044
    %v2046 = vpop.f32.mrb[0].mxu0
    %v2047 = vadd.f32 0.0, %v2046
    %2048 = vmatprep.mubr.f32.mxu0 %v1462
    %2049 = vmatmul.mubr.f32.gmra.mrb[0].mxu0 %v1461
    %v2050 = vpop.f32.mrb[0].mxu0
    %v2051 = vadd.f32 0.0, %v2050
    %v2052 = vpop.f32.mrb[0].mxu0
    %v2053 = vadd.f32 0.0, %v2052
    %2054 = vmatprep.mubr.f32.mxu0 %v1464
    %2055 = vmatmul.mubr.f32.gmra.mrb[0].mxu0 %v1463
    %v2056 = vpop.f32.mrb[0].mxu0
    %v2057 = vadd.f32 0.0, %v2056
    %v2058 = vpop.f32.mrb[0].mxu0
    %v2059 = vadd.f32 0.0, %v2058
    %2060 = vmatprep.mubr.f32.mxu0 %v1466
    %2061 = vmatmul.mubr.f32.gmra.mrb[0].mxu0 %v1465
    %v2062 = vpop.f32.mrb[0].mxu0
    %v2063 = vadd.f32 0.0, %v2062
    %v2064 = vpop.f32.mrb[0].mxu0
    %v2065 = vadd.f32 0.0, %v2064
    %2066 = vmatprep.mubr.f32.mxu0 %v1468
    %2067 = vmatmul.mubr.f32.gmra.mrb[0].mxu0 %v1467
    %v2068 = vpop.f32.mrb[0].mxu0
    %v2069 = vadd.f32 0.0, %v2068
    %v2070 = vpop.f32.mrb[0].mxu0
    %v2071 = vadd.f32 0.0, %v2070
    %2072 = vmatprep.mubr.f32.mxu0 %v1470
    %2073 = vmatmul.mubr.f32.gmra.mrb[0].mxu0 %v1469
    %v2074 = vpop.f32.mrb[0].mxu0
    %v2075 = vadd.f32 0.0, %v2074
    %v2076 = vpop.f32.mrb[0].mxu0
    %v2077 = vadd.f32 0.0, %v2076
    %2078 = vmatprep.mubr.f32.mxu0 %v1472
    %2079 = vmatmul.mubr.f32.gmra.mrb[0].mxu0 %v1471
    %v2080 = vpop.f32.mrb[0].mxu0
    %v2081 = vadd.f32 0.0, %v2080
    %v2082 = vpop.f32.mrb[0].mxu0
    %v2083 = vadd.f32 0.0, %v2082
    %2084 = vmatprep.mubr.f32.mxu0 %v1474
    %2085 = vmatmul.mubr.f32.gmra.mrb[0].mxu0 %v1473
    %v2086 = vpop.f32.mrb[0].mxu0
    %v2087 = vadd.f32 0.0, %v2086
    %v2088 = vpop.f32.mrb[0].mxu0
    %v2089 = vadd.f32 0.0, %v2088
    %2090 = vmatprep.mubr.f32.mxu0 %v1476
    %2091 = vmatmul.mubr.f32.gmra.mrb[0].mxu0 %v1475
    %v2092 = vpop.f32.mrb[0].mxu0
    %v2093 = vadd.f32 0.0, %v2092
    %v2094 = vpop.f32.mrb[0].mxu0
    %v2095 = vadd.f32 0.0, %v2094
    %2096 = vmatprep.mubr.f32.mxu0 %v1478
    %2097 = vmatmul.mubr.f32.gmra.mrb[0].mxu0 %v1477
    %v2098 = vpop.f32.mrb[0].mxu0
    %v2099 = vadd.f32 0.0, %v2098
    %v2100 = vpop.f32.mrb[0].mxu0
    %v2101 = vadd.f32 0.0, %v2100
    %2102 = vmatprep.mubr.f32.mxu0 %v1480
    %2103 = vmatmul.mubr.f32.gmra.mrb[0].mxu0 %v1479
    %v2104 = vpop.f32.mrb[0].mxu0
    %v2105 = vadd.f32 0.0, %v2104
    %v2106 = vpop.f32.mrb[0].mxu0
    %v2107 = vadd.f32 0.0, %v2106
    %2108 = vmatprep.mubr.f32.mxu0 %v1482
    %2109 = vmatmul.mubr.f32.gmra.mrb[0].mxu0 %v1481
    %v2110 = vpop.f32.mrb[0].mxu0
    %v2111 = vadd.f32 0.0, %v2110
    %v2112 = vpop.f32.mrb[0].mxu0
    %v2113 = vadd.f32 0.0, %v2112
    %2114 = vmatprep.mubr.f32.mxu0 %v1484
    %2115 = vmatmul.mubr.f32.gmra.mrb[0].mxu0 %v1483
    %v2116 = vpop.f32.mrb[0].mxu0
    %v2117 = vadd.f32 0.0, %v2116
    %v2118 = vpop.f32.mrb[0].mxu0
    %v2119 = vadd.f32 0.0, %v2118
    %2120 = vmatprep.mubr.f32.mxu0 %v1486
    %2121 = vmatmul.mubr.f32.gmra.mrb[0].mxu0 %v1485
    %v2122 = vpop.f32.mrb[0].mxu0
    %v2123 = vadd.f32 0.0, %v2122
    %v2124 = vpop.f32.mrb[0].mxu0
    %v2125 = vadd.f32 0.0, %v2124
    %2126 = vmatprep.mubr.f32.mxu0 %v1488
    %2127 = vmatmul.mubr.f32.gmra.mrb[0].mxu0 %v1487
    %v2128 = vpop.f32.mrb[0].mxu0
    %v2129 = vadd.f32 0.0, %v2128
    %v2130 = vpop.f32.mrb[0].mxu0
    %v2131 = vadd.f32 0.0, %v2130
    %2132 = vdwg.mxu0
    %v2133 = vld [vmem:[#allocation5] sm:$0xff]
    %v2134 = vld [vmem:[#allocation5 + $0x8] sm:$0xff]
    %v2135 = vld [vmem:[#allocation5 + $0x10] sm:$0xff]
    %v2136 = vld [vmem:[#allocation5 + $0x18] sm:$0xff]
    %v2137 = vld [vmem:[#allocation5 + $0x20] sm:$0xff]
    %v2138 = vld [vmem:[#allocation5 + $0x28] sm:$0xff]
    %v2139 = vld [vmem:[#allocation5 + $0x30] sm:$0xff]
    %v2140 = vld [vmem:[#allocation5 + $0x38] sm:$0xff]
    %v2141 = vld [vmem:[#allocation5 + $0x40] sm:$0xff]
    %v2142 = vld [vmem:[#allocation5 + $0x48] sm:$0xff]
    %v2143 = vld [vmem:[#allocation5 + $0x50] sm:$0xff]
    %v2144 = vld [vmem:[#allocation5 + $0x58] sm:$0xff]
    %v2145 = vld [vmem:[#allocation5 + $0x60] sm:$0xff]
    %v2146 = vld [vmem:[#allocation5 + $0x68] sm:$0xff]
    %v2147 = vld [vmem:[#allocation5 + $0x70] sm:$0xff]
    %v2148 = vld [vmem:[#allocation5 + $0x78] sm:$0xff]
    %v2149 = vld [vmem:[#allocation5 + $0x80] sm:$0xff]
    %v2150 = vld [vmem:[#allocation5 + $0x88] sm:$0xff]
    %v2151 = vld [vmem:[#allocation5 + $0x90] sm:$0xff]
    %v2152 = vld [vmem:[#allocation5 + $0x98] sm:$0xff]
    %v2153 = vld [vmem:[#allocation5 + $0xa0] sm:$0xff]
    %v2154 = vld [vmem:[#allocation5 + $0xa8] sm:$0xff]
    %v2155 = vld [vmem:[#allocation5 + $0xb0] sm:$0xff]
    %v2156 = vld [vmem:[#allocation5 + $0xb8] sm:$0xff]
    %v2157 = vld [vmem:[#allocation5 + $0xc0] sm:$0xff]
    %v2158 = vld [vmem:[#allocation5 + $0xc8] sm:$0xff]
    %v2159 = vld [vmem:[#allocation5 + $0xd0] sm:$0xff]
    %v2160 = vld [vmem:[#allocation5 + $0xd8] sm:$0xff]
    %v2161 = vld [vmem:[#allocation5 + $0xe0] sm:$0xff]
    %v2162 = vld [vmem:[#allocation5 + $0xe8] sm:$0xff]
    %v2163 = vld [vmem:[#allocation5 + $0xf0] sm:$0xff]
    %v2164 = vld [vmem:[#allocation5 + $0xf8] sm:$0xff]
    %v2165 = vld [vmem:[#allocation5 + $0x100] sm:$0xff]
    %v2166 = vld [vmem:[#allocation5 + $0x108] sm:$0xff]
    %v2167 = vld [vmem:[#allocation5 + $0x110] sm:$0xff]
    %v2168 = vld [vmem:[#allocation5 + $0x118] sm:$0xff]
    %v2169 = vld [vmem:[#allocation5 + $0x120] sm:$0xff]
    %v2170 = vld [vmem:[#allocation5 + $0x128] sm:$0xff]
    %v2171 = vld [vmem:[#allocation5 + $0x130] sm:$0xff]
    %v2172 = vld [vmem:[#allocation5 + $0x138] sm:$0xff]
    %v2173 = vld [vmem:[#allocation5 + $0x140] sm:$0xff]
    %v2174 = vld [vmem:[#allocation5 + $0x148] sm:$0xff]
    %v2175 = vld [vmem:[#allocation5 + $0x150] sm:$0xff]
    %v2176 = vld [vmem:[#allocation5 + $0x158] sm:$0xff]
    %v2177 = vld [vmem:[#allocation5 + $0x160] sm:$0xff]
    %v2178 = vld [vmem:[#allocation5 + $0x168] sm:$0xff]
    %v2179 = vld [vmem:[#allocation5 + $0x170] sm:$0xff]
    %v2180 = vld [vmem:[#allocation5 + $0x178] sm:$0xff]
    %v2181 = vld [vmem:[#allocation5 + $0x180] sm:$0xff]
    %v2182 = vld [vmem:[#allocation5 + $0x188] sm:$0xff]
    %v2183 = vld [vmem:[#allocation5 + $0x190] sm:$0xff]
    %v2184 = vld [vmem:[#allocation5 + $0x198] sm:$0xff]
    %v2185 = vld [vmem:[#allocation5 + $0x1a0] sm:$0xff]
    %v2186 = vld [vmem:[#allocation5 + $0x1a8] sm:$0xff]
    %v2187 = vld [vmem:[#allocation5 + $0x1b0] sm:$0xff]
    %v2188 = vld [vmem:[#allocation5 + $0x1b8] sm:$0xff]
    %v2189 = vld [vmem:[#allocation5 + $0x1c0] sm:$0xff]
    %v2190 = vld [vmem:[#allocation5 + $0x1c8] sm:$0xff]
    %v2191 = vld [vmem:[#allocation5 + $0x1d0] sm:$0xff]
    %v2192 = vld [vmem:[#allocation5 + $0x1d8] sm:$0xff]
    %v2193 = vld [vmem:[#allocation5 + $0x1e0] sm:$0xff]
    %v2194 = vld [vmem:[#allocation5 + $0x1e8] sm:$0xff]
    %v2195 = vld [vmem:[#allocation5 + $0x1f0] sm:$0xff]
    %v2196 = vld [vmem:[#allocation5 + $0x1f8] sm:$0xff]
    %v2197 = vld [vmem:[#allocation5 + $0x200] sm:$0xff]
    %v2198 = vld [vmem:[#allocation5 + $0x208] sm:$0xff]
    %v2199 = vld [vmem:[#allocation5 + $0x210] sm:$0xff]
    %v2200 = vld [vmem:[#allocation5 + $0x218] sm:$0xff]
    %v2201 = vld [vmem:[#allocation5 + $0x220] sm:$0xff]
    %v2202 = vld [vmem:[#allocation5 + $0x228] sm:$0xff]
    %v2203 = vld [vmem:[#allocation5 + $0x230] sm:$0xff]
    %v2204 = vld [vmem:[#allocation5 + $0x238] sm:$0xff]
    %v2205 = vld [vmem:[#allocation5 + $0x240] sm:$0xff]
    %v2206 = vld [vmem:[#allocation5 + $0x248] sm:$0xff]
    %v2207 = vld [vmem:[#allocation5 + $0x250] sm:$0xff]
    %v2208 = vld [vmem:[#allocation5 + $0x258] sm:$0xff]
    %v2209 = vld [vmem:[#allocation5 + $0x260] sm:$0xff]
    %v2210 = vld [vmem:[#allocation5 + $0x268] sm:$0xff]
    %v2211 = vld [vmem:[#allocation5 + $0x270] sm:$0xff]
    %v2212 = vld [vmem:[#allocation5 + $0x278] sm:$0xff]
    %v2213 = vld [vmem:[#allocation5 + $0x280] sm:$0xff]
    %v2214 = vld [vmem:[#allocation5 + $0x288] sm:$0xff]
    %v2215 = vld [vmem:[#allocation5 + $0x290] sm:$0xff]
    %v2216 = vld [vmem:[#allocation5 + $0x298] sm:$0xff]
    %v2217 = vld [vmem:[#allocation5 + $0x2a0] sm:$0xff]
    %v2218 = vld [vmem:[#allocation5 + $0x2a8] sm:$0xff]
    %v2219 = vld [vmem:[#allocation5 + $0x2b0] sm:$0xff]
    %v2220 = vld [vmem:[#allocation5 + $0x2b8] sm:$0xff]
    %v2221 = vld [vmem:[#allocation5 + $0x2c0] sm:$0xff]
    %v2222 = vld [vmem:[#allocation5 + $0x2c8] sm:$0xff]
    %v2223 = vld [vmem:[#allocation5 + $0x2d0] sm:$0xff]
    %v2224 = vld [vmem:[#allocation5 + $0x2d8] sm:$0xff]
    %v2225 = vld [vmem:[#allocation5 + $0x2e0] sm:$0xff]
    %v2226 = vld [vmem:[#allocation5 + $0x2e8] sm:$0xff]
    %v2227 = vld [vmem:[#allocation5 + $0x2f0] sm:$0xff]
    %v2228 = vld [vmem:[#allocation5 + $0x2f8] sm:$0xff]
    %v2229 = vld [vmem:[#allocation5 + $0x300] sm:$0xff]
    %v2230 = vld [vmem:[#allocation5 + $0x308] sm:$0xff]
    %v2231 = vld [vmem:[#allocation5 + $0x310] sm:$0xff]
    %v2232 = vld [vmem:[#allocation5 + $0x318] sm:$0xff]
    %v2233 = vld [vmem:[#allocation5 + $0x320] sm:$0xff]
    %v2234 = vld [vmem:[#allocation5 + $0x328] sm:$0xff]
    %v2235 = vld [vmem:[#allocation5 + $0x330] sm:$0xff]
    %v2236 = vld [vmem:[#allocation5 + $0x338] sm:$0xff]
    %v2237 = vld [vmem:[#allocation5 + $0x340] sm:$0xff]
    %v2238 = vld [vmem:[#allocation5 + $0x348] sm:$0xff]
    %v2239 = vld [vmem:[#allocation5 + $0x350] sm:$0xff]
    %v2240 = vld [vmem:[#allocation5 + $0x358] sm:$0xff]
    %v2241 = vld [vmem:[#allocation5 + $0x360] sm:$0xff]
    %v2242 = vld [vmem:[#allocation5 + $0x368] sm:$0xff]
    %v2243 = vld [vmem:[#allocation5 + $0x370] sm:$0xff]
    %v2244 = vld [vmem:[#allocation5 + $0x378] sm:$0xff]
    %v2245 = vld [vmem:[#allocation5 + $0x380] sm:$0xff]
    %v2246 = vld [vmem:[#allocation5 + $0x388] sm:$0xff]
    %v2247 = vld [vmem:[#allocation5 + $0x390] sm:$0xff]
    %v2248 = vld [vmem:[#allocation5 + $0x398] sm:$0xff]
    %v2249 = vld [vmem:[#allocation5 + $0x3a0] sm:$0xff]
    %v2250 = vld [vmem:[#allocation5 + $0x3a8] sm:$0xff]
    %v2251 = vld [vmem:[#allocation5 + $0x3b0] sm:$0xff]
    %v2252 = vld [vmem:[#allocation5 + $0x3b8] sm:$0xff]
    %v2253 = vld [vmem:[#allocation5 + $0x3c0] sm:$0xff]
    %v2254 = vld [vmem:[#allocation5 + $0x3c8] sm:$0xff]
    %v2255 = vld [vmem:[#allocation5 + $0x3d0] sm:$0xff]
    %v2256 = vld [vmem:[#allocation5 + $0x3d8] sm:$0xff]
    %v2257 = vld [vmem:[#allocation5 + $0x3e0] sm:$0xff]
    %v2258 = vld [vmem:[#allocation5 + $0x3e8] sm:$0xff]
    %v2259 = vld [vmem:[#allocation5 + $0x3f0] sm:$0xff]
    %v2260 = vld [vmem:[#allocation5 + $0x3f8] sm:$0xff]
    %v2261 = vld [vmem:[#allocation5 + $0x400] sm:$0xff]
    %v2262 = vld [vmem:[#allocation5 + $0x408] sm:$0xff]
    %v2263 = vld [vmem:[#allocation5 + $0x410] sm:$0xff]
    %v2264 = vld [vmem:[#allocation5 + $0x418] sm:$0xff]
    %v2265 = vld [vmem:[#allocation5 + $0x420] sm:$0xff]
    %v2266 = vld [vmem:[#allocation5 + $0x428] sm:$0xff]
    %v2267 = vld [vmem:[#allocation5 + $0x430] sm:$0xff]
    %v2268 = vld [vmem:[#allocation5 + $0x438] sm:$0xff]
    %v2269 = vld [vmem:[#allocation5 + $0x440] sm:$0xff]
    %v2270 = vld [vmem:[#allocation5 + $0x448] sm:$0xff]
    %v2271 = vld [vmem:[#allocation5 + $0x450] sm:$0xff]
    %v2272 = vld [vmem:[#allocation5 + $0x458] sm:$0xff]
    %v2273 = vld [vmem:[#allocation5 + $0x460] sm:$0xff]
    %v2274 = vld [vmem:[#allocation5 + $0x468] sm:$0xff]
    %v2275 = vld [vmem:[#allocation5 + $0x470] sm:$0xff]
    %v2276 = vld [vmem:[#allocation5 + $0x478] sm:$0xff]
    %v2277 = vld [vmem:[#allocation5 + $0x480] sm:$0xff]
    %v2278 = vld [vmem:[#allocation5 + $0x488] sm:$0xff]
    %v2279 = vld [vmem:[#allocation5 + $0x490] sm:$0xff]
    %v2280 = vld [vmem:[#allocation5 + $0x498] sm:$0xff]
    %v2281 = vld [vmem:[#allocation5 + $0x4a0] sm:$0xff]
    %v2282 = vld [vmem:[#allocation5 + $0x4a8] sm:$0xff]
    %v2283 = vld [vmem:[#allocation5 + $0x4b0] sm:$0xff]
    %v2284 = vld [vmem:[#allocation5 + $0x4b8] sm:$0xff]
    %v2285 = vld [vmem:[#allocation5 + $0x4c0] sm:$0xff]
    %v2286 = vld [vmem:[#allocation5 + $0x4c8] sm:$0xff]
    %v2287 = vld [vmem:[#allocation5 + $0x4d0] sm:$0xff]
    %v2288 = vld [vmem:[#allocation5 + $0x4d8] sm:$0xff]
    %v2289 = vld [vmem:[#allocation5 + $0x4e0] sm:$0xff]
    %v2290 = vld [vmem:[#allocation5 + $0x4e8] sm:$0xff]
    %v2291 = vld [vmem:[#allocation5 + $0x4f0] sm:$0xff]
    %v2292 = vld [vmem:[#allocation5 + $0x4f8] sm:$0xff]
    %v2293 = vld [vmem:[#allocation5 + $0x500] sm:$0xff]
    %v2294 = vld [vmem:[#allocation5 + $0x508] sm:$0xff]
    %v2295 = vld [vmem:[#allocation5 + $0x510] sm:$0xff]
    %v2296 = vld [vmem:[#allocation5 + $0x518] sm:$0xff]
    %v2297 = vld [vmem:[#allocation5 + $0x520] sm:$0xff]
    %v2298 = vld [vmem:[#allocation5 + $0x528] sm:$0xff]
    %v2299 = vld [vmem:[#allocation5 + $0x530] sm:$0xff]
    %v2300 = vld [vmem:[#allocation5 + $0x538] sm:$0xff]
    %v2301 = vld [vmem:[#allocation5 + $0x540] sm:$0xff]
    %v2302 = vld [vmem:[#allocation5 + $0x548] sm:$0xff]
    %v2303 = vld [vmem:[#allocation5 + $0x550] sm:$0xff]
    %v2304 = vld [vmem:[#allocation5 + $0x558] sm:$0xff]
    %v2305 = vld [vmem:[#allocation5 + $0x560] sm:$0xff]
    %v2306 = vld [vmem:[#allocation5 + $0x568] sm:$0xff]
    %v2307 = vld [vmem:[#allocation5 + $0x570] sm:$0xff]
    %v2308 = vld [vmem:[#allocation5 + $0x578] sm:$0xff]
    %v2309 = vld [vmem:[#allocation5 + $0x580] sm:$0xff]
    %v2310 = vld [vmem:[#allocation5 + $0x588] sm:$0xff]
    %v2311 = vld [vmem:[#allocation5 + $0x590] sm:$0xff]
    %v2312 = vld [vmem:[#allocation5 + $0x598] sm:$0xff]
    %v2313 = vld [vmem:[#allocation5 + $0x5a0] sm:$0xff]
    %v2314 = vld [vmem:[#allocation5 + $0x5a8] sm:$0xff]
    %v2315 = vld [vmem:[#allocation5 + $0x5b0] sm:$0xff]
    %v2316 = vld [vmem:[#allocation5 + $0x5b8] sm:$0xff]
    %v2317 = vld [vmem:[#allocation5 + $0x5c0] sm:$0xff]
    %v2318 = vld [vmem:[#allocation5 + $0x5c8] sm:$0xff]
    %v2319 = vld [vmem:[#allocation5 + $0x5d0] sm:$0xff]
    %v2320 = vld [vmem:[#allocation5 + $0x5d8] sm:$0xff]
    %v2321 = vld [vmem:[#allocation5 + $0x5e0] sm:$0xff]
    %v2322 = vld [vmem:[#allocation5 + $0x5e8] sm:$0xff]
    %v2323 = vld [vmem:[#allocation5 + $0x5f0] sm:$0xff]
    %v2324 = vld [vmem:[#allocation5 + $0x5f8] sm:$0xff]
    %v2325 = vld [vmem:[#allocation5 + $0x600] sm:$0xff]
    %v2326 = vld [vmem:[#allocation5 + $0x608] sm:$0xff]
    %v2327 = vld [vmem:[#allocation5 + $0x610] sm:$0xff]
    %v2328 = vld [vmem:[#allocation5 + $0x618] sm:$0xff]
    %v2329 = vld [vmem:[#allocation5 + $0x620] sm:$0xff]
    %v2330 = vld [vmem:[#allocation5 + $0x628] sm:$0xff]
    %v2331 = vld [vmem:[#allocation5 + $0x630] sm:$0xff]
    %v2332 = vld [vmem:[#allocation5 + $0x638] sm:$0xff]
    %v2333 = vld [vmem:[#allocation5 + $0x640] sm:$0xff]
    %v2334 = vld [vmem:[#allocation5 + $0x648] sm:$0xff]
    %v2335 = vld [vmem:[#allocation5 + $0x650] sm:$0xff]
    %v2336 = vld [vmem:[#allocation5 + $0x658] sm:$0xff]
    %v2337 = vld [vmem:[#allocation5 + $0x660] sm:$0xff]
    %v2338 = vld [vmem:[#allocation5 + $0x668] sm:$0xff]
    %v2339 = vld [vmem:[#allocation5 + $0x670] sm:$0xff]
    %v2340 = vld [vmem:[#allocation5 + $0x678] sm:$0xff]
    %v2341 = vld [vmem:[#allocation5 + $0x680] sm:$0xff]
    %v2342 = vld [vmem:[#allocation5 + $0x688] sm:$0xff]
    %v2343 = vld [vmem:[#allocation5 + $0x690] sm:$0xff]
    %v2344 = vld [vmem:[#allocation5 + $0x698] sm:$0xff]
    %v2345 = vld [vmem:[#allocation5 + $0x6a0] sm:$0xff]
    %v2346 = vld [vmem:[#allocation5 + $0x6a8] sm:$0xff]
    %v2347 = vld [vmem:[#allocation5 + $0x6b0] sm:$0xff]
    %v2348 = vld [vmem:[#allocation5 + $0x6b8] sm:$0xff]
    %v2349 = vld [vmem:[#allocation5 + $0x6c0] sm:$0xff]
    %v2350 = vld [vmem:[#allocation5 + $0x6c8] sm:$0xff]
    %v2351 = vld [vmem:[#allocation5 + $0x6d0] sm:$0xff]
    %v2352 = vld [vmem:[#allocation5 + $0x6d8] sm:$0xff]
    %v2353 = vld [vmem:[#allocation5 + $0x6e0] sm:$0xff]
    %v2354 = vld [vmem:[#allocation5 + $0x6e8] sm:$0xff]
    %v2355 = vld [vmem:[#allocation5 + $0x6f0] sm:$0xff]
    %v2356 = vld [vmem:[#allocation5 + $0x6f8] sm:$0xff]
    %v2357 = vld [vmem:[#allocation5 + $0x700] sm:$0xff]
    %v2358 = vld [vmem:[#allocation5 + $0x708] sm:$0xff]
    %v2359 = vld [vmem:[#allocation5 + $0x710] sm:$0xff]
    %v2360 = vld [vmem:[#allocation5 + $0x718] sm:$0xff]
    %v2361 = vld [vmem:[#allocation5 + $0x720] sm:$0xff]
    %v2362 = vld [vmem:[#allocation5 + $0x728] sm:$0xff]
    %v2363 = vld [vmem:[#allocation5 + $0x730] sm:$0xff]
    %v2364 = vld [vmem:[#allocation5 + $0x738] sm:$0xff]
    %v2365 = vld [vmem:[#allocation5 + $0x740] sm:$0xff]
    %v2366 = vld [vmem:[#allocation5 + $0x748] sm:$0xff]
    %v2367 = vld [vmem:[#allocation5 + $0x750] sm:$0xff]
    %v2368 = vld [vmem:[#allocation5 + $0x758] sm:$0xff]
    %v2369 = vld [vmem:[#allocation5 + $0x760] sm:$0xff]
    %v2370 = vld [vmem:[#allocation5 + $0x768] sm:$0xff]
    %v2371 = vld [vmem:[#allocation5 + $0x770] sm:$0xff]
    %v2372 = vld [vmem:[#allocation5 + $0x778] sm:$0xff]
    %v2373 = vld [vmem:[#allocation5 + $0x780] sm:$0xff]
    %v2374 = vld [vmem:[#allocation5 + $0x788] sm:$0xff]
    %v2375 = vld [vmem:[#allocation5 + $0x790] sm:$0xff]
    %v2376 = vld [vmem:[#allocation5 + $0x798] sm:$0xff]
    %v2377 = vld [vmem:[#allocation5 + $0x7a0] sm:$0xff]
    %v2378 = vld [vmem:[#allocation5 + $0x7a8] sm:$0xff]
    %v2379 = vld [vmem:[#allocation5 + $0x7b0] sm:$0xff]
    %v2380 = vld [vmem:[#allocation5 + $0x7b8] sm:$0xff]
    %v2381 = vld [vmem:[#allocation5 + $0x7c0] sm:$0xff]
    %v2382 = vld [vmem:[#allocation5 + $0x7c8] sm:$0xff]
    %v2383 = vld [vmem:[#allocation5 + $0x7d0] sm:$0xff]
    %v2384 = vld [vmem:[#allocation5 + $0x7d8] sm:$0xff]
    %v2385 = vld [vmem:[#allocation5 + $0x7e0] sm:$0xff]
    %v2386 = vld [vmem:[#allocation5 + $0x7e8] sm:$0xff]
    %v2387 = vld [vmem:[#allocation5 + $0x7f0] sm:$0xff]
    %v2388 = vld [vmem:[#allocation5 + $0x7f8] sm:$0xff]
    %2389 = vmatprep.subr.mxu0 %v2134
    %2390 = vmatpush1.msra.mxu0 %v2133
    %2391 = vmatprep.subr.mxu0 %v2136
    %2392 = vmatpush1.msra.mxu0 %v2135
    %2393 = vmatprep.subr.mxu0 %v2138
    %2394 = vmatpush1.msra.mxu0 %v2137
    %2395 = vmatprep.subr.mxu0 %v2140
    %2396 = vmatpush1.msra.mxu0 %v2139
    %2397 = vmatprep.subr.mxu0 %v2142
    %2398 = vmatpush1.msra.mxu0 %v2141
    %2399 = vmatprep.subr.mxu0 %v2144
    %2400 = vmatpush1.msra.mxu0 %v2143
    %2401 = vmatprep.subr.mxu0 %v2146
    %2402 = vmatpush1.msra.mxu0 %v2145
    %2403 = vmatprep.subr.mxu0 %v2148
    %2404 = vmatpush1.msra.mxu0 %v2147
    %2405 = vmatprep.subr.mxu0 %v2150
    %2406 = vmatpush1.msra.mxu0 %v2149
    %2407 = vmatprep.subr.mxu0 %v2152
    %2408 = vmatpush1.msra.mxu0 %v2151
    %2409 = vmatprep.subr.mxu0 %v2154
    %2410 = vmatpush1.msra.mxu0 %v2153
    %2411 = vmatprep.subr.mxu0 %v2156
    %2412 = vmatpush1.msra.mxu0 %v2155
    %2413 = vmatprep.subr.mxu0 %v2158
    %2414 = vmatpush1.msra.mxu0 %v2157
    %2415 = vmatprep.subr.mxu0 %v2160
    %2416 = vmatpush1.msra.mxu0 %v2159
    %2417 = vmatprep.subr.mxu0 %v2162
    %2418 = vmatpush1.msra.mxu0 %v2161
    %2419 = vmatprep.subr.mxu0 %v2164
    %2420 = vmatpush1.msra.mxu0 %v2163
    %2421 = vmatprep.subr.mxu0 %v2166
    %2422 = vmatpush1.msra.mxu0 %v2165
    %2423 = vmatprep.subr.mxu0 %v2168
    %2424 = vmatpush1.msra.mxu0 %v2167
    %2425 = vmatprep.subr.mxu0 %v2170
    %2426 = vmatpush1.msra.mxu0 %v2169
    %2427 = vmatprep.subr.mxu0 %v2172
    %2428 = vmatpush1.msra.mxu0 %v2171
    %2429 = vmatprep.subr.mxu0 %v2174
    %2430 = vmatpush1.msra.mxu0 %v2173
    %2431 = vmatprep.subr.mxu0 %v2176
    %2432 = vmatpush1.msra.mxu0 %v2175
    %2433 = vmatprep.subr.mxu0 %v2178
    %2434 = vmatpush1.msra.mxu0 %v2177
    %2435 = vmatprep.subr.mxu0 %v2180
    %2436 = vmatpush1.msra.mxu0 %v2179
    %2437 = vmatprep.subr.mxu0 %v2182
    %2438 = vmatpush1.msra.mxu0 %v2181
    %2439 = vmatprep.subr.mxu0 %v2184
    %2440 = vmatpush1.msra.mxu0 %v2183
    %2441 = vmatprep.subr.mxu0 %v2186
    %2442 = vmatpush1.msra.mxu0 %v2185
    %2443 = vmatprep.subr.mxu0 %v2188
    %2444 = vmatpush1.msra.mxu0 %v2187
    %2445 = vmatprep.subr.mxu0 %v2190
    %2446 = vmatpush1.msra.mxu0 %v2189
    %2447 = vmatprep.subr.mxu0 %v2192
    %2448 = vmatpush1.msra.mxu0 %v2191
    %2449 = vmatprep.subr.mxu0 %v2194
    %2450 = vmatpush1.msra.mxu0 %v2193
    %2451 = vmatprep.subr.mxu0 %v2196
    %2452 = vmatpush1.msra.mxu0 %v2195
    %2453 = vmatprep.mubr.f32.mxu0 %v1558
    %2454 = vmatmul.mubr.f32.gmra.mrb[0].mxu0 %v1556
    %v2455 = vpop.f32.mrb[0].mxu0
    %v2456 = vadd.f32 0.0, %v2455
    %v2457 = vpop.f32.mrb[0].mxu0
    %v2458 = vadd.f32 0.0, %v2457
    %2459 = vmatprep.mubr.f32.mxu0 %v1564
    %2460 = vmatmul.mubr.f32.gmra.mrb[0].mxu0 %v1562
    %v2461 = vpop.f32.mrb[0].mxu0
    %v2462 = vadd.f32 0.0, %v2461
    %v2463 = vpop.f32.mrb[0].mxu0
    %v2464 = vadd.f32 0.0, %v2463
    %2465 = vmatprep.mubr.f32.mxu0 %v1570
    %2466 = vmatmul.mubr.f32.gmra.mrb[0].mxu0 %v1568
    %v2467 = vpop.f32.mrb[0].mxu0
    %v2468 = vadd.f32 0.0, %v2467
    %v2469 = vpop.f32.mrb[0].mxu0
    %v2470 = vadd.f32 0.0, %v2469
    %2471 = vmatprep.mubr.f32.mxu0 %v1576
    %2472 = vmatmul.mubr.f32.gmra.mrb[0].mxu0 %v1574
    %v2473 = vpop.f32.mrb[0].mxu0
    %v2474 = vadd.f32 0.0, %v2473
    %v2475 = vpop.f32.mrb[0].mxu0
    %v2476 = vadd.f32 0.0, %v2475
    %2477 = vmatprep.mubr.f32.mxu0 %v1582
    %2478 = vmatmul.mubr.f32.gmra.mrb[0].mxu0 %v1580
    %v2479 = vpop.f32.mrb[0].mxu0
    %v2480 = vadd.f32 0.0, %v2479
    %v2481 = vpop.f32.mrb[0].mxu0
    %v2482 = vadd.f32 0.0, %v2481
    %2483 = vmatprep.mubr.f32.mxu0 %v1588
    %2484 = vmatmul.mubr.f32.gmra.mrb[0].mxu0 %v1586
    %v2485 = vpop.f32.mrb[0].mxu0
    %v2486 = vadd.f32 0.0, %v2485
    %v2487 = vpop.f32.mrb[0].mxu0
    %v2488 = vadd.f32 0.0, %v2487
    %2489 = vmatprep.mubr.f32.mxu0 %v1594
    %2490 = vmatmul.mubr.f32.gmra.mrb[0].mxu0 %v1592
    %v2491 = vpop.f32.mrb[0].mxu0
    %v2492 = vadd.f32 0.0, %v2491
    %v2493 = vpop.f32.mrb[0].mxu0
    %v2494 = vadd.f32 0.0, %v2493
    %2495 = vmatprep.mubr.f32.mxu0 %v1600
    %2496 = vmatmul.mubr.f32.gmra.mrb[0].mxu0 %v1598
    %v2497 = vpop.f32.mrb[0].mxu0
    %v2498 = vadd.f32 0.0, %v2497
    %v2499 = vpop.f32.mrb[0].mxu0
    %v2500 = vadd.f32 0.0, %v2499
    %2501 = vmatprep.mubr.f32.mxu0 %v1606
    %2502 = vmatmul.mubr.f32.gmra.mrb[0].mxu0 %v1604
    %v2503 = vpop.f32.mrb[0].mxu0
    %v2504 = vadd.f32 0.0, %v2503
    %v2505 = vpop.f32.mrb[0].mxu0
    %v2506 = vadd.f32 0.0, %v2505
    %2507 = vmatprep.mubr.f32.mxu0 %v1612
    %2508 = vmatmul.mubr.f32.gmra.mrb[0].mxu0 %v1610
    %v2509 = vpop.f32.mrb[0].mxu0
    %v2510 = vadd.f32 0.0, %v2509
    %v2511 = vpop.f32.mrb[0].mxu0
    %v2512 = vadd.f32 0.0, %v2511
    %2513 = vmatprep.mubr.f32.mxu0 %v1618
    %2514 = vmatmul.mubr.f32.gmra.mrb[0].mxu0 %v1616
    %v2515 = vpop.f32.mrb[0].mxu0
    %v2516 = vadd.f32 0.0, %v2515
    %v2517 = vpop.f32.mrb[0].mxu0
    %v2518 = vadd.f32 0.0, %v2517
    %2519 = vmatprep.mubr.f32.mxu0 %v1624
    %2520 = vmatmul.mubr.f32.gmra.mrb[0].mxu0 %v1622
    %v2521 = vpop.f32.mrb[0].mxu0
    %v2522 = vadd.f32 0.0, %v2521
    %v2523 = vpop.f32.mrb[0].mxu0
    %v2524 = vadd.f32 0.0, %v2523
    %2525 = vmatprep.mubr.f32.mxu0 %v1630
    %2526 = vmatmul.mubr.f32.gmra.mrb[0].mxu0 %v1628
    %v2527 = vpop.f32.mrb[0].mxu0
    %v2528 = vadd.f32 0.0, %v2527
    %v2529 = vpop.f32.mrb[0].mxu0
    %v2530 = vadd.f32 0.0, %v2529
    %2531 = vmatprep.mubr.f32.mxu0 %v1636
    %2532 = vmatmul.mubr.f32.gmra.mrb[0].mxu0 %v1634
    %v2533 = vpop.f32.mrb[0].mxu0
    %v2534 = vadd.f32 0.0, %v2533
    %v2535 = vpop.f32.mrb[0].mxu0
    %v2536 = vadd.f32 0.0, %v2535
    %2537 = vmatprep.mubr.f32.mxu0 %v1642
    %2538 = vmatmul.mubr.f32.gmra.mrb[0].mxu0 %v1640
    %v2539 = vpop.f32.mrb[0].mxu0
    %v2540 = vadd.f32 0.0, %v2539
    %v2541 = vpop.f32.mrb[0].mxu0
    %v2542 = vadd.f32 0.0, %v2541
    %2543 = vmatprep.mubr.f32.mxu0 %v1648
    %2544 = vmatmul.mubr.f32.gmra.mrb[0].mxu0 %v1646
    %v2545 = vpop.f32.mrb[0].mxu0
    %v2546 = vadd.f32 0.0, %v2545
    %v2547 = vpop.f32.mrb[0].mxu0
    %v2548 = vadd.f32 0.0, %v2547
    %2549 = vdwg.mxu0
    %2550 = vmatprep.subr.mxu0 %v2198
    %2551 = vmatpush1.msra.mxu0 %v2197
    %2552 = vmatprep.subr.mxu0 %v2200
    %2553 = vmatpush1.msra.mxu0 %v2199
    %2554 = vmatprep.subr.mxu0 %v2202
    %2555 = vmatpush1.msra.mxu0 %v2201
    %2556 = vmatprep.subr.mxu0 %v2204
    %2557 = vmatpush1.msra.mxu0 %v2203
    %2558 = vmatprep.subr.mxu0 %v2206
    %2559 = vmatpush1.msra.mxu0 %v2205
    %2560 = vmatprep.subr.mxu0 %v2208
    %2561 = vmatpush1.msra.mxu0 %v2207
    %2562 = vmatprep.subr.mxu0 %v2210
    %2563 = vmatpush1.msra.mxu0 %v2209
    %2564 = vmatprep.subr.mxu0 %v2212
    %2565 = vmatpush1.msra.mxu0 %v2211
    %2566 = vmatprep.subr.mxu0 %v2214
    %2567 = vmatpush1.msra.mxu0 %v2213
    %2568 = vmatprep.subr.mxu0 %v2216
    %2569 = vmatpush1.msra.mxu0 %v2215
    %2570 = vmatprep.subr.mxu0 %v2218
    %2571 = vmatpush1.msra.mxu0 %v2217
    %2572 = vmatprep.subr.mxu0 %v2220
    %2573 = vmatpush1.msra.mxu0 %v2219
    %2574 = vmatprep.subr.mxu0 %v2222
    %2575 = vmatpush1.msra.mxu0 %v2221
    %2576 = vmatprep.subr.mxu0 %v2224
    %2577 = vmatpush1.msra.mxu0 %v2223
    %2578 = vmatprep.subr.mxu0 %v2226
    %2579 = vmatpush1.msra.mxu0 %v2225
    %2580 = vmatprep.subr.mxu0 %v2228
    %2581 = vmatpush1.msra.mxu0 %v2227
    %2582 = vmatprep.subr.mxu0 %v2230
    %2583 = vmatpush1.msra.mxu0 %v2229
    %2584 = vmatprep.subr.mxu0 %v2232
    %2585 = vmatpush1.msra.mxu0 %v2231
    %2586 = vmatprep.subr.mxu0 %v2234
    %2587 = vmatpush1.msra.mxu0 %v2233
    %2588 = vmatprep.subr.mxu0 %v2236
    %2589 = vmatpush1.msra.mxu0 %v2235
    %2590 = vmatprep.subr.mxu0 %v2238
    %2591 = vmatpush1.msra.mxu0 %v2237
    %2592 = vmatprep.subr.mxu0 %v2240
    %2593 = vmatpush1.msra.mxu0 %v2239
    %2594 = vmatprep.subr.mxu0 %v2242
    %2595 = vmatpush1.msra.mxu0 %v2241
    %2596 = vmatprep.subr.mxu0 %v2244
    %2597 = vmatpush1.msra.mxu0 %v2243
    %2598 = vmatprep.subr.mxu0 %v2246
    %2599 = vmatpush1.msra.mxu0 %v2245
    %2600 = vmatprep.subr.mxu0 %v2248
    %2601 = vmatpush1.msra.mxu0 %v2247
    %2602 = vmatprep.subr.mxu0 %v2250
    %2603 = vmatpush1.msra.mxu0 %v2249
    %2604 = vmatprep.subr.mxu0 %v2252
    %2605 = vmatpush1.msra.mxu0 %v2251
    %2606 = vmatprep.subr.mxu0 %v2254
    %2607 = vmatpush1.msra.mxu0 %v2253
    %2608 = vmatprep.subr.mxu0 %v2256
    %2609 = vmatpush1.msra.mxu0 %v2255
    %2610 = vmatprep.subr.mxu0 %v2258
    %2611 = vmatpush1.msra.mxu0 %v2257
    %2612 = vmatprep.subr.mxu0 %v2260
    %2613 = vmatpush1.msra.mxu0 %v2259
    %2614 = vmatprep.mubr.f32.mxu0 %v1719
    %2615 = vmatmul.mubr.f32.gmra.mrb[0].mxu0 %v1717
    %v2616 = vpop.f32.mrb[0].mxu0
    %v2617 = vadd.f32 %v2456, %v2616
    %v2618 = vpop.f32.mrb[0].mxu0
    %v2619 = vadd.f32 %v2458, %v2618
    %2620 = vmatprep.mubr.f32.mxu0 %v1725
    %2621 = vmatmul.mubr.f32.gmra.mrb[0].mxu0 %v1723
    %v2622 = vpop.f32.mrb[0].mxu0
    %v2623 = vadd.f32 %v2462, %v2622
    %v2624 = vpop.f32.mrb[0].mxu0
    %v2625 = vadd.f32 %v2464, %v2624
    %2626 = vmatprep.mubr.f32.mxu0 %v1731
    %2627 = vmatmul.mubr.f32.gmra.mrb[0].mxu0 %v1729
    %v2628 = vpop.f32.mrb[0].mxu0
    %v2629 = vadd.f32 %v2468, %v2628
    %v2630 = vpop.f32.mrb[0].mxu0
    %v2631 = vadd.f32 %v2470, %v2630
    %2632 = vmatprep.mubr.f32.mxu0 %v1737
    %2633 = vmatmul.mubr.f32.gmra.mrb[0].mxu0 %v1735
    %v2634 = vpop.f32.mrb[0].mxu0
    %v2635 = vadd.f32 %v2474, %v2634
    %v2636 = vpop.f32.mrb[0].mxu0
    %v2637 = vadd.f32 %v2476, %v2636
    %2638 = vmatprep.mubr.f32.mxu0 %v1743
    %2639 = vmatmul.mubr.f32.gmra.mrb[0].mxu0 %v1741
    %v2640 = vpop.f32.mrb[0].mxu0
    %v2641 = vadd.f32 %v2480, %v2640
    %v2642 = vpop.f32.mrb[0].mxu0
    %v2643 = vadd.f32 %v2482, %v2642
    %2644 = vmatprep.mubr.f32.mxu0 %v1749
    %2645 = vmatmul.mubr.f32.gmra.mrb[0].mxu0 %v1747
    %v2646 = vpop.f32.mrb[0].mxu0
    %v2647 = vadd.f32 %v2486, %v2646
    %v2648 = vpop.f32.mrb[0].mxu0
    %v2649 = vadd.f32 %v2488, %v2648
    %2650 = vmatprep.mubr.f32.mxu0 %v1755
    %2651 = vmatmul.mubr.f32.gmra.mrb[0].mxu0 %v1753
    %v2652 = vpop.f32.mrb[0].mxu0
    %v2653 = vadd.f32 %v2492, %v2652
    %v2654 = vpop.f32.mrb[0].mxu0
    %v2655 = vadd.f32 %v2494, %v2654
    %2656 = vmatprep.mubr.f32.mxu0 %v1761
    %2657 = vmatmul.mubr.f32.gmra.mrb[0].mxu0 %v1759
    %v2658 = vpop.f32.mrb[0].mxu0
    %v2659 = vadd.f32 %v2498, %v2658
    %v2660 = vpop.f32.mrb[0].mxu0
    %v2661 = vadd.f32 %v2500, %v2660
    %2662 = vmatprep.mubr.f32.mxu0 %v1767
    %2663 = vmatmul.mubr.f32.gmra.mrb[0].mxu0 %v1765
    %v2664 = vpop.f32.mrb[0].mxu0
    %v2665 = vadd.f32 %v2504, %v2664
    %v2666 = vpop.f32.mrb[0].mxu0
    %v2667 = vadd.f32 %v2506, %v2666
    %2668 = vmatprep.mubr.f32.mxu0 %v1773
    %2669 = vmatmul.mubr.f32.gmra.mrb[0].mxu0 %v1771
    %v2670 = vpop.f32.mrb[0].mxu0
    %v2671 = vadd.f32 %v2510, %v2670
    %v2672 = vpop.f32.mrb[0].mxu0
    %v2673 = vadd.f32 %v2512, %v2672
    %2674 = vmatprep.mubr.f32.mxu0 %v1779
    %2675 = vmatmul.mubr.f32.gmra.mrb[0].mxu0 %v1777
    %v2676 = vpop.f32.mrb[0].mxu0
    %v2677 = vadd.f32 %v2516, %v2676
    %v2678 = vpop.f32.mrb[0].mxu0
    %v2679 = vadd.f32 %v2518, %v2678
    %2680 = vmatprep.mubr.f32.mxu0 %v1785
    %2681 = vmatmul.mubr.f32.gmra.mrb[0].mxu0 %v1783
    %v2682 = vpop.f32.mrb[0].mxu0
    %v2683 = vadd.f32 %v2522, %v2682
    %v2684 = vpop.f32.mrb[0].mxu0
    %v2685 = vadd.f32 %v2524, %v2684
    %2686 = vmatprep.mubr.f32.mxu0 %v1791
    %2687 = vmatmul.mubr.f32.gmra.mrb[0].mxu0 %v1789
    %v2688 = vpop.f32.mrb[0].mxu0
    %v2689 = vadd.f32 %v2528, %v2688
    %v2690 = vpop.f32.mrb[0].mxu0
    %v2691 = vadd.f32 %v2530, %v2690
    %2692 = vmatprep.mubr.f32.mxu0 %v1797
    %2693 = vmatmul.mubr.f32.gmra.mrb[0].mxu0 %v1795
    %v2694 = vpop.f32.mrb[0].mxu0
    %v2695 = vadd.f32 %v2534, %v2694
    %v2696 = vpop.f32.mrb[0].mxu0
    %v2697 = vadd.f32 %v2536, %v2696
    %2698 = vmatprep.mubr.f32.mxu0 %v1803
    %2699 = vmatmul.mubr.f32.gmra.mrb[0].mxu0 %v1801
    %v2700 = vpop.f32.mrb[0].mxu0
    %v2701 = vadd.f32 %v2540, %v2700
    %v2702 = vpop.f32.mrb[0].mxu0
    %v2703 = vadd.f32 %v2542, %v2702
    %2704 = vmatprep.mubr.f32.mxu0 %v1809
    %2705 = vmatmul.mubr.f32.gmra.mrb[0].mxu0 %v1807
    %v2706 = vpop.f32.mrb[0].mxu0
    %v2707 = vadd.f32 %v2546, %v2706
    %v2708 = vpop.f32.mrb[0].mxu0
    %v2709 = vadd.f32 %v2548, %v2708
    %2710 = vdwg.mxu0
    %2711 = vmatprep.subr.mxu0 %v2262
    %2712 = vmatpush1.msra.mxu0 %v2261
    %2713 = vmatprep.subr.mxu0 %v2264
    %2714 = vmatpush1.msra.mxu0 %v2263
    %2715 = vmatprep.subr.mxu0 %v2266
    %2716 = vmatpush1.msra.mxu0 %v2265
    %2717 = vmatprep.subr.mxu0 %v2268
    %2718 = vmatpush1.msra.mxu0 %v2267
    %2719 = vmatprep.subr.mxu0 %v2270
    %2720 = vmatpush1.msra.mxu0 %v2269
    %2721 = vmatprep.subr.mxu0 %v2272
    %2722 = vmatpush1.msra.mxu0 %v2271
    %2723 = vmatprep.subr.mxu0 %v2274
    %2724 = vmatpush1.msra.mxu0 %v2273
    %2725 = vmatprep.subr.mxu0 %v2276
    %2726 = vmatpush1.msra.mxu0 %v2275
    %2727 = vmatprep.subr.mxu0 %v2278
    %2728 = vmatpush1.msra.mxu0 %v2277
    %2729 = vmatprep.subr.mxu0 %v2280
    %2730 = vmatpush1.msra.mxu0 %v2279
    %2731 = vmatprep.subr.mxu0 %v2282
    %2732 = vmatpush1.msra.mxu0 %v2281
    %2733 = vmatprep.subr.mxu0 %v2284
    %2734 = vmatpush1.msra.mxu0 %v2283
    %2735 = vmatprep.subr.mxu0 %v2286
    %2736 = vmatpush1.msra.mxu0 %v2285
    %2737 = vmatprep.subr.mxu0 %v2288
    %2738 = vmatpush1.msra.mxu0 %v2287
    %2739 = vmatprep.subr.mxu0 %v2290
    %2740 = vmatpush1.msra.mxu0 %v2289
    %2741 = vmatprep.subr.mxu0 %v2292
    %2742 = vmatpush1.msra.mxu0 %v2291
    %2743 = vmatprep.subr.mxu0 %v2294
    %2744 = vmatpush1.msra.mxu0 %v2293
    %2745 = vmatprep.subr.mxu0 %v2296
    %2746 = vmatpush1.msra.mxu0 %v2295
    %2747 = vmatprep.subr.mxu0 %v2298
    %2748 = vmatpush1.msra.mxu0 %v2297
    %2749 = vmatprep.subr.mxu0 %v2300
    %2750 = vmatpush1.msra.mxu0 %v2299
    %2751 = vmatprep.subr.mxu0 %v2302
    %2752 = vmatpush1.msra.mxu0 %v2301
    %2753 = vmatprep.subr.mxu0 %v2304
    %2754 = vmatpush1.msra.mxu0 %v2303
    %2755 = vmatprep.subr.mxu0 %v2306
    %2756 = vmatpush1.msra.mxu0 %v2305
    %2757 = vmatprep.subr.mxu0 %v2308
    %2758 = vmatpush1.msra.mxu0 %v2307
    %2759 = vmatprep.subr.mxu0 %v2310
    %2760 = vmatpush1.msra.mxu0 %v2309
    %2761 = vmatprep.subr.mxu0 %v2312
    %2762 = vmatpush1.msra.mxu0 %v2311
    %2763 = vmatprep.subr.mxu0 %v2314
    %2764 = vmatpush1.msra.mxu0 %v2313
    %2765 = vmatprep.subr.mxu0 %v2316
    %2766 = vmatpush1.msra.mxu0 %v2315
    %2767 = vmatprep.subr.mxu0 %v2318
    %2768 = vmatpush1.msra.mxu0 %v2317
    %2769 = vmatprep.subr.mxu0 %v2320
    %2770 = vmatpush1.msra.mxu0 %v2319
    %2771 = vmatprep.subr.mxu0 %v2322
    %2772 = vmatpush1.msra.mxu0 %v2321
    %2773 = vmatprep.subr.mxu0 %v2324
    %2774 = vmatpush1.msra.mxu0 %v2323
    %2775 = vmatprep.mubr.f32.mxu0 %v1880
    %2776 = vmatmul.mubr.f32.gmra.mrb[0].mxu0 %v1878
    %v2777 = vpop.f32.mrb[0].mxu0
    %v2778 = vadd.f32 %v2617, %v2777
    %v2779 = vpop.f32.mrb[0].mxu0
    %v2780 = vadd.f32 %v2619, %v2779
    %2781 = vmatprep.mubr.f32.mxu0 %v1886
    %2782 = vmatmul.mubr.f32.gmra.mrb[0].mxu0 %v1884
    %v2783 = vpop.f32.mrb[0].mxu0
    %v2784 = vadd.f32 %v2623, %v2783
    %v2785 = vpop.f32.mrb[0].mxu0
    %v2786 = vadd.f32 %v2625, %v2785
    %2787 = vmatprep.mubr.f32.mxu0 %v1892
    %2788 = vmatmul.mubr.f32.gmra.mrb[0].mxu0 %v1890
    %v2789 = vpop.f32.mrb[0].mxu0
    %v2790 = vadd.f32 %v2629, %v2789
    %v2791 = vpop.f32.mrb[0].mxu0
    %v2792 = vadd.f32 %v2631, %v2791
    %2793 = vmatprep.mubr.f32.mxu0 %v1898
    %2794 = vmatmul.mubr.f32.gmra.mrb[0].mxu0 %v1896
    %v2795 = vpop.f32.mrb[0].mxu0
    %v2796 = vadd.f32 %v2635, %v2795
    %v2797 = vpop.f32.mrb[0].mxu0
    %v2798 = vadd.f32 %v2637, %v2797
    %2799 = vmatprep.mubr.f32.mxu0 %v1904
    %2800 = vmatmul.mubr.f32.gmra.mrb[0].mxu0 %v1902
    %v2801 = vpop.f32.mrb[0].mxu0
    %v2802 = vadd.f32 %v2641, %v2801
    %v2803 = vpop.f32.mrb[0].mxu0
    %v2804 = vadd.f32 %v2643, %v2803
    %2805 = vmatprep.mubr.f32.mxu0 %v1910
    %2806 = vmatmul.mubr.f32.gmra.mrb[0].mxu0 %v1908
    %v2807 = vpop.f32.mrb[0].mxu0
    %v2808 = vadd.f32 %v2647, %v2807
    %v2809 = vpop.f32.mrb[0].mxu0
    %v2810 = vadd.f32 %v2649, %v2809
    %2811 = vmatprep.mubr.f32.mxu0 %v1916
    %2812 = vmatmul.mubr.f32.gmra.mrb[0].mxu0 %v1914
    %v2813 = vpop.f32.mrb[0].mxu0
    %v2814 = vadd.f32 %v2653, %v2813
    %v2815 = vpop.f32.mrb[0].mxu0
    %v2816 = vadd.f32 %v2655, %v2815
    %2817 = vmatprep.mubr.f32.mxu0 %v1922
    %2818 = vmatmul.mubr.f32.gmra.mrb[0].mxu0 %v1920
    %v2819 = vpop.f32.mrb[0].mxu0
    %v2820 = vadd.f32 %v2659, %v2819
    %v2821 = vpop.f32.mrb[0].mxu0
    %v2822 = vadd.f32 %v2661, %v2821
    %2823 = vmatprep.mubr.f32.mxu0 %v1928
    %2824 = vmatmul.mubr.f32.gmra.mrb[0].mxu0 %v1926
    %v2825 = vpop.f32.mrb[0].mxu0
    %v2826 = vadd.f32 %v2665, %v2825
    %v2827 = vpop.f32.mrb[0].mxu0
    %v2828 = vadd.f32 %v2667, %v2827
    %2829 = vmatprep.mubr.f32.mxu0 %v1934
    %2830 = vmatmul.mubr.f32.gmra.mrb[0].mxu0 %v1932
    %v2831 = vpop.f32.mrb[0].mxu0
    %v2832 = vadd.f32 %v2671, %v2831
    %v2833 = vpop.f32.mrb[0].mxu0
    %v2834 = vadd.f32 %v2673, %v2833
    %2835 = vmatprep.mubr.f32.mxu0 %v1940
    %2836 = vmatmul.mubr.f32.gmra.mrb[0].mxu0 %v1938
    %v2837 = vpop.f32.mrb[0].mxu0
    %v2838 = vadd.f32 %v2677, %v2837
    %v2839 = vpop.f32.mrb[0].mxu0
    %v2840 = vadd.f32 %v2679, %v2839
    %2841 = vmatprep.mubr.f32.mxu0 %v1946
    %2842 = vmatmul.mubr.f32.gmra.mrb[0].mxu0 %v1944
    %v2843 = vpop.f32.mrb[0].mxu0
    %v2844 = vadd.f32 %v2683, %v2843
    %v2845 = vpop.f32.mrb[0].mxu0
    %v2846 = vadd.f32 %v2685, %v2845
    %2847 = vmatprep.mubr.f32.mxu0 %v1952
    %2848 = vmatmul.mubr.f32.gmra.mrb[0].mxu0 %v1950
    %v2849 = vpop.f32.mrb[0].mxu0
    %v2850 = vadd.f32 %v2689, %v2849
    %v2851 = vpop.f32.mrb[0].mxu0
    %v2852 = vadd.f32 %v2691, %v2851
    %2853 = vmatprep.mubr.f32.mxu0 %v1958
    %2854 = vmatmul.mubr.f32.gmra.mrb[0].mxu0 %v1956
    %v2855 = vpop.f32.mrb[0].mxu0
    %v2856 = vadd.f32 %v2695, %v2855
    %v2857 = vpop.f32.mrb[0].mxu0
    %v2858 = vadd.f32 %v2697, %v2857
    %2859 = vmatprep.mubr.f32.mxu0 %v1964
    %2860 = vmatmul.mubr.f32.gmra.mrb[0].mxu0 %v1962
    %v2861 = vpop.f32.mrb[0].mxu0
    %v2862 = vadd.f32 %v2701, %v2861
    %v2863 = vpop.f32.mrb[0].mxu0
    %v2864 = vadd.f32 %v2703, %v2863
    %2865 = vmatprep.mubr.f32.mxu0 %v1970
    %2866 = vmatmul.mubr.f32.gmra.mrb[0].mxu0 %v1968
    %v2867 = vpop.f32.mrb[0].mxu0
    %v2868 = vadd.f32 %v2707, %v2867
    %v2869 = vpop.f32.mrb[0].mxu0
    %v2870 = vadd.f32 %v2709, %v2869
    %2871 = vdwg.mxu0
    %2872 = vmatprep.subr.mxu0 %v2326
    %2873 = vmatpush1.msra.mxu0 %v2325
    %2874 = vmatprep.subr.mxu0 %v2328
    %2875 = vmatpush1.msra.mxu0 %v2327
    %2876 = vmatprep.subr.mxu0 %v2330
    %2877 = vmatpush1.msra.mxu0 %v2329
    %2878 = vmatprep.subr.mxu0 %v2332
    %2879 = vmatpush1.msra.mxu0 %v2331
    %2880 = vmatprep.subr.mxu0 %v2334
    %2881 = vmatpush1.msra.mxu0 %v2333
    %2882 = vmatprep.subr.mxu0 %v2336
    %2883 = vmatpush1.msra.mxu0 %v2335
    %2884 = vmatprep.subr.mxu0 %v2338
    %2885 = vmatpush1.msra.mxu0 %v2337
    %2886 = vmatprep.subr.mxu0 %v2340
    %2887 = vmatpush1.msra.mxu0 %v2339
    %2888 = vmatprep.subr.mxu0 %v2342
    %2889 = vmatpush1.msra.mxu0 %v2341
    %2890 = vmatprep.subr.mxu0 %v2344
    %2891 = vmatpush1.msra.mxu0 %v2343
    %2892 = vmatprep.subr.mxu0 %v2346
    %2893 = vmatpush1.msra.mxu0 %v2345
    %2894 = vmatprep.subr.mxu0 %v2348
    %2895 = vmatpush1.msra.mxu0 %v2347
    %2896 = vmatprep.subr.mxu0 %v2350
    %2897 = vmatpush1.msra.mxu0 %v2349
    %2898 = vmatprep.subr.mxu0 %v2352
    %2899 = vmatpush1.msra.mxu0 %v2351
    %2900 = vmatprep.subr.mxu0 %v2354
    %2901 = vmatpush1.msra.mxu0 %v2353
    %2902 = vmatprep.subr.mxu0 %v2356
    %2903 = vmatpush1.msra.mxu0 %v2355
    %2904 = vmatprep.subr.mxu0 %v2358
    %2905 = vmatpush1.msra.mxu0 %v2357
    %2906 = vmatprep.subr.mxu0 %v2360
    %2907 = vmatpush1.msra.mxu0 %v2359
    %2908 = vmatprep.subr.mxu0 %v2362
    %2909 = vmatpush1.msra.mxu0 %v2361
    %2910 = vmatprep.subr.mxu0 %v2364
    %2911 = vmatpush1.msra.mxu0 %v2363
    %2912 = vmatprep.subr.mxu0 %v2366
    %2913 = vmatpush1.msra.mxu0 %v2365
    %2914 = vmatprep.subr.mxu0 %v2368
    %2915 = vmatpush1.msra.mxu0 %v2367
    %2916 = vmatprep.subr.mxu0 %v2370
    %2917 = vmatpush1.msra.mxu0 %v2369
    %2918 = vmatprep.subr.mxu0 %v2372
    %2919 = vmatpush1.msra.mxu0 %v2371
    %2920 = vmatprep.subr.mxu0 %v2374
    %2921 = vmatpush1.msra.mxu0 %v2373
    %2922 = vmatprep.subr.mxu0 %v2376
    %2923 = vmatpush1.msra.mxu0 %v2375
    %2924 = vmatprep.subr.mxu0 %v2378
    %2925 = vmatpush1.msra.mxu0 %v2377
    %2926 = vmatprep.subr.mxu0 %v2380
    %2927 = vmatpush1.msra.mxu0 %v2379
    %2928 = vmatprep.subr.mxu0 %v2382
    %2929 = vmatpush1.msra.mxu0 %v2381
    %2930 = vmatprep.subr.mxu0 %v2384
    %2931 = vmatpush1.msra.mxu0 %v2383
    %2932 = vmatprep.subr.mxu0 %v2386
    %2933 = vmatpush1.msra.mxu0 %v2385
    %2934 = vmatprep.subr.mxu0 %v2388
    %2935 = vmatpush1.msra.mxu0 %v2387
    %2936 = vmatprep.mubr.f32.mxu0 %v2041
    %2937 = vmatmul.mubr.f32.gmra.mrb[0].mxu0 %v2039
    %v2938 = vpop.f32.mrb[0].mxu0
    %v2939 = vadd.f32 %v2778, %v2938
    %v2940 = vpop.f32.mrb[0].mxu0
    %v2941 = vadd.f32 %v2780, %v2940
    %2942 = vmatprep.mubr.f32.mxu0 %v2047
    %2943 = vmatmul.mubr.f32.gmra.mrb[0].mxu0 %v2045
    %v2944 = vpop.f32.mrb[0].mxu0
    %v2945 = vadd.f32 %v2784, %v2944
    %v2946 = vpop.f32.mrb[0].mxu0
    %v2947 = vadd.f32 %v2786, %v2946
    %2948 = vmatprep.mubr.f32.mxu0 %v2053
    %2949 = vmatmul.mubr.f32.gmra.mrb[0].mxu0 %v2051
    %v2950 = vpop.f32.mrb[0].mxu0
    %v2951 = vadd.f32 %v2790, %v2950
    %v2952 = vpop.f32.mrb[0].mxu0
    %v2953 = vadd.f32 %v2792, %v2952
    %2954 = vmatprep.mubr.f32.mxu0 %v2059
    %2955 = vmatmul.mubr.f32.gmra.mrb[0].mxu0 %v2057
    %v2956 = vpop.f32.mrb[0].mxu0
    %v2957 = vadd.f32 %v2796, %v2956
    %v2958 = vpop.f32.mrb[0].mxu0
    %v2959 = vadd.f32 %v2798, %v2958
    %2960 = vmatprep.mubr.f32.mxu0 %v2065
    %2961 = vmatmul.mubr.f32.gmra.mrb[0].mxu0 %v2063
    %v2962 = vpop.f32.mrb[0].mxu0
    %v2963 = vadd.f32 %v2802, %v2962
    %v2964 = vpop.f32.mrb[0].mxu0
    %v2965 = vadd.f32 %v2804, %v2964
    %2966 = vmatprep.mubr.f32.mxu0 %v2071
    %2967 = vmatmul.mubr.f32.gmra.mrb[0].mxu0 %v2069
    %v2968 = vpop.f32.mrb[0].mxu0
    %v2969 = vadd.f32 %v2808, %v2968
    %v2970 = vpop.f32.mrb[0].mxu0
    %v2971 = vadd.f32 %v2810, %v2970
    %2972 = vmatprep.mubr.f32.mxu0 %v2077
    %2973 = vmatmul.mubr.f32.gmra.mrb[0].mxu0 %v2075
    %v2974 = vpop.f32.mrb[0].mxu0
    %v2975 = vadd.f32 %v2814, %v2974
    %v2976 = vpop.f32.mrb[0].mxu0
    %v2977 = vadd.f32 %v2816, %v2976
    %2978 = vmatprep.mubr.f32.mxu0 %v2083
    %2979 = vmatmul.mubr.f32.gmra.mrb[0].mxu0 %v2081
    %v2980 = vpop.f32.mrb[0].mxu0
    %v2981 = vadd.f32 %v2820, %v2980
    %v2982 = vpop.f32.mrb[0].mxu0
    %v2983 = vadd.f32 %v2822, %v2982
    %2984 = vmatprep.mubr.f32.mxu0 %v2089
    %2985 = vmatmul.mubr.f32.gmra.mrb[0].mxu0 %v2087
    %v2986 = vpop.f32.mrb[0].mxu0
    %v2987 = vadd.f32 %v2826, %v2986
    %v2988 = vpop.f32.mrb[0].mxu0
    %v2989 = vadd.f32 %v2828, %v2988
    %2990 = vmatprep.mubr.f32.mxu0 %v2095
    %2991 = vmatmul.mubr.f32.gmra.mrb[0].mxu0 %v2093
    %v2992 = vpop.f32.mrb[0].mxu0
    %v2993 = vadd.f32 %v2832, %v2992
    %v2994 = vpop.f32.mrb[0].mxu0
    %v2995 = vadd.f32 %v2834, %v2994
    %2996 = vmatprep.mubr.f32.mxu0 %v2101
    %2997 = vmatmul.mubr.f32.gmra.mrb[0].mxu0 %v2099
    %v2998 = vpop.f32.mrb[0].mxu0
    %v2999 = vadd.f32 %v2838, %v2998
    %v3000 = vpop.f32.mrb[0].mxu0
    %v3001 = vadd.f32 %v2840, %v3000
    %3002 = vmatprep.mubr.f32.mxu0 %v2107
    %3003 = vmatmul.mubr.f32.gmra.mrb[0].mxu0 %v2105
    %v3004 = vpop.f32.mrb[0].mxu0
    %v3005 = vadd.f32 %v2844, %v3004
    %v3006 = vpop.f32.mrb[0].mxu0
    %v3007 = vadd.f32 %v2846, %v3006
    %3008 = vmatprep.mubr.f32.mxu0 %v2113
    %3009 = vmatmul.mubr.f32.gmra.mrb[0].mxu0 %v2111
    %v3010 = vpop.f32.mrb[0].mxu0
    %v3011 = vadd.f32 %v2850, %v3010
    %v3012 = vpop.f32.mrb[0].mxu0
    %v3013 = vadd.f32 %v2852, %v3012
    %3014 = vmatprep.mubr.f32.mxu0 %v2119
    %3015 = vmatmul.mubr.f32.gmra.mrb[0].mxu0 %v2117
    %v3016 = vpop.f32.mrb[0].mxu0
    %v3017 = vadd.f32 %v2856, %v3016
    %v3018 = vpop.f32.mrb[0].mxu0
    %v3019 = vadd.f32 %v2858, %v3018
    %3020 = vmatprep.mubr.f32.mxu0 %v2125
    %3021 = vmatmul.mubr.f32.gmra.mrb[0].mxu0 %v2123
    %v3022 = vpop.f32.mrb[0].mxu0
    %v3023 = vadd.f32 %v2862, %v3022
    %v3024 = vpop.f32.mrb[0].mxu0
    %v3025 = vadd.f32 %v2864, %v3024
    %3026 = vmatprep.mubr.f32.mxu0 %v2131
    %3027 = vmatmul.mubr.f32.gmra.mrb[0].mxu0 %v2129
    %v3028 = vpop.f32.mrb[0].mxu0
    %v3029 = vadd.f32 %v2868, %v3028
    %v3030 = vpop.f32.mrb[0].mxu0
    %v3031 = vadd.f32 %v2870, %v3030
    %3032 = vdwg.mxu0
    %3033 = vst [vmem:[#allocation7] sm:$0xff] %v2939
    %3034 = vst [vmem:[#allocation7 + $0x8] sm:$0xff] %v2941
    %3035 = vst [vmem:[#allocation7 + $0x10] sm:$0xff] %v2945
    %3036 = vst [vmem:[#allocation7 + $0x18] sm:$0xff] %v2947
    %3037 = vst [vmem:[#allocation7 + $0x20] sm:$0xff] %v2951
    %3038 = vst [vmem:[#allocation7 + $0x28] sm:$0xff] %v2953
    %3039 = vst [vmem:[#allocation7 + $0x30] sm:$0xff] %v2957
    %3040 = vst [vmem:[#allocation7 + $0x38] sm:$0xff] %v2959
    %3041 = vst [vmem:[#allocation7 + $0x40] sm:$0xff] %v2963
    %3042 = vst [vmem:[#allocation7 + $0x48] sm:$0xff] %v2965
    %3043 = vst [vmem:[#allocation7 + $0x50] sm:$0xff] %v2969
    %3044 = vst [vmem:[#allocation7 + $0x58] sm:$0xff] %v2971
    %3045 = vst [vmem:[#allocation7 + $0x60] sm:$0xff] %v2975
    %3046 = vst [vmem:[#allocation7 + $0x68] sm:$0xff] %v2977
    %3047 = vst [vmem:[#allocation7 + $0x70] sm:$0xff] %v2981
    %3048 = vst [vmem:[#allocation7 + $0x78] sm:$0xff] %v2983
    %3049 = vst [vmem:[#allocation7 + $0x80] sm:$0xff] %v2987
    %3050 = vst [vmem:[#allocation7 + $0x88] sm:$0xff] %v2989
    %3051 = vst [vmem:[#allocation7 + $0x90] sm:$0xff] %v2993
    %3052 = vst [vmem:[#allocation7 + $0x98] sm:$0xff] %v2995
    %3053 = vst [vmem:[#allocation7 + $0xa0] sm:$0xff] %v2999
    %3054 = vst [vmem:[#allocation7 + $0xa8] sm:$0xff] %v3001
    %3055 = vst [vmem:[#allocation7 + $0xb0] sm:$0xff] %v3005
    %3056 = vst [vmem:[#allocation7 + $0xb8] sm:$0xff] %v3007
    %3057 = vst [vmem:[#allocation7 + $0xc0] sm:$0xff] %v3011
    %3058 = vst [vmem:[#allocation7 + $0xc8] sm:$0xff] %v3013
    %3059 = vst [vmem:[#allocation7 + $0xd0] sm:$0xff] %v3017
    %3060 = vst [vmem:[#allocation7 + $0xd8] sm:$0xff] %v3019
    %3061 = vst [vmem:[#allocation7 + $0xe0] sm:$0xff] %v3023
    %3062 = vst [vmem:[#allocation7 + $0xe8] sm:$0xff] %v3025
    %3063 = vst [vmem:[#allocation7 + $0xf0] sm:$0xff] %v3029
    %3064 = vst [vmem:[#allocation7 + $0xf8] sm:$0xff] %v3031
    // Predicated region
    $region30: #{tpu_custom_call.1} parent=1 // pred_check
      _
    $region31: #{tpu_custom_call.1} parent=1 // pred_check_branch
      %3066 = sbr.rel (0) target = $region33
    $region32: #{tpu_custom_call.1} parent=1 // pred_region
      %s3068 = ssub.s32 4096, 4096
      %3069 = vsyncadd [#allocation4], %s3068
      %s3070 = sshll.u32 [#allocation7], 4
      %s3071 = int_to_ptr.vmem [resolvable:$true] %s3070
      %3076 = dma.vmem_to_hbm [thread:$0]  %s3071, 4096, %s5, [#allocation4], 256, 256, 16
    $region33: #{tpu_custom_call.1} parent=1 // pred_fallthru
      _
    // Predicated region
    $region34: #{tpu_custom_call.1} parent=1 // pred_check
      _
    $region35: #{tpu_custom_call.1} parent=1 // pred_check_branch
      %3078 = sbr.rel (0) target = $region37
    $region36: #{tpu_custom_call.1} parent=1 // pred_region
      %3079 = dma.done [#allocation4], 4096
    $region37: #{tpu_custom_call.1} parent=1 // pred_fallthru
      _
    %3080 = vsyncpa [#allocation3], 1
    %3081 = vsyncpa [#allocation6], 1
    %3082 = vsyncpa [#allocation4], 1

</llo_original>
